<compile_context>
chip_gen: v5e
topology: v5e:2x2
jax: 0.10.0
libtpu: 0.0.40
codegen_flags: <defaults>
</compile_context>

<pallas_src>
import math
import jax
import jax.numpy as jnp
from jax.experimental import pallas as pl
from jax.experimental.pallas import tpu as pltpu

# ---------------- configuration (small synthetic sizes) ----------------
D_MODEL = 32
NHEADS = 4
HEAD_DIM = D_MODEL // NHEADS
DIM_FF = 64
NUM_LAYERS = 2
T_LEN = 8      # number of target queries
S_LEN = 16     # memory length (e.g. 4x4 spatial tokens)
BATCH = 2
SCALE = 1.0 / math.sqrt(HEAD_DIM)
EPS = 1e-5

# rows of the packed per-layer (16, D) vector table (biases / norm params)
_VEC_ROWS = ("saq_b", "sak_b", "sav_b", "sao_b",
             "caq_b", "cak_b", "cav_b", "cao_b",
             "ff2_b", "n1_g", "n1_b", "n2_g", "n2_b", "n3_g", "n3_b")
(V_SAQ_B, V_SAK_B, V_SAV_B, V_SAO_B,
 V_CAQ_B, V_CAK_B, V_CAV_B, V_CAO_B,
 V_FF2_B, V_N1_G, V_N1_B, V_N2_G, V_N2_B, V_N3_G, V_N3_B) = range(15)


# ---------------- shared math ----------------
def _ln(x, g, b):
    mu = jnp.mean(x, axis=-1, keepdims=True)
    var = jnp.mean(jnp.square(x - mu), axis=-1, keepdims=True)
    return (x - mu) * jax.lax.rsqrt(var + EPS) * g + b


def _mm(a, w):
    """MXU matmul: bf16 operands, f32 accumulation."""
    return jnp.dot(a.astype(jnp.bfloat16), w.astype(jnp.bfloat16),
                   preferred_element_type=jnp.float32)


def _mha_flat(q_in, k_in, v_in, lq, lk, wq, bq, wk, bk, wv, bv, wo, bo):
    """Multi-head attention. q_in: (B*lq, D); k_in/v_in: (B*lk, D). Returns (B*lq, D)."""
    q = _mm(q_in, wq) + bq
    k = _mm(k_in, wk) + bk
    v = _mm(v_in, wv) + bv
    q3 = q.reshape(BATCH, lq, D_MODEL).astype(jnp.bfloat16)
    k3 = k.reshape(BATCH, lk, D_MODEL).astype(jnp.bfloat16)
    v3 = v.reshape(BATCH, lk, D_MODEL).astype(jnp.bfloat16)
    heads = []
    for h in range(NHEADS):            # static unroll; each step is batched over B
        sl = slice(h * HEAD_DIM, (h + 1) * HEAD_DIM)
        s = jnp.einsum("btd,bsd->bts", q3[:, :, sl], k3[:, :, sl],
                       preferred_element_type=jnp.float32) * SCALE
        s = s - jnp.max(s, axis=-1, keepdims=True)
        p = jnp.exp(s)
        p = p * pl.reciprocal(jnp.sum(p, axis=-1, keepdims=True), approx=True)
        heads.append(jnp.einsum("bts,bsd->btd", p.astype(jnp.bfloat16), v3[:, :, sl],
                                preferred_element_type=jnp.float32))
    o = jnp.concatenate(heads, axis=-1).reshape(BATCH * lq, D_MODEL)
    return _mm(o, wo) + bo


# ---------------- fused Pallas kernel: all layers + final norm ----------------
def decoder_kernel(tgt_ref, mem_ref, qpos_ref, pos_ref,
                   attn_w_ref,   # (L, 8, D, D): saq, sak, sav, sao, caq, cak, cav, cao
                   ff1_w_ref,    # (L, D, FF)
                   ff2_w_ref,    # (L, FF, D)
                   vec_ref,      # (L, 16, D): biases + norm gains/biases (see _VEC_ROWS)
                   ff1_b_ref,    # (L, 1, FF)
                   fnorm_ref,    # (2, D): final norm gamma, beta
                   out_ref):     # (B, T, D)
    x = tgt_ref[...].reshape(BATCH * T_LEN, D_MODEL)       # residual stream, f32
    qp = qpos_ref[...].reshape(BATCH * T_LEN, D_MODEL)
    mem = mem_ref[...].reshape(BATCH * S_LEN, D_MODEL)
    memk = mem + pos_ref[...].reshape(BATCH * S_LEN, D_MODEL)

    for layer in range(NUM_LAYERS):        # static unroll: x never leaves VMEM
        vd = vec_ref[layer]                # (16, D)
        vb = lambda i: vd[i:i + 1, :]      # (1, D)
        aw = lambda i: attn_w_ref[layer, i]  # (D, D)

        # --- self attention (q = k = x + query_pos, v = x) ---
        q_in = x + qp
        sa = _mha_flat(q_in, q_in, x, T_LEN, T_LEN,
                       aw(0), vb(V_SAQ_B), aw(1), vb(V_SAK_B),
                       aw(2), vb(V_SAV_B), aw(3), vb(V_SAO_B))
        x = _ln(x + sa, vb(V_N1_G), vb(V_N1_B))

        # --- cross attention (q = x + query_pos, k = memory + pos, v = memory) ---
        ca = _mha_flat(x + qp, memk, mem, T_LEN, S_LEN,
                       aw(4), vb(V_CAQ_B), aw(5), vb(V_CAK_B),
                       aw(6), vb(V_CAV_B), aw(7), vb(V_CAO_B))
        x = _ln(x + ca, vb(V_N2_G), vb(V_N2_B))

        # --- feed-forward (ReLU), dropout = identity ---
        h = jnp.maximum(_mm(x, ff1_w_ref[layer]) + ff1_b_ref[layer], 0.0)
        ff = _mm(h, ff2_w_ref[layer]) + vb(V_FF2_B)
        x = _ln(x + ff, vb(V_N3_G), vb(V_N3_B))

    # decoder's final LayerNorm, fused into the same kernel
    x = _ln(x, fnorm_ref[0:1, :], fnorm_ref[1:2, :])
    out_ref[...] = x.reshape(BATCH, T_LEN, D_MODEL).astype(out_ref.dtype)


# ---------------- parameter packing (26 tensors/layer -> 6 stacked inputs) ----------------
def _pack_params(layer_params, norm_g, norm_b):
    attn_w = jnp.stack([
        jnp.stack([p["saq_w"], p["sak_w"], p["sav_w"], p["sao_w"],
                   p["caq_w"], p["cak_w"], p["cav_w"], p["cao_w"]])
        for p in layer_params])                                   # (L, 8, D, D)
    ff1_w = jnp.stack([p["ff1_w"] for p in layer_params])          # (L, D, FF)
    ff2_w = jnp.stack([p["ff2_w"] for p in layer_params])          # (L, FF, D)
    vec = jnp.stack([
        jnp.concatenate([p[k] for k in _VEC_ROWS]
                        + [jnp.zeros((1, D_MODEL), jnp.float32)], axis=0)
        for p in layer_params])                                    # (L, 16, D)
    ff1_b = jnp.stack([p["ff1_b"] for p in layer_params])          # (L, 1, FF)
    fnorm = jnp.concatenate([norm_g, norm_b], axis=0)              # (2, D)
    return attn_w, ff1_w, ff2_w, vec, ff1_b, fnorm


# ---------------- wrapper around pallas_call ----------------
@jax.jit
def transformer_decoder(tgt, memory, pos, query_pos, layer_params, norm_g, norm_b):
    """TransformerDecoder.forward with masks=None, return_intermediate=False."""
    # TODO(synk): tgt_mask / memory_mask / key-padding masks not implemented
    # (the module's forward receives them as None in this synthetic setup).
    x = jnp.transpose(tgt, (1, 0, 2))        # (B, T, D)
    mem = jnp.transpose(memory, (1, 0, 2))   # (B, S, D)
    qp = jnp.transpose(query_pos, (1, 0, 2))
    ps = jnp.transpose(pos, (1, 0, 2))
    packed = _pack_params(layer_params, norm_g, norm_b)

    vmem = pl.BlockSpec(memory_space=pltpu.MemorySpace.VMEM)
    out = pl.pallas_call(
        decoder_kernel,
        out_shape=jax.ShapeDtypeStruct((BATCH, T_LEN, D_MODEL), jnp.float32),
        in_specs=[vmem] * (4 + len(packed)),
        out_specs=vmem,
    )(x, mem, qp, ps, *packed)
    return jnp.transpose(out, (1, 0, 2))     # back to (T, B, D)


# ---------------- deterministic parameter init ----------------
def init_layer_params(key):
    ks = jax.random.split(key, 12)
    w = lambda k, s: 0.05 * jax.random.normal(k, s, jnp.float32)
    zeros = lambda s: jnp.zeros(s, jnp.float32)
    ones = lambda s: jnp.ones(s, jnp.float32)
    return {
        "saq_w": w(ks[0], (D_MODEL, D_MODEL)), "saq_b": zeros((1, D_MODEL)),
        "sak_w": w(ks[1], (D_MODEL, D_MODEL)), "sak_b": zeros((1, D_MODEL)),
        "sav_w": w(ks[2], (D_MODEL, D_MODEL)), "sav_b": zeros((1, D_MODEL)),
        "sao_w": w(ks[3], (D_MODEL, D_MODEL)), "sao_b": zeros((1, D_MODEL)),
        "n1_g": ones((1, D_MODEL)), "n1_b": zeros((1, D_MODEL)),
        "caq_w": w(ks[4], (D_MODEL, D_MODEL)), "caq_b": zeros((1, D_MODEL)),
        "cak_w": w(ks[5], (D_MODEL, D_MODEL)), "cak_b": zeros((1, D_MODEL)),
        "cav_w": w(ks[6], (D_MODEL, D_MODEL)), "cav_b": zeros((1, D_MODEL)),
        "cao_w": w(ks[7], (D_MODEL, D_MODEL)), "cao_b": zeros((1, D_MODEL)),
        "n2_g": ones((1, D_MODEL)), "n2_b": zeros((1, D_MODEL)),
        "ff1_w": w(ks[8], (D_MODEL, DIM_FF)), "ff1_b": zeros((1, DIM_FF)),
        "ff2_w": w(ks[9], (DIM_FF, D_MODEL)), "ff2_b": zeros((1, D_MODEL)),
        "n3_g": ones((1, D_MODEL)), "n3_b": zeros((1, D_MODEL)),
    }


# ---------------- pure-JAX reference (for a sanity check) ----------------
def _ref_mha(q_in, k_in, v_in, p, pre):
    wq, bq = p[pre + "q_w"], p[pre + "q_b"]
    wk, bk = p[pre + "k_w"], p[pre + "k_b"]
    wv, bv = p[pre + "v_w"], p[pre + "v_b"]
    wo, bo = p[pre + "o_w"], p[pre + "o_b"]
    B, L, _ = q_in.shape
    S = k_in.shape[1]
    q = q_in @ wq + bq
    k = k_in @ wk + bk
    v = v_in @ wv + bv
    qh = q.reshape(B, L, NHEADS, HEAD_DIM)
    kh = k.reshape(B, S, NHEADS, HEAD_DIM)
    vh = v.reshape(B, S, NHEADS, HEAD_DIM)
    s = jnp.einsum("blhd,bshd->bhls", qh, kh) * SCALE
    s = s - s.max(-1, keepdims=True)
    a = jnp.exp(s)
    a = a / a.sum(-1, keepdims=True)
    o = jnp.einsum("bhls,bshd->blhd", a, vh).reshape(B, L, D_MODEL)
    return o @ wo + bo


def _ref_layer(x, mem, qp, ps, p):
    sa = _ref_mha(x + qp, x + qp, x, p, "sa")
    x = _ln(x + sa, p["n1_g"], p["n1_b"])
    ca = _ref_mha(x + qp, mem + ps, mem, p, "ca")
    x = _ln(x + ca, p["n2_g"], p["n2_b"])
    h = jnp.maximum(x @ p["ff1_w"] + p["ff1_b"], 0.0)
    x = _ln(x + (h @ p["ff2_w"] + p["ff2_b"]), p["n3_g"], p["n3_b"])
    return x


def _ref_decoder(tgt, memory, pos, query_pos, layer_params, g, b):
    x = jnp.transpose(tgt, (1, 0, 2))
    mem = jnp.transpose(memory, (1, 0, 2))
    qp = jnp.transpose(query_pos, (1, 0, 2))
    ps = jnp.transpose(pos, (1, 0, 2))
    for p in layer_params:
        x = _ref_layer(x, mem, qp, ps, p)
    x = _ln(x, g, b)
    return jnp.transpose(x, (1, 0, 2))


# ---------------- main ----------------
if __name__ == "__main__":
    key = jax.random.PRNGKey(0)
    k_tgt, k_mem, k_qp, k_pos, k_par = jax.random.split(key, 5)
    tgt = jax.random.normal(k_tgt, (T_LEN, BATCH, D_MODEL), jnp.float32)
    memory = jax.random.normal(k_mem, (S_LEN, BATCH, D_MODEL), jnp.float32)
    query_pos = jax.random.normal(k_qp, (T_LEN, BATCH, D_MODEL), jnp.float32)
    pos = jax.random.normal(k_pos, (S_LEN, BATCH, D_MODEL), jnp.float32)

    layer_keys = jax.random.split(k_par, NUM_LAYERS)
    layer_params = [init_layer_params(layer_keys[i]) for i in range(NUM_LAYERS)]
    norm_g = jnp.ones((1, D_MODEL), jnp.float32)
    norm_b = jnp.zeros((1, D_MODEL), jnp.float32)

    out = transformer_decoder(tgt, memory, pos, query_pos,
                              layer_params, norm_g, norm_b)
    out = jax.block_until_ready(out)
    assert out.shape == (T_LEN, BATCH, D_MODEL)

    ref = _ref_decoder(tgt, memory, pos, query_pos,
                       layer_params, norm_g, norm_b)
    err = float(jnp.max(jnp.abs(out - ref)))
    # loose tolerance: kernel matmuls use bf16 operands (f32 accumulation) on the MXU
    if err > 5e-2:
        raise AssertionError(f"kernel/reference mismatch, max abs err = {err}")
    print("KERNEL_OK")
</pallas_src>

<mosaic_0001>
module attributes {stable_mosaic.version = 11 : i64} {
  func.func @decoder_kernel(%arg0: memref<2x8x32xf32, #tpu.memory_space<vmem>>, %arg1: memref<2x16x32xf32, #tpu.memory_space<vmem>>, %arg2: memref<2x8x32xf32, #tpu.memory_space<vmem>>, %arg3: memref<2x16x32xf32, #tpu.memory_space<vmem>>, %arg4: memref<2x8x32x32xf32, #tpu.memory_space<vmem>>, %arg5: memref<2x32x64xf32, #tpu.memory_space<vmem>>, %arg6: memref<2x64x32xf32, #tpu.memory_space<vmem>>, %arg7: memref<2x16x32xf32, #tpu.memory_space<vmem>>, %arg8: memref<2x1x64xf32, #tpu.memory_space<vmem>>, %arg9: memref<2x32xf32, #tpu.memory_space<vmem>>, %arg10: memref<2x8x32xf32, #tpu.memory_space<vmem>>) attributes {dimension_semantics = [], scalar_prefetch = 0 : i64, scratch_operands = 0 : i64, tpu.core_type = #tpu.core_type<tc>} {
    %c0 = arith.constant 0 : index
    %c0_0 = arith.constant 0 : index
    %c0_1 = arith.constant 0 : index
    %0 = vector.load %arg0[%c0, %c0_0, %c0_1] : memref<2x8x32xf32, #tpu.memory_space<vmem>>, vector<2x8x32xf32>
    %1 = vector.shape_cast %0 : vector<2x8x32xf32> to vector<16x32xf32>
    %c0_2 = arith.constant 0 : index
    %c0_3 = arith.constant 0 : index
    %c0_4 = arith.constant 0 : index
    %2 = vector.load %arg2[%c0_2, %c0_3, %c0_4] : memref<2x8x32xf32, #tpu.memory_space<vmem>>, vector<2x8x32xf32>
    %3 = vector.shape_cast %2 : vector<2x8x32xf32> to vector<16x32xf32>
    %c0_5 = arith.constant 0 : index
    %c0_6 = arith.constant 0 : index
    %c0_7 = arith.constant 0 : index
    %4 = vector.load %arg1[%c0_5, %c0_6, %c0_7] : memref<2x16x32xf32, #tpu.memory_space<vmem>>, vector<2x16x32xf32>
    %5 = vector.shape_cast %4 : vector<2x16x32xf32> to vector<32x32xf32>
    %c0_8 = arith.constant 0 : index
    %c0_9 = arith.constant 0 : index
    %c0_10 = arith.constant 0 : index
    %6 = vector.load %arg3[%c0_8, %c0_9, %c0_10] : memref<2x16x32xf32, #tpu.memory_space<vmem>>, vector<2x16x32xf32>
    %7 = vector.shape_cast %6 : vector<2x16x32xf32> to vector<32x32xf32>
    %8 = arith.addf %5, %7 : vector<32x32xf32>
    %c0_11 = arith.constant 0 : index
    %c0_12 = arith.constant 0 : index
    %c0_13 = arith.constant 0 : index
    %9 = vector.load %arg7[%c0_11, %c0_12, %c0_13] : memref<2x16x32xf32, #tpu.memory_space<vmem>>, vector<1x16x32xf32>
    %10 = vector.shape_cast %9 : vector<1x16x32xf32> to vector<16x32xf32>
    %11 = arith.addf %1, %3 : vector<16x32xf32>
    %c0_14 = arith.constant 0 : index
    %c0_15 = arith.constant 0 : index
    %c0_16 = arith.constant 0 : index
    %c0_17 = arith.constant 0 : index
    %12 = vector.load %arg4[%c0_14, %c0_15, %c0_16, %c0_17] : memref<2x8x32x32xf32, #tpu.memory_space<vmem>>, vector<1x1x32x32xf32>
    %13 = vector.shape_cast %12 : vector<1x1x32x32xf32> to vector<32x32xf32>
    %14 = vector.extract_strided_slice %10 {offsets = [0, 0], sizes = [1, 32], strides = [1, 1]} : vector<16x32xf32> to vector<1x32xf32>
    %c0_18 = arith.constant 0 : index
    %c1 = arith.constant 1 : index
    %c0_19 = arith.constant 0 : index
    %c0_20 = arith.constant 0 : index
    %15 = vector.load %arg4[%c0_18, %c1, %c0_19, %c0_20] : memref<2x8x32x32xf32, #tpu.memory_space<vmem>>, vector<1x1x32x32xf32>
    %16 = vector.shape_cast %15 : vector<1x1x32x32xf32> to vector<32x32xf32>
    %17 = vector.extract_strided_slice %10 {offsets = [1, 0], sizes = [1, 32], strides = [1, 1]} : vector<16x32xf32> to vector<1x32xf32>
    %c0_21 = arith.constant 0 : index
    %c2 = arith.constant 2 : index
    %c0_22 = arith.constant 0 : index
    %c0_23 = arith.constant 0 : index
    %18 = vector.load %arg4[%c0_21, %c2, %c0_22, %c0_23] : memref<2x8x32x32xf32, #tpu.memory_space<vmem>>, vector<1x1x32x32xf32>
    %19 = vector.shape_cast %18 : vector<1x1x32x32xf32> to vector<32x32xf32>
    %20 = vector.extract_strided_slice %10 {offsets = [2, 0], sizes = [1, 32], strides = [1, 1]} : vector<16x32xf32> to vector<1x32xf32>
    %c0_24 = arith.constant 0 : index
    %c3 = arith.constant 3 : index
    %c0_25 = arith.constant 0 : index
    %c0_26 = arith.constant 0 : index
    %21 = vector.load %arg4[%c0_24, %c3, %c0_25, %c0_26] : memref<2x8x32x32xf32, #tpu.memory_space<vmem>>, vector<1x1x32x32xf32>
    %22 = vector.shape_cast %21 : vector<1x1x32x32xf32> to vector<32x32xf32>
    %23 = vector.extract_strided_slice %10 {offsets = [3, 0], sizes = [1, 32], strides = [1, 1]} : vector<16x32xf32> to vector<1x32xf32>
    %24 = arith.truncf %11 : vector<16x32xf32> to vector<16x32xbf16>
    %25 = arith.truncf %13 : vector<32x32xf32> to vector<32x32xbf16>
    %cst = arith.constant dense<0.000000e+00> : vector<16x32xf32>
    %26 = tpu.matmul %24, %25, %cst {dimension_numbers = #tpu.dot_dimension_numbers<[1], [0], [0], [1], [0, 0, 1, 1], [], []>} : vector<16x32xbf16>, vector<32x32xbf16>, vector<16x32xf32> -> vector<16x32xf32>
    %27 = vector.broadcast %14 : vector<1x32xf32> to vector<16x32xf32>
    %28 = arith.addf %26, %27 : vector<16x32xf32>
    %29 = arith.truncf %11 : vector<16x32xf32> to vector<16x32xbf16>
    %30 = arith.truncf %16 : vector<32x32xf32> to vector<32x32xbf16>
    %cst_27 = arith.constant dense<0.000000e+00> : vector<16x32xf32>
    %31 = tpu.matmul %29, %30, %cst_27 {dimension_numbers = #tpu.dot_dimension_numbers<[1], [0], [0], [1], [0, 0, 1, 1], [], []>} : vector<16x32xbf16>, vector<32x32xbf16>, vector<16x32xf32> -> vector<16x32xf32>
    %32 = vector.broadcast %17 : vector<1x32xf32> to vector<16x32xf32>
    %33 = arith.addf %31, %32 : vector<16x32xf32>
    %34 = arith.truncf %1 : vector<16x32xf32> to vector<16x32xbf16>
    %35 = arith.truncf %19 : vector<32x32xf32> to vector<32x32xbf16>
    %cst_28 = arith.constant dense<0.000000e+00> : vector<16x32xf32>
    %36 = tpu.matmul %34, %35, %cst_28 {dimension_numbers = #tpu.dot_dimension_numbers<[1], [0], [0], [1], [0, 0, 1, 1], [], []>} : vector<16x32xbf16>, vector<32x32xbf16>, vector<16x32xf32> -> vector<16x32xf32>
    %37 = vector.broadcast %20 : vector<1x32xf32> to vector<16x32xf32>
    %38 = arith.addf %36, %37 : vector<16x32xf32>
    %39 = vector.shape_cast %28 : vector<16x32xf32> to vector<2x8x32xf32>
    %40 = arith.truncf %39 : vector<2x8x32xf32> to vector<2x8x32xbf16>
    %41 = vector.shape_cast %33 : vector<16x32xf32> to vector<2x8x32xf32>
    %42 = arith.truncf %41 : vector<2x8x32xf32> to vector<2x8x32xbf16>
    %43 = vector.shape_cast %38 : vector<16x32xf32> to vector<2x8x32xf32>
    %44 = arith.truncf %43 : vector<2x8x32xf32> to vector<2x8x32xbf16>
    %45 = vector.extract_strided_slice %40 {offsets = [0, 0, 0], sizes = [2, 8, 8], strides = [1, 1, 1]} : vector<2x8x32xbf16> to vector<2x8x8xbf16>
    %46 = vector.extract_strided_slice %42 {offsets = [0, 0, 0], sizes = [2, 8, 8], strides = [1, 1, 1]} : vector<2x8x32xbf16> to vector<2x8x8xbf16>
    "tpu.trace_start"() <{level = 10 : i32, message = "btd,bsd->bts"}> : () -> ()
    %cst_29 = arith.constant dense<0.000000e+00> : vector<2x8x8xf32>
    %47 = tpu.matmul %45, %46, %cst_29 {dimension_numbers = #tpu.dot_dimension_numbers<[2], [2], [1], [1], [0, 0, 0, 1, 1, 1], [0], [0]>} : vector<2x8x8xbf16>, vector<2x8x8xbf16>, vector<2x8x8xf32> -> vector<2x8x8xf32>
    "tpu.trace_stop"() : () -> ()
    %cst_30 = arith.constant 0.353553385 : f32
    %48 = vector.broadcast %cst_30 : f32 to vector<2x8x8xf32>
    %49 = arith.mulf %47, %48 : vector<2x8x8xf32>
    %cst_31 = arith.constant dense<0xFF800000> : vector<2x8xf32>
    %50 = vector.multi_reduction <maximumf>, %49, %cst_31 [2] : vector<2x8x8xf32> to vector<2x8xf32>
    %51 = vector.shape_cast %50 : vector<2x8xf32> to vector<2x8x1xf32>
    %52 = vector.broadcast %51 : vector<2x8x1xf32> to vector<2x8x8xf32>
    %53 = arith.subf %49, %52 : vector<2x8x8xf32>
    %54 = math.exp %53 : vector<2x8x8xf32>
    %cst_32 = arith.constant dense<0.000000e+00> : vector<2x8xf32>
    %55 = vector.multi_reduction <add>, %54, %cst_32 [2] : vector<2x8x8xf32> to vector<2x8xf32>
    %56 = vector.shape_cast %55 : vector<2x8xf32> to vector<2x8x1xf32>
    %57 = tpu.reciprocal %56 {approx = true} : vector<2x8x1xf32> -> vector<2x8x1xf32>
    %58 = vector.broadcast %57 : vector<2x8x1xf32> to vector<2x8x8xf32>
    %59 = arith.mulf %54, %58 : vector<2x8x8xf32>
    %60 = arith.truncf %59 : vector<2x8x8xf32> to vector<2x8x8xbf16>
    %61 = vector.extract_strided_slice %44 {offsets = [0, 0, 0], sizes = [2, 8, 8], strides = [1, 1, 1]} : vector<2x8x32xbf16> to vector<2x8x8xbf16>
    "tpu.trace_start"() <{level = 10 : i32, message = "bts,bsd->btd"}> : () -> ()
    %cst_33 = arith.constant dense<0.000000e+00> : vector<2x8x8xf32>
    %62 = tpu.matmul %60, %61, %cst_33 {dimension_numbers = #tpu.dot_dimension_numbers<[2], [1], [1], [2], [0, 0, 0, 1, 1, 2], [0], [0]>} : vector<2x8x8xbf16>, vector<2x8x8xbf16>, vector<2x8x8xf32> -> vector<2x8x8xf32>
    "tpu.trace_stop"() : () -> ()
    %63 = vector.extract_strided_slice %40 {offsets = [0, 0, 8], sizes = [2, 8, 8], strides = [1, 1, 1]} : vector<2x8x32xbf16> to vector<2x8x8xbf16>
    %64 = vector.extract_strided_slice %42 {offsets = [0, 0, 8], sizes = [2, 8, 8], strides = [1, 1, 1]} : vector<2x8x32xbf16> to vector<2x8x8xbf16>
    "tpu.trace_start"() <{level = 10 : i32, message = "btd,bsd->bts"}> : () -> ()
    %cst_34 = arith.constant dense<0.000000e+00> : vector<2x8x8xf32>
    %65 = tpu.matmul %63, %64, %cst_34 {dimension_numbers = #tpu.dot_dimension_numbers<[2], [2], [1], [1], [0, 0, 0, 1, 1, 1], [0], [0]>} : vector<2x8x8xbf16>, vector<2x8x8xbf16>, vector<2x8x8xf32> -> vector<2x8x8xf32>
    "tpu.trace_stop"() : () -> ()
    %cst_35 = arith.constant 0.353553385 : f32
    %66 = vector.broadcast %cst_35 : f32 to vector<2x8x8xf32>
    %67 = arith.mulf %65, %66 : vector<2x8x8xf32>
    %cst_36 = arith.constant dense<0xFF800000> : vector<2x8xf32>
    %68 = vector.multi_reduction <maximumf>, %67, %cst_36 [2] : vector<2x8x8xf32> to vector<2x8xf32>
    %69 = vector.shape_cast %68 : vector<2x8xf32> to vector<2x8x1xf32>
    %70 = vector.broadcast %69 : vector<2x8x1xf32> to vector<2x8x8xf32>
    %71 = arith.subf %67, %70 : vector<2x8x8xf32>
    %72 = math.exp %71 : vector<2x8x8xf32>
    %cst_37 = arith.constant dense<0.000000e+00> : vector<2x8xf32>
    %73 = vector.multi_reduction <add>, %72, %cst_37 [2] : vector<2x8x8xf32> to vector<2x8xf32>
    %74 = vector.shape_cast %73 : vector<2x8xf32> to vector<2x8x1xf32>
    %75 = tpu.reciprocal %74 {approx = true} : vector<2x8x1xf32> -> vector<2x8x1xf32>
    %76 = vector.broadcast %75 : vector<2x8x1xf32> to vector<2x8x8xf32>
    %77 = arith.mulf %72, %76 : vector<2x8x8xf32>
    %78 = arith.truncf %77 : vector<2x8x8xf32> to vector<2x8x8xbf16>
    %79 = vector.extract_strided_slice %44 {offsets = [0, 0, 8], sizes = [2, 8, 8], strides = [1, 1, 1]} : vector<2x8x32xbf16> to vector<2x8x8xbf16>
    "tpu.trace_start"() <{level = 10 : i32, message = "bts,bsd->btd"}> : () -> ()
    %cst_38 = arith.constant dense<0.000000e+00> : vector<2x8x8xf32>
    %80 = tpu.matmul %78, %79, %cst_38 {dimension_numbers = #tpu.dot_dimension_numbers<[2], [1], [1], [2], [0, 0, 0, 1, 1, 2], [0], [0]>} : vector<2x8x8xbf16>, vector<2x8x8xbf16>, vector<2x8x8xf32> -> vector<2x8x8xf32>
    "tpu.trace_stop"() : () -> ()
    %81 = vector.extract_strided_slice %40 {offsets = [0, 0, 16], sizes = [2, 8, 8], strides = [1, 1, 1]} : vector<2x8x32xbf16> to vector<2x8x8xbf16>
    %82 = vector.extract_strided_slice %42 {offsets = [0, 0, 16], sizes = [2, 8, 8], strides = [1, 1, 1]} : vector<2x8x32xbf16> to vector<2x8x8xbf16>
    "tpu.trace_start"() <{level = 10 : i32, message = "btd,bsd->bts"}> : () -> ()
    %cst_39 = arith.constant dense<0.000000e+00> : vector<2x8x8xf32>
    %83 = tpu.matmul %81, %82, %cst_39 {dimension_numbers = #tpu.dot_dimension_numbers<[2], [2], [1], [1], [0, 0, 0, 1, 1, 1], [0], [0]>} : vector<2x8x8xbf16>, vector<2x8x8xbf16>, vector<2x8x8xf32> -> vector<2x8x8xf32>
    "tpu.trace_stop"() : () -> ()
    %cst_40 = arith.constant 0.353553385 : f32
    %84 = vector.broadcast %cst_40 : f32 to vector<2x8x8xf32>
    %85 = arith.mulf %83, %84 : vector<2x8x8xf32>
    %cst_41 = arith.constant dense<0xFF800000> : vector<2x8xf32>
    %86 = vector.multi_reduction <maximumf>, %85, %cst_41 [2] : vector<2x8x8xf32> to vector<2x8xf32>
    %87 = vector.shape_cast %86 : vector<2x8xf32> to vector<2x8x1xf32>
    %88 = vector.broadcast %87 : vector<2x8x1xf32> to vector<2x8x8xf32>
    %89 = arith.subf %85, %88 : vector<2x8x8xf32>
    %90 = math.exp %89 : vector<2x8x8xf32>
    %cst_42 = arith.constant dense<0.000000e+00> : vector<2x8xf32>
    %91 = vector.multi_reduction <add>, %90, %cst_42 [2] : vector<2x8x8xf32> to vector<2x8xf32>
    %92 = vector.shape_cast %91 : vector<2x8xf32> to vector<2x8x1xf32>
    %93 = tpu.reciprocal %92 {approx = true} : vector<2x8x1xf32> -> vector<2x8x1xf32>
    %94 = vector.broadcast %93 : vector<2x8x1xf32> to vector<2x8x8xf32>
    %95 = arith.mulf %90, %94 : vector<2x8x8xf32>
    %96 = arith.truncf %95 : vector<2x8x8xf32> to vector<2x8x8xbf16>
    %97 = vector.extract_strided_slice %44 {offsets = [0, 0, 16], sizes = [2, 8, 8], strides = [1, 1, 1]} : vector<2x8x32xbf16> to vector<2x8x8xbf16>
    "tpu.trace_start"() <{level = 10 : i32, message = "bts,bsd->btd"}> : () -> ()
    %cst_43 = arith.constant dense<0.000000e+00> : vector<2x8x8xf32>
    %98 = tpu.matmul %96, %97, %cst_43 {dimension_numbers = #tpu.dot_dimension_numbers<[2], [1], [1], [2], [0, 0, 0, 1, 1, 2], [0], [0]>} : vector<2x8x8xbf16>, vector<2x8x8xbf16>, vector<2x8x8xf32> -> vector<2x8x8xf32>
    "tpu.trace_stop"() : () -> ()
    %99 = vector.extract_strided_slice %40 {offsets = [0, 0, 24], sizes = [2, 8, 8], strides = [1, 1, 1]} : vector<2x8x32xbf16> to vector<2x8x8xbf16>
    %100 = vector.extract_strided_slice %42 {offsets = [0, 0, 24], sizes = [2, 8, 8], strides = [1, 1, 1]} : vector<2x8x32xbf16> to vector<2x8x8xbf16>
    "tpu.trace_start"() <{level = 10 : i32, message = "btd,bsd->bts"}> : () -> ()
    %cst_44 = arith.constant dense<0.000000e+00> : vector<2x8x8xf32>
    %101 = tpu.matmul %99, %100, %cst_44 {dimension_numbers = #tpu.dot_dimension_numbers<[2], [2], [1], [1], [0, 0, 0, 1, 1, 1], [0], [0]>} : vector<2x8x8xbf16>, vector<2x8x8xbf16>, vector<2x8x8xf32> -> vector<2x8x8xf32>
    "tpu.trace_stop"() : () -> ()
    %cst_45 = arith.constant 0.353553385 : f32
    %102 = vector.broadcast %cst_45 : f32 to vector<2x8x8xf32>
    %103 = arith.mulf %101, %102 : vector<2x8x8xf32>
    %cst_46 = arith.constant dense<0xFF800000> : vector<2x8xf32>
    %104 = vector.multi_reduction <maximumf>, %103, %cst_46 [2] : vector<2x8x8xf32> to vector<2x8xf32>
    %105 = vector.shape_cast %104 : vector<2x8xf32> to vector<2x8x1xf32>
    %106 = vector.broadcast %105 : vector<2x8x1xf32> to vector<2x8x8xf32>
    %107 = arith.subf %103, %106 : vector<2x8x8xf32>
    %108 = math.exp %107 : vector<2x8x8xf32>
    %cst_47 = arith.constant dense<0.000000e+00> : vector<2x8xf32>
    %109 = vector.multi_reduction <add>, %108, %cst_47 [2] : vector<2x8x8xf32> to vector<2x8xf32>
    %110 = vector.shape_cast %109 : vector<2x8xf32> to vector<2x8x1xf32>
    %111 = tpu.reciprocal %110 {approx = true} : vector<2x8x1xf32> -> vector<2x8x1xf32>
    %112 = vector.broadcast %111 : vector<2x8x1xf32> to vector<2x8x8xf32>
    %113 = arith.mulf %108, %112 : vector<2x8x8xf32>
    %114 = arith.truncf %113 : vector<2x8x8xf32> to vector<2x8x8xbf16>
    %115 = vector.extract_strided_slice %44 {offsets = [0, 0, 24], sizes = [2, 8, 8], strides = [1, 1, 1]} : vector<2x8x32xbf16> to vector<2x8x8xbf16>
    "tpu.trace_start"() <{level = 10 : i32, message = "bts,bsd->btd"}> : () -> ()
    %cst_48 = arith.constant dense<0.000000e+00> : vector<2x8x8xf32>
    %116 = tpu.matmul %114, %115, %cst_48 {dimension_numbers = #tpu.dot_dimension_numbers<[2], [1], [1], [2], [0, 0, 0, 1, 1, 2], [0], [0]>} : vector<2x8x8xbf16>, vector<2x8x8xbf16>, vector<2x8x8xf32> -> vector<2x8x8xf32>
    "tpu.trace_stop"() : () -> ()
    %117 = tpu.concatenate %62, %80, %98, %116 in 2 : vector<2x8x8xf32>, vector<2x8x8xf32>, vector<2x8x8xf32>, vector<2x8x8xf32> -> vector<2x8x32xf32>
    %118 = vector.shape_cast %117 : vector<2x8x32xf32> to vector<16x32xf32>
    %119 = arith.truncf %118 : vector<16x32xf32> to vector<16x32xbf16>
    %120 = arith.truncf %22 : vector<32x32xf32> to vector<32x32xbf16>
    %cst_49 = arith.constant dense<0.000000e+00> : vector<16x32xf32>
    %121 = tpu.matmul %119, %120, %cst_49 {dimension_numbers = #tpu.dot_dimension_numbers<[1], [0], [0], [1], [0, 0, 1, 1], [], []>} : vector<16x32xbf16>, vector<32x32xbf16>, vector<16x32xf32> -> vector<16x32xf32>
    %122 = vector.broadcast %23 : vector<1x32xf32> to vector<16x32xf32>
    %123 = arith.addf %121, %122 : vector<16x32xf32>
    %124 = arith.addf %1, %123 : vector<16x32xf32>
    %125 = vector.extract_strided_slice %10 {offsets = [9, 0], sizes = [1, 32], strides = [1, 1]} : vector<16x32xf32> to vector<1x32xf32>
    %126 = vector.extract_strided_slice %10 {offsets = [10, 0], sizes = [1, 32], strides = [1, 1]} : vector<16x32xf32> to vector<1x32xf32>
    %cst_50 = arith.constant dense<0.000000e+00> : vector<16xf32>
    %127 = vector.multi_reduction <add>, %124, %cst_50 [1] : vector<16x32xf32> to vector<16xf32>
    %128 = vector.shape_cast %127 : vector<16xf32> to vector<16x1xf32>
    %cst_51 = arith.constant 3.200000e+01 : f32
    %129 = vector.broadcast %cst_51 : f32 to vector<16x1xf32>
    %130 = arith.divf %128, %129 : vector<16x1xf32>
    %131 = vector.broadcast %130 : vector<16x1xf32> to vector<16x32xf32>
    %132 = arith.subf %124, %131 : vector<16x32xf32>
    %133 = arith.mulf %132, %132 : vector<16x32xf32>
    %cst_52 = arith.constant dense<0.000000e+00> : vector<16xf32>
    %134 = vector.multi_reduction <add>, %133, %cst_52 [1] : vector<16x32xf32> to vector<16xf32>
    %135 = vector.shape_cast %134 : vector<16xf32> to vector<16x1xf32>
    %cst_53 = arith.constant 3.200000e+01 : f32
    %136 = vector.broadcast %cst_53 : f32 to vector<16x1xf32>
    %137 = arith.divf %135, %136 : vector<16x1xf32>
    %138 = vector.broadcast %130 : vector<16x1xf32> to vector<16x32xf32>
    %139 = arith.subf %124, %138 : vector<16x32xf32>
    %cst_54 = arith.constant 9.99999974E-6 : f32
    %140 = vector.broadcast %cst_54 : f32 to vector<16x1xf32>
    %141 = arith.addf %137, %140 : vector<16x1xf32>
    %142 = math.rsqrt %141 : vector<16x1xf32>
    %143 = vector.broadcast %142 : vector<16x1xf32> to vector<16x32xf32>
    %144 = arith.mulf %139, %143 : vector<16x32xf32>
    %145 = vector.broadcast %125 : vector<1x32xf32> to vector<16x32xf32>
    %146 = arith.mulf %144, %145 : vector<16x32xf32>
    %147 = vector.broadcast %126 : vector<1x32xf32> to vector<16x32xf32>
    %148 = arith.addf %146, %147 : vector<16x32xf32>
    %149 = arith.addf %148, %3 : vector<16x32xf32>
    %c0_55 = arith.constant 0 : index
    %c4 = arith.constant 4 : index
    %c0_56 = arith.constant 0 : index
    %c0_57 = arith.constant 0 : index
    %150 = vector.load %arg4[%c0_55, %c4, %c0_56, %c0_57] : memref<2x8x32x32xf32, #tpu.memory_space<vmem>>, vector<1x1x32x32xf32>
    %151 = vector.shape_cast %150 : vector<1x1x32x32xf32> to vector<32x32xf32>
    %152 = vector.extract_strided_slice %10 {offsets = [4, 0], sizes = [1, 32], strides = [1, 1]} : vector<16x32xf32> to vector<1x32xf32>
    %c0_58 = arith.constant 0 : index
    %c5 = arith.constant 5 : index
    %c0_59 = arith.constant 0 : index
    %c0_60 = arith.constant 0 : index
    %153 = vector.load %arg4[%c0_58, %c5, %c0_59, %c0_60] : memref<2x8x32x32xf32, #tpu.memory_space<vmem>>, vector<1x1x32x32xf32>
    %154 = vector.shape_cast %153 : vector<1x1x32x32xf32> to vector<32x32xf32>
    %155 = vector.extract_strided_slice %10 {offsets = [5, 0], sizes = [1, 32], strides = [1, 1]} : vector<16x32xf32> to vector<1x32xf32>
    %c0_61 = arith.constant 0 : index
    %c6 = arith.constant 6 : index
    %c0_62 = arith.constant 0 : index
    %c0_63 = arith.constant 0 : index
    %156 = vector.load %arg4[%c0_61, %c6, %c0_62, %c0_63] : memref<2x8x32x32xf32, #tpu.memory_space<vmem>>, vector<1x1x32x32xf32>
    %157 = vector.shape_cast %156 : vector<1x1x32x32xf32> to vector<32x32xf32>
    %158 = vector.extract_strided_slice %10 {offsets = [6, 0], sizes = [1, 32], strides = [1, 1]} : vector<16x32xf32> to vector<1x32xf32>
    %c0_64 = arith.constant 0 : index
    %c7 = arith.constant 7 : index
    %c0_65 = arith.constant 0 : index
    %c0_66 = arith.constant 0 : index
    %159 = vector.load %arg4[%c0_64, %c7, %c0_65, %c0_66] : memref<2x8x32x32xf32, #tpu.memory_space<vmem>>, vector<1x1x32x32xf32>
    %160 = vector.shape_cast %159 : vector<1x1x32x32xf32> to vector<32x32xf32>
    %161 = vector.extract_strided_slice %10 {offsets = [7, 0], sizes = [1, 32], strides = [1, 1]} : vector<16x32xf32> to vector<1x32xf32>
    %162 = arith.truncf %149 : vector<16x32xf32> to vector<16x32xbf16>
    %163 = arith.truncf %151 : vector<32x32xf32> to vector<32x32xbf16>
    %cst_67 = arith.constant dense<0.000000e+00> : vector<16x32xf32>
    %164 = tpu.matmul %162, %163, %cst_67 {dimension_numbers = #tpu.dot_dimension_numbers<[1], [0], [0], [1], [0, 0, 1, 1], [], []>} : vector<16x32xbf16>, vector<32x32xbf16>, vector<16x32xf32> -> vector<16x32xf32>
    %165 = vector.broadcast %152 : vector<1x32xf32> to vector<16x32xf32>
    %166 = arith.addf %164, %165 : vector<16x32xf32>
    %167 = arith.truncf %8 : vector<32x32xf32> to vector<32x32xbf16>
    %168 = arith.truncf %154 : vector<32x32xf32> to vector<32x32xbf16>
    %cst_68 = arith.constant dense<0.000000e+00> : vector<32x32xf32>
    %169 = tpu.matmul %167, %168, %cst_68 {dimension_numbers = #tpu.dot_dimension_numbers<[1], [0], [0], [1], [0, 0, 1, 1], [], []>} : vector<32x32xbf16>, vector<32x32xbf16>, vector<32x32xf32> -> vector<32x32xf32>
    %170 = vector.broadcast %155 : vector<1x32xf32> to vector<32x32xf32>
    %171 = arith.addf %169, %170 : vector<32x32xf32>
    %172 = arith.truncf %5 : vector<32x32xf32> to vector<32x32xbf16>
    %173 = arith.truncf %157 : vector<32x32xf32> to vector<32x32xbf16>
    %cst_69 = arith.constant dense<0.000000e+00> : vector<32x32xf32>
    %174 = tpu.matmul %172, %173, %cst_69 {dimension_numbers = #tpu.dot_dimension_numbers<[1], [0], [0], [1], [0, 0, 1, 1], [], []>} : vector<32x32xbf16>, vector<32x32xbf16>, vector<32x32xf32> -> vector<32x32xf32>
    %175 = vector.broadcast %158 : vector<1x32xf32> to vector<32x32xf32>
    %176 = arith.addf %174, %175 : vector<32x32xf32>
    %177 = vector.shape_cast %166 : vector<16x32xf32> to vector<2x8x32xf32>
    %178 = arith.truncf %177 : vector<2x8x32xf32> to vector<2x8x32xbf16>
    %179 = vector.shape_cast %171 : vector<32x32xf32> to vector<2x16x32xf32>
    %180 = arith.truncf %179 : vector<2x16x32xf32> to vector<2x16x32xbf16>
    %181 = vector.shape_cast %176 : vector<32x32xf32> to vector<2x16x32xf32>
    %182 = arith.truncf %181 : vector<2x16x32xf32> to vector<2x16x32xbf16>
    %183 = vector.extract_strided_slice %178 {offsets = [0, 0, 0], sizes = [2, 8, 8], strides = [1, 1, 1]} : vector<2x8x32xbf16> to vector<2x8x8xbf16>
    %184 = vector.extract_strided_slice %180 {offsets = [0, 0, 0], sizes = [2, 16, 8], strides = [1, 1, 1]} : vector<2x16x32xbf16> to vector<2x16x8xbf16>
    "tpu.trace_start"() <{level = 10 : i32, message = "btd,bsd->bts"}> : () -> ()
    %cst_70 = arith.constant dense<0.000000e+00> : vector<2x8x16xf32>
    %185 = tpu.matmul %183, %184, %cst_70 {dimension_numbers = #tpu.dot_dimension_numbers<[2], [2], [1], [1], [0, 0, 0, 1, 1, 1], [0], [0]>} : vector<2x8x8xbf16>, vector<2x16x8xbf16>, vector<2x8x16xf32> -> vector<2x8x16xf32>
    "tpu.trace_stop"() : () -> ()
    %cst_71 = arith.constant 0.353553385 : f32
    %186 = vector.broadcast %cst_71 : f32 to vector<2x8x16xf32>
    %187 = arith.mulf %185, %186 : vector<2x8x16xf32>
    %cst_72 = arith.constant dense<0xFF800000> : vector<2x8xf32>
    %188 = vector.multi_reduction <maximumf>, %187, %cst_72 [2] : vector<2x8x16xf32> to vector<2x8xf32>
    %189 = vector.shape_cast %188 : vector<2x8xf32> to vector<2x8x1xf32>
    %190 = vector.broadcast %189 : vector<2x8x1xf32> to vector<2x8x16xf32>
    %191 = arith.subf %187, %190 : vector<2x8x16xf32>
    %192 = math.exp %191 : vector<2x8x16xf32>
    %cst_73 = arith.constant dense<0.000000e+00> : vector<2x8xf32>
    %193 = vector.multi_reduction <add>, %192, %cst_73 [2] : vector<2x8x16xf32> to vector<2x8xf32>
    %194 = vector.shape_cast %193 : vector<2x8xf32> to vector<2x8x1xf32>
    %195 = tpu.reciprocal %194 {approx = true} : vector<2x8x1xf32> -> vector<2x8x1xf32>
    %196 = vector.broadcast %195 : vector<2x8x1xf32> to vector<2x8x16xf32>
    %197 = arith.mulf %192, %196 : vector<2x8x16xf32>
    %198 = arith.truncf %197 : vector<2x8x16xf32> to vector<2x8x16xbf16>
    %199 = vector.extract_strided_slice %182 {offsets = [0, 0, 0], sizes = [2, 16, 8], strides = [1, 1, 1]} : vector<2x16x32xbf16> to vector<2x16x8xbf16>
    "tpu.trace_start"() <{level = 10 : i32, message = "bts,bsd->btd"}> : () -> ()
    %cst_74 = arith.constant dense<0.000000e+00> : vector<2x8x8xf32>
    %200 = tpu.matmul %198, %199, %cst_74 {dimension_numbers = #tpu.dot_dimension_numbers<[2], [1], [1], [2], [0, 0, 0, 1, 1, 2], [0], [0]>} : vector<2x8x16xbf16>, vector<2x16x8xbf16>, vector<2x8x8xf32> -> vector<2x8x8xf32>
    "tpu.trace_stop"() : () -> ()
    %201 = vector.extract_strided_slice %178 {offsets = [0, 0, 8], sizes = [2, 8, 8], strides = [1, 1, 1]} : vector<2x8x32xbf16> to vector<2x8x8xbf16>
    %202 = vector.extract_strided_slice %180 {offsets = [0, 0, 8], sizes = [2, 16, 8], strides = [1, 1, 1]} : vector<2x16x32xbf16> to vector<2x16x8xbf16>
    "tpu.trace_start"() <{level = 10 : i32, message = "btd,bsd->bts"}> : () -> ()
    %cst_75 = arith.constant dense<0.000000e+00> : vector<2x8x16xf32>
    %203 = tpu.matmul %201, %202, %cst_75 {dimension_numbers = #tpu.dot_dimension_numbers<[2], [2], [1], [1], [0, 0, 0, 1, 1, 1], [0], [0]>} : vector<2x8x8xbf16>, vector<2x16x8xbf16>, vector<2x8x16xf32> -> vector<2x8x16xf32>
    "tpu.trace_stop"() : () -> ()
    %cst_76 = arith.constant 0.353553385 : f32
    %204 = vector.broadcast %cst_76 : f32 to vector<2x8x16xf32>
    %205 = arith.mulf %203, %204 : vector<2x8x16xf32>
    %cst_77 = arith.constant dense<0xFF800000> : vector<2x8xf32>
    %206 = vector.multi_reduction <maximumf>, %205, %cst_77 [2] : vector<2x8x16xf32> to vector<2x8xf32>
    %207 = vector.shape_cast %206 : vector<2x8xf32> to vector<2x8x1xf32>
    %208 = vector.broadcast %207 : vector<2x8x1xf32> to vector<2x8x16xf32>
    %209 = arith.subf %205, %208 : vector<2x8x16xf32>
    %210 = math.exp %209 : vector<2x8x16xf32>
    %cst_78 = arith.constant dense<0.000000e+00> : vector<2x8xf32>
    %211 = vector.multi_reduction <add>, %210, %cst_78 [2] : vector<2x8x16xf32> to vector<2x8xf32>
    %212 = vector.shape_cast %211 : vector<2x8xf32> to vector<2x8x1xf32>
    %213 = tpu.reciprocal %212 {approx = true} : vector<2x8x1xf32> -> vector<2x8x1xf32>
    %214 = vector.broadcast %213 : vector<2x8x1xf32> to vector<2x8x16xf32>
    %215 = arith.mulf %210, %214 : vector<2x8x16xf32>
    %216 = arith.truncf %215 : vector<2x8x16xf32> to vector<2x8x16xbf16>
    %217 = vector.extract_strided_slice %182 {offsets = [0, 0, 8], sizes = [2, 16, 8], strides = [1, 1, 1]} : vector<2x16x32xbf16> to vector<2x16x8xbf16>
    "tpu.trace_start"() <{level = 10 : i32, message = "bts,bsd->btd"}> : () -> ()
    %cst_79 = arith.constant dense<0.000000e+00> : vector<2x8x8xf32>
    %218 = tpu.matmul %216, %217, %cst_79 {dimension_numbers = #tpu.dot_dimension_numbers<[2], [1], [1], [2], [0, 0, 0, 1, 1, 2], [0], [0]>} : vector<2x8x16xbf16>, vector<2x16x8xbf16>, vector<2x8x8xf32> -> vector<2x8x8xf32>
    "tpu.trace_stop"() : () -> ()
    %219 = vector.extract_strided_slice %178 {offsets = [0, 0, 16], sizes = [2, 8, 8], strides = [1, 1, 1]} : vector<2x8x32xbf16> to vector<2x8x8xbf16>
    %220 = vector.extract_strided_slice %180 {offsets = [0, 0, 16], sizes = [2, 16, 8], strides = [1, 1, 1]} : vector<2x16x32xbf16> to vector<2x16x8xbf16>
    "tpu.trace_start"() <{level = 10 : i32, message = "btd,bsd->bts"}> : () -> ()
    %cst_80 = arith.constant dense<0.000000e+00> : vector<2x8x16xf32>
    %221 = tpu.matmul %219, %220, %cst_80 {dimension_numbers = #tpu.dot_dimension_numbers<[2], [2], [1], [1], [0, 0, 0, 1, 1, 1], [0], [0]>} : vector<2x8x8xbf16>, vector<2x16x8xbf16>, vector<2x8x16xf32> -> vector<2x8x16xf32>
    "tpu.trace_stop"() : () -> ()
    %cst_81 = arith.constant 0.353553385 : f32
    %222 = vector.broadcast %cst_81 : f32 to vector<2x8x16xf32>
    %223 = arith.mulf %221, %222 : vector<2x8x16xf32>
    %cst_82 = arith.constant dense<0xFF800000> : vector<2x8xf32>
    %224 = vector.multi_reduction <maximumf>, %223, %cst_82 [2] : vector<2x8x16xf32> to vector<2x8xf32>
    %225 = vector.shape_cast %224 : vector<2x8xf32> to vector<2x8x1xf32>
    %226 = vector.broadcast %225 : vector<2x8x1xf32> to vector<2x8x16xf32>
    %227 = arith.subf %223, %226 : vector<2x8x16xf32>
    %228 = math.exp %227 : vector<2x8x16xf32>
    %cst_83 = arith.constant dense<0.000000e+00> : vector<2x8xf32>
    %229 = vector.multi_reduction <add>, %228, %cst_83 [2] : vector<2x8x16xf32> to vector<2x8xf32>
    %230 = vector.shape_cast %229 : vector<2x8xf32> to vector<2x8x1xf32>
    %231 = tpu.reciprocal %230 {approx = true} : vector<2x8x1xf32> -> vector<2x8x1xf32>
    %232 = vector.broadcast %231 : vector<2x8x1xf32> to vector<2x8x16xf32>
    %233 = arith.mulf %228, %232 : vector<2x8x16xf32>
    %234 = arith.truncf %233 : vector<2x8x16xf32> to vector<2x8x16xbf16>
    %235 = vector.extract_strided_slice %182 {offsets = [0, 0, 16], sizes = [2, 16, 8], strides = [1, 1, 1]} : vector<2x16x32xbf16> to vector<2x16x8xbf16>
    "tpu.trace_start"() <{level = 10 : i32, message = "bts,bsd->btd"}> : () -> ()
    %cst_84 = arith.constant dense<0.000000e+00> : vector<2x8x8xf32>
    %236 = tpu.matmul %234, %235, %cst_84 {dimension_numbers = #tpu.dot_dimension_numbers<[2], [1], [1], [2], [0, 0, 0, 1, 1, 2], [0], [0]>} : vector<2x8x16xbf16>, vector<2x16x8xbf16>, vector<2x8x8xf32> -> vector<2x8x8xf32>
    "tpu.trace_stop"() : () -> ()
    %237 = vector.extract_strided_slice %178 {offsets = [0, 0, 24], sizes = [2, 8, 8], strides = [1, 1, 1]} : vector<2x8x32xbf16> to vector<2x8x8xbf16>
    %238 = vector.extract_strided_slice %180 {offsets = [0, 0, 24], sizes = [2, 16, 8], strides = [1, 1, 1]} : vector<2x16x32xbf16> to vector<2x16x8xbf16>
    "tpu.trace_start"() <{level = 10 : i32, message = "btd,bsd->bts"}> : () -> ()
    %cst_85 = arith.constant dense<0.000000e+00> : vector<2x8x16xf32>
    %239 = tpu.matmul %237, %238, %cst_85 {dimension_numbers = #tpu.dot_dimension_numbers<[2], [2], [1], [1], [0, 0, 0, 1, 1, 1], [0], [0]>} : vector<2x8x8xbf16>, vector<2x16x8xbf16>, vector<2x8x16xf32> -> vector<2x8x16xf32>
    "tpu.trace_stop"() : () -> ()
    %cst_86 = arith.constant 0.353553385 : f32
    %240 = vector.broadcast %cst_86 : f32 to vector<2x8x16xf32>
    %241 = arith.mulf %239, %240 : vector<2x8x16xf32>
    %cst_87 = arith.constant dense<0xFF800000> : vector<2x8xf32>
    %242 = vector.multi_reduction <maximumf>, %241, %cst_87 [2] : vector<2x8x16xf32> to vector<2x8xf32>
    %243 = vector.shape_cast %242 : vector<2x8xf32> to vector<2x8x1xf32>
    %244 = vector.broadcast %243 : vector<2x8x1xf32> to vector<2x8x16xf32>
    %245 = arith.subf %241, %244 : vector<2x8x16xf32>
    %246 = math.exp %245 : vector<2x8x16xf32>
    %cst_88 = arith.constant dense<0.000000e+00> : vector<2x8xf32>
    %247 = vector.multi_reduction <add>, %246, %cst_88 [2] : vector<2x8x16xf32> to vector<2x8xf32>
    %248 = vector.shape_cast %247 : vector<2x8xf32> to vector<2x8x1xf32>
    %249 = tpu.reciprocal %248 {approx = true} : vector<2x8x1xf32> -> vector<2x8x1xf32>
    %250 = vector.broadcast %249 : vector<2x8x1xf32> to vector<2x8x16xf32>
    %251 = arith.mulf %246, %250 : vector<2x8x16xf32>
    %252 = arith.truncf %251 : vector<2x8x16xf32> to vector<2x8x16xbf16>
    %253 = vector.extract_strided_slice %182 {offsets = [0, 0, 24], sizes = [2, 16, 8], strides = [1, 1, 1]} : vector<2x16x32xbf16> to vector<2x16x8xbf16>
    "tpu.trace_start"() <{level = 10 : i32, message = "bts,bsd->btd"}> : () -> ()
    %cst_89 = arith.constant dense<0.000000e+00> : vector<2x8x8xf32>
    %254 = tpu.matmul %252, %253, %cst_89 {dimension_numbers = #tpu.dot_dimension_numbers<[2], [1], [1], [2], [0, 0, 0, 1, 1, 2], [0], [0]>} : vector<2x8x16xbf16>, vector<2x16x8xbf16>, vector<2x8x8xf32> -> vector<2x8x8xf32>
    "tpu.trace_stop"() : () -> ()
    %255 = tpu.concatenate %200, %218, %236, %254 in 2 : vector<2x8x8xf32>, vector<2x8x8xf32>, vector<2x8x8xf32>, vector<2x8x8xf32> -> vector<2x8x32xf32>
    %256 = vector.shape_cast %255 : vector<2x8x32xf32> to vector<16x32xf32>
    %257 = arith.truncf %256 : vector<16x32xf32> to vector<16x32xbf16>
    %258 = arith.truncf %160 : vector<32x32xf32> to vector<32x32xbf16>
    %cst_90 = arith.constant dense<0.000000e+00> : vector<16x32xf32>
    %259 = tpu.matmul %257, %258, %cst_90 {dimension_numbers = #tpu.dot_dimension_numbers<[1], [0], [0], [1], [0, 0, 1, 1], [], []>} : vector<16x32xbf16>, vector<32x32xbf16>, vector<16x32xf32> -> vector<16x32xf32>
    %260 = vector.broadcast %161 : vector<1x32xf32> to vector<16x32xf32>
    %261 = arith.addf %259, %260 : vector<16x32xf32>
    %262 = arith.addf %148, %261 : vector<16x32xf32>
    %263 = vector.extract_strided_slice %10 {offsets = [11, 0], sizes = [1, 32], strides = [1, 1]} : vector<16x32xf32> to vector<1x32xf32>
    %264 = vector.extract_strided_slice %10 {offsets = [12, 0], sizes = [1, 32], strides = [1, 1]} : vector<16x32xf32> to vector<1x32xf32>
    %cst_91 = arith.constant dense<0.000000e+00> : vector<16xf32>
    %265 = vector.multi_reduction <add>, %262, %cst_91 [1] : vector<16x32xf32> to vector<16xf32>
    %266 = vector.shape_cast %265 : vector<16xf32> to vector<16x1xf32>
    %cst_92 = arith.constant 3.200000e+01 : f32
    %267 = vector.broadcast %cst_92 : f32 to vector<16x1xf32>
    %268 = arith.divf %266, %267 : vector<16x1xf32>
    %269 = vector.broadcast %268 : vector<16x1xf32> to vector<16x32xf32>
    %270 = arith.subf %262, %269 : vector<16x32xf32>
    %271 = arith.mulf %270, %270 : vector<16x32xf32>
    %cst_93 = arith.constant dense<0.000000e+00> : vector<16xf32>
    %272 = vector.multi_reduction <add>, %271, %cst_93 [1] : vector<16x32xf32> to vector<16xf32>
    %273 = vector.shape_cast %272 : vector<16xf32> to vector<16x1xf32>
    %cst_94 = arith.constant 3.200000e+01 : f32
    %274 = vector.broadcast %cst_94 : f32 to vector<16x1xf32>
    %275 = arith.divf %273, %274 : vector<16x1xf32>
    %276 = vector.broadcast %268 : vector<16x1xf32> to vector<16x32xf32>
    %277 = arith.subf %262, %276 : vector<16x32xf32>
    %cst_95 = arith.constant 9.99999974E-6 : f32
    %278 = vector.broadcast %cst_95 : f32 to vector<16x1xf32>
    %279 = arith.addf %275, %278 : vector<16x1xf32>
    %280 = math.rsqrt %279 : vector<16x1xf32>
    %281 = vector.broadcast %280 : vector<16x1xf32> to vector<16x32xf32>
    %282 = arith.mulf %277, %281 : vector<16x32xf32>
    %283 = vector.broadcast %263 : vector<1x32xf32> to vector<16x32xf32>
    %284 = arith.mulf %282, %283 : vector<16x32xf32>
    %285 = vector.broadcast %264 : vector<1x32xf32> to vector<16x32xf32>
    %286 = arith.addf %284, %285 : vector<16x32xf32>
    %c0_96 = arith.constant 0 : index
    %c0_97 = arith.constant 0 : index
    %c0_98 = arith.constant 0 : index
    %287 = vector.load %arg5[%c0_96, %c0_97, %c0_98] : memref<2x32x64xf32, #tpu.memory_space<vmem>>, vector<1x32x64xf32>
    %288 = vector.shape_cast %287 : vector<1x32x64xf32> to vector<32x64xf32>
    %289 = arith.truncf %286 : vector<16x32xf32> to vector<16x32xbf16>
    %290 = arith.truncf %288 : vector<32x64xf32> to vector<32x64xbf16>
    %cst_99 = arith.constant dense<0.000000e+00> : vector<16x64xf32>
    %291 = tpu.matmul %289, %290, %cst_99 {dimension_numbers = #tpu.dot_dimension_numbers<[1], [0], [0], [1], [0, 0, 1, 1], [], []>} : vector<16x32xbf16>, vector<32x64xbf16>, vector<16x64xf32> -> vector<16x64xf32>
    %c0_100 = arith.constant 0 : index
    %c0_101 = arith.constant 0 : index
    %c0_102 = arith.constant 0 : index
    %292 = vector.load %arg8[%c0_100, %c0_101, %c0_102] : memref<2x1x64xf32, #tpu.memory_space<vmem>>, vector<1x1x64xf32>
    %293 = vector.shape_cast %292 : vector<1x1x64xf32> to vector<1x64xf32>
    %294 = vector.broadcast %293 : vector<1x64xf32> to vector<16x64xf32>
    %295 = arith.addf %291, %294 : vector<16x64xf32>
    %cst_103 = arith.constant 0.000000e+00 : f32
    %296 = vector.broadcast %cst_103 : f32 to vector<16x64xf32>
    %297 = arith.maximumf %295, %296 : vector<16x64xf32>
    %c0_104 = arith.constant 0 : index
    %c0_105 = arith.constant 0 : index
    %c0_106 = arith.constant 0 : index
    %298 = vector.load %arg6[%c0_104, %c0_105, %c0_106] : memref<2x64x32xf32, #tpu.memory_space<vmem>>, vector<1x64x32xf32>
    %299 = vector.shape_cast %298 : vector<1x64x32xf32> to vector<64x32xf32>
    %300 = arith.truncf %297 : vector<16x64xf32> to vector<16x64xbf16>
    %301 = arith.truncf %299 : vector<64x32xf32> to vector<64x32xbf16>
    %cst_107 = arith.constant dense<0.000000e+00> : vector<16x32xf32>
    %302 = tpu.matmul %300, %301, %cst_107 {dimension_numbers = #tpu.dot_dimension_numbers<[1], [0], [0], [1], [0, 0, 1, 1], [], []>} : vector<16x64xbf16>, vector<64x32xbf16>, vector<16x32xf32> -> vector<16x32xf32>
    %303 = vector.extract_strided_slice %10 {offsets = [8, 0], sizes = [1, 32], strides = [1, 1]} : vector<16x32xf32> to vector<1x32xf32>
    %304 = vector.broadcast %303 : vector<1x32xf32> to vector<16x32xf32>
    %305 = arith.addf %302, %304 : vector<16x32xf32>
    %306 = arith.addf %286, %305 : vector<16x32xf32>
    %307 = vector.extract_strided_slice %10 {offsets = [13, 0], sizes = [1, 32], strides = [1, 1]} : vector<16x32xf32> to vector<1x32xf32>
    %308 = vector.extract_strided_slice %10 {offsets = [14, 0], sizes = [1, 32], strides = [1, 1]} : vector<16x32xf32> to vector<1x32xf32>
    %cst_108 = arith.constant dense<0.000000e+00> : vector<16xf32>
    %309 = vector.multi_reduction <add>, %306, %cst_108 [1] : vector<16x32xf32> to vector<16xf32>
    %310 = vector.shape_cast %309 : vector<16xf32> to vector<16x1xf32>
    %cst_109 = arith.constant 3.200000e+01 : f32
    %311 = vector.broadcast %cst_109 : f32 to vector<16x1xf32>
    %312 = arith.divf %310, %311 : vector<16x1xf32>
    %313 = vector.broadcast %312 : vector<16x1xf32> to vector<16x32xf32>
    %314 = arith.subf %306, %313 : vector<16x32xf32>
    %315 = arith.mulf %314, %314 : vector<16x32xf32>
    %cst_110 = arith.constant dense<0.000000e+00> : vector<16xf32>
    %316 = vector.multi_reduction <add>, %315, %cst_110 [1] : vector<16x32xf32> to vector<16xf32>
    %317 = vector.shape_cast %316 : vector<16xf32> to vector<16x1xf32>
    %cst_111 = arith.constant 3.200000e+01 : f32
    %318 = vector.broadcast %cst_111 : f32 to vector<16x1xf32>
    %319 = arith.divf %317, %318 : vector<16x1xf32>
    %320 = vector.broadcast %312 : vector<16x1xf32> to vector<16x32xf32>
    %321 = arith.subf %306, %320 : vector<16x32xf32>
    %cst_112 = arith.constant 9.99999974E-6 : f32
    %322 = vector.broadcast %cst_112 : f32 to vector<16x1xf32>
    %323 = arith.addf %319, %322 : vector<16x1xf32>
    %324 = math.rsqrt %323 : vector<16x1xf32>
    %325 = vector.broadcast %324 : vector<16x1xf32> to vector<16x32xf32>
    %326 = arith.mulf %321, %325 : vector<16x32xf32>
    %327 = vector.broadcast %307 : vector<1x32xf32> to vector<16x32xf32>
    %328 = arith.mulf %326, %327 : vector<16x32xf32>
    %329 = vector.broadcast %308 : vector<1x32xf32> to vector<16x32xf32>
    %330 = arith.addf %328, %329 : vector<16x32xf32>
    %c1_113 = arith.constant 1 : index
    %c0_114 = arith.constant 0 : index
    %c0_115 = arith.constant 0 : index
    %331 = vector.load %arg7[%c1_113, %c0_114, %c0_115] : memref<2x16x32xf32, #tpu.memory_space<vmem>>, vector<1x16x32xf32>
    %332 = vector.shape_cast %331 : vector<1x16x32xf32> to vector<16x32xf32>
    %333 = arith.addf %330, %3 : vector<16x32xf32>
    %c1_116 = arith.constant 1 : index
    %c0_117 = arith.constant 0 : index
    %c0_118 = arith.constant 0 : index
    %c0_119 = arith.constant 0 : index
    %334 = vector.load %arg4[%c1_116, %c0_117, %c0_118, %c0_119] : memref<2x8x32x32xf32, #tpu.memory_space<vmem>>, vector<1x1x32x32xf32>
    %335 = vector.shape_cast %334 : vector<1x1x32x32xf32> to vector<32x32xf32>
    %336 = vector.extract_strided_slice %332 {offsets = [0, 0], sizes = [1, 32], strides = [1, 1]} : vector<16x32xf32> to vector<1x32xf32>
    %c1_120 = arith.constant 1 : index
    %c1_121 = arith.constant 1 : index
    %c0_122 = arith.constant 0 : index
    %c0_123 = arith.constant 0 : index
    %337 = vector.load %arg4[%c1_120, %c1_121, %c0_122, %c0_123] : memref<2x8x32x32xf32, #tpu.memory_space<vmem>>, vector<1x1x32x32xf32>
    %338 = vector.shape_cast %337 : vector<1x1x32x32xf32> to vector<32x32xf32>
    %339 = vector.extract_strided_slice %332 {offsets = [1, 0], sizes = [1, 32], strides = [1, 1]} : vector<16x32xf32> to vector<1x32xf32>
    %c1_124 = arith.constant 1 : index
    %c2_125 = arith.constant 2 : index
    %c0_126 = arith.constant 0 : index
    %c0_127 = arith.constant 0 : index
    %340 = vector.load %arg4[%c1_124, %c2_125, %c0_126, %c0_127] : memref<2x8x32x32xf32, #tpu.memory_space<vmem>>, vector<1x1x32x32xf32>
    %341 = vector.shape_cast %340 : vector<1x1x32x32xf32> to vector<32x32xf32>
    %342 = vector.extract_strided_slice %332 {offsets = [2, 0], sizes = [1, 32], strides = [1, 1]} : vector<16x32xf32> to vector<1x32xf32>
    %c1_128 = arith.constant 1 : index
    %c3_129 = arith.constant 3 : index
    %c0_130 = arith.constant 0 : index
    %c0_131 = arith.constant 0 : index
    %343 = vector.load %arg4[%c1_128, %c3_129, %c0_130, %c0_131] : memref<2x8x32x32xf32, #tpu.memory_space<vmem>>, vector<1x1x32x32xf32>
    %344 = vector.shape_cast %343 : vector<1x1x32x32xf32> to vector<32x32xf32>
    %345 = vector.extract_strided_slice %332 {offsets = [3, 0], sizes = [1, 32], strides = [1, 1]} : vector<16x32xf32> to vector<1x32xf32>
    %346 = arith.truncf %333 : vector<16x32xf32> to vector<16x32xbf16>
    %347 = arith.truncf %335 : vector<32x32xf32> to vector<32x32xbf16>
    %cst_132 = arith.constant dense<0.000000e+00> : vector<16x32xf32>
    %348 = tpu.matmul %346, %347, %cst_132 {dimension_numbers = #tpu.dot_dimension_numbers<[1], [0], [0], [1], [0, 0, 1, 1], [], []>} : vector<16x32xbf16>, vector<32x32xbf16>, vector<16x32xf32> -> vector<16x32xf32>
    %349 = vector.broadcast %336 : vector<1x32xf32> to vector<16x32xf32>
    %350 = arith.addf %348, %349 : vector<16x32xf32>
    %351 = arith.truncf %333 : vector<16x32xf32> to vector<16x32xbf16>
    %352 = arith.truncf %338 : vector<32x32xf32> to vector<32x32xbf16>
    %cst_133 = arith.constant dense<0.000000e+00> : vector<16x32xf32>
    %353 = tpu.matmul %351, %352, %cst_133 {dimension_numbers = #tpu.dot_dimension_numbers<[1], [0], [0], [1], [0, 0, 1, 1], [], []>} : vector<16x32xbf16>, vector<32x32xbf16>, vector<16x32xf32> -> vector<16x32xf32>
    %354 = vector.broadcast %339 : vector<1x32xf32> to vector<16x32xf32>
    %355 = arith.addf %353, %354 : vector<16x32xf32>
    %356 = arith.truncf %330 : vector<16x32xf32> to vector<16x32xbf16>
    %357 = arith.truncf %341 : vector<32x32xf32> to vector<32x32xbf16>
    %cst_134 = arith.constant dense<0.000000e+00> : vector<16x32xf32>
    %358 = tpu.matmul %356, %357, %cst_134 {dimension_numbers = #tpu.dot_dimension_numbers<[1], [0], [0], [1], [0, 0, 1, 1], [], []>} : vector<16x32xbf16>, vector<32x32xbf16>, vector<16x32xf32> -> vector<16x32xf32>
    %359 = vector.broadcast %342 : vector<1x32xf32> to vector<16x32xf32>
    %360 = arith.addf %358, %359 : vector<16x32xf32>
    %361 = vector.shape_cast %350 : vector<16x32xf32> to vector<2x8x32xf32>
    %362 = arith.truncf %361 : vector<2x8x32xf32> to vector<2x8x32xbf16>
    %363 = vector.shape_cast %355 : vector<16x32xf32> to vector<2x8x32xf32>
    %364 = arith.truncf %363 : vector<2x8x32xf32> to vector<2x8x32xbf16>
    %365 = vector.shape_cast %360 : vector<16x32xf32> to vector<2x8x32xf32>
    %366 = arith.truncf %365 : vector<2x8x32xf32> to vector<2x8x32xbf16>
    %367 = vector.extract_strided_slice %362 {offsets = [0, 0, 0], sizes = [2, 8, 8], strides = [1, 1, 1]} : vector<2x8x32xbf16> to vector<2x8x8xbf16>
    %368 = vector.extract_strided_slice %364 {offsets = [0, 0, 0], sizes = [2, 8, 8], strides = [1, 1, 1]} : vector<2x8x32xbf16> to vector<2x8x8xbf16>
    "tpu.trace_start"() <{level = 10 : i32, message = "btd,bsd->bts"}> : () -> ()
    %cst_135 = arith.constant dense<0.000000e+00> : vector<2x8x8xf32>
    %369 = tpu.matmul %367, %368, %cst_135 {dimension_numbers = #tpu.dot_dimension_numbers<[2], [2], [1], [1], [0, 0, 0, 1, 1, 1], [0], [0]>} : vector<2x8x8xbf16>, vector<2x8x8xbf16>, vector<2x8x8xf32> -> vector<2x8x8xf32>
    "tpu.trace_stop"() : () -> ()
    %cst_136 = arith.constant 0.353553385 : f32
    %370 = vector.broadcast %cst_136 : f32 to vector<2x8x8xf32>
    %371 = arith.mulf %369, %370 : vector<2x8x8xf32>
    %cst_137 = arith.constant dense<0xFF800000> : vector<2x8xf32>
    %372 = vector.multi_reduction <maximumf>, %371, %cst_137 [2] : vector<2x8x8xf32> to vector<2x8xf32>
    %373 = vector.shape_cast %372 : vector<2x8xf32> to vector<2x8x1xf32>
    %374 = vector.broadcast %373 : vector<2x8x1xf32> to vector<2x8x8xf32>
    %375 = arith.subf %371, %374 : vector<2x8x8xf32>
    %376 = math.exp %375 : vector<2x8x8xf32>
    %cst_138 = arith.constant dense<0.000000e+00> : vector<2x8xf32>
    %377 = vector.multi_reduction <add>, %376, %cst_138 [2] : vector<2x8x8xf32> to vector<2x8xf32>
    %378 = vector.shape_cast %377 : vector<2x8xf32> to vector<2x8x1xf32>
    %379 = tpu.reciprocal %378 {approx = true} : vector<2x8x1xf32> -> vector<2x8x1xf32>
    %380 = vector.broadcast %379 : vector<2x8x1xf32> to vector<2x8x8xf32>
    %381 = arith.mulf %376, %380 : vector<2x8x8xf32>
    %382 = arith.truncf %381 : vector<2x8x8xf32> to vector<2x8x8xbf16>
    %383 = vector.extract_strided_slice %366 {offsets = [0, 0, 0], sizes = [2, 8, 8], strides = [1, 1, 1]} : vector<2x8x32xbf16> to vector<2x8x8xbf16>
    "tpu.trace_start"() <{level = 10 : i32, message = "bts,bsd->btd"}> : () -> ()
    %cst_139 = arith.constant dense<0.000000e+00> : vector<2x8x8xf32>
    %384 = tpu.matmul %382, %383, %cst_139 {dimension_numbers = #tpu.dot_dimension_numbers<[2], [1], [1], [2], [0, 0, 0, 1, 1, 2], [0], [0]>} : vector<2x8x8xbf16>, vector<2x8x8xbf16>, vector<2x8x8xf32> -> vector<2x8x8xf32>
    "tpu.trace_stop"() : () -> ()
    %385 = vector.extract_strided_slice %362 {offsets = [0, 0, 8], sizes = [2, 8, 8], strides = [1, 1, 1]} : vector<2x8x32xbf16> to vector<2x8x8xbf16>
    %386 = vector.extract_strided_slice %364 {offsets = [0, 0, 8], sizes = [2, 8, 8], strides = [1, 1, 1]} : vector<2x8x32xbf16> to vector<2x8x8xbf16>
    "tpu.trace_start"() <{level = 10 : i32, message = "btd,bsd->bts"}> : () -> ()
    %cst_140 = arith.constant dense<0.000000e+00> : vector<2x8x8xf32>
    %387 = tpu.matmul %385, %386, %cst_140 {dimension_numbers = #tpu.dot_dimension_numbers<[2], [2], [1], [1], [0, 0, 0, 1, 1, 1], [0], [0]>} : vector<2x8x8xbf16>, vector<2x8x8xbf16>, vector<2x8x8xf32> -> vector<2x8x8xf32>
    "tpu.trace_stop"() : () -> ()
    %cst_141 = arith.constant 0.353553385 : f32
    %388 = vector.broadcast %cst_141 : f32 to vector<2x8x8xf32>
    %389 = arith.mulf %387, %388 : vector<2x8x8xf32>
    %cst_142 = arith.constant dense<0xFF800000> : vector<2x8xf32>
    %390 = vector.multi_reduction <maximumf>, %389, %cst_142 [2] : vector<2x8x8xf32> to vector<2x8xf32>
    %391 = vector.shape_cast %390 : vector<2x8xf32> to vector<2x8x1xf32>
    %392 = vector.broadcast %391 : vector<2x8x1xf32> to vector<2x8x8xf32>
    %393 = arith.subf %389, %392 : vector<2x8x8xf32>
    %394 = math.exp %393 : vector<2x8x8xf32>
    %cst_143 = arith.constant dense<0.000000e+00> : vector<2x8xf32>
    %395 = vector.multi_reduction <add>, %394, %cst_143 [2] : vector<2x8x8xf32> to vector<2x8xf32>
    %396 = vector.shape_cast %395 : vector<2x8xf32> to vector<2x8x1xf32>
    %397 = tpu.reciprocal %396 {approx = true} : vector<2x8x1xf32> -> vector<2x8x1xf32>
    %398 = vector.broadcast %397 : vector<2x8x1xf32> to vector<2x8x8xf32>
    %399 = arith.mulf %394, %398 : vector<2x8x8xf32>
    %400 = arith.truncf %399 : vector<2x8x8xf32> to vector<2x8x8xbf16>
    %401 = vector.extract_strided_slice %366 {offsets = [0, 0, 8], sizes = [2, 8, 8], strides = [1, 1, 1]} : vector<2x8x32xbf16> to vector<2x8x8xbf16>
    "tpu.trace_start"() <{level = 10 : i32, message = "bts,bsd->btd"}> : () -> ()
    %cst_144 = arith.constant dense<0.000000e+00> : vector<2x8x8xf32>
    %402 = tpu.matmul %400, %401, %cst_144 {dimension_numbers = #tpu.dot_dimension_numbers<[2], [1], [1], [2], [0, 0, 0, 1, 1, 2], [0], [0]>} : vector<2x8x8xbf16>, vector<2x8x8xbf16>, vector<2x8x8xf32> -> vector<2x8x8xf32>
    "tpu.trace_stop"() : () -> ()
    %403 = vector.extract_strided_slice %362 {offsets = [0, 0, 16], sizes = [2, 8, 8], strides = [1, 1, 1]} : vector<2x8x32xbf16> to vector<2x8x8xbf16>
    %404 = vector.extract_strided_slice %364 {offsets = [0, 0, 16], sizes = [2, 8, 8], strides = [1, 1, 1]} : vector<2x8x32xbf16> to vector<2x8x8xbf16>
    "tpu.trace_start"() <{level = 10 : i32, message = "btd,bsd->bts"}> : () -> ()
    %cst_145 = arith.constant dense<0.000000e+00> : vector<2x8x8xf32>
    %405 = tpu.matmul %403, %404, %cst_145 {dimension_numbers = #tpu.dot_dimension_numbers<[2], [2], [1], [1], [0, 0, 0, 1, 1, 1], [0], [0]>} : vector<2x8x8xbf16>, vector<2x8x8xbf16>, vector<2x8x8xf32> -> vector<2x8x8xf32>
    "tpu.trace_stop"() : () -> ()
    %cst_146 = arith.constant 0.353553385 : f32
    %406 = vector.broadcast %cst_146 : f32 to vector<2x8x8xf32>
    %407 = arith.mulf %405, %406 : vector<2x8x8xf32>
    %cst_147 = arith.constant dense<0xFF800000> : vector<2x8xf32>
    %408 = vector.multi_reduction <maximumf>, %407, %cst_147 [2] : vector<2x8x8xf32> to vector<2x8xf32>
    %409 = vector.shape_cast %408 : vector<2x8xf32> to vector<2x8x1xf32>
    %410 = vector.broadcast %409 : vector<2x8x1xf32> to vector<2x8x8xf32>
    %411 = arith.subf %407, %410 : vector<2x8x8xf32>
    %412 = math.exp %411 : vector<2x8x8xf32>
    %cst_148 = arith.constant dense<0.000000e+00> : vector<2x8xf32>
    %413 = vector.multi_reduction <add>, %412, %cst_148 [2] : vector<2x8x8xf32> to vector<2x8xf32>
    %414 = vector.shape_cast %413 : vector<2x8xf32> to vector<2x8x1xf32>
    %415 = tpu.reciprocal %414 {approx = true} : vector<2x8x1xf32> -> vector<2x8x1xf32>
    %416 = vector.broadcast %415 : vector<2x8x1xf32> to vector<2x8x8xf32>
    %417 = arith.mulf %412, %416 : vector<2x8x8xf32>
    %418 = arith.truncf %417 : vector<2x8x8xf32> to vector<2x8x8xbf16>
    %419 = vector.extract_strided_slice %366 {offsets = [0, 0, 16], sizes = [2, 8, 8], strides = [1, 1, 1]} : vector<2x8x32xbf16> to vector<2x8x8xbf16>
    "tpu.trace_start"() <{level = 10 : i32, message = "bts,bsd->btd"}> : () -> ()
    %cst_149 = arith.constant dense<0.000000e+00> : vector<2x8x8xf32>
    %420 = tpu.matmul %418, %419, %cst_149 {dimension_numbers = #tpu.dot_dimension_numbers<[2], [1], [1], [2], [0, 0, 0, 1, 1, 2], [0], [0]>} : vector<2x8x8xbf16>, vector<2x8x8xbf16>, vector<2x8x8xf32> -> vector<2x8x8xf32>
    "tpu.trace_stop"() : () -> ()
    %421 = vector.extract_strided_slice %362 {offsets = [0, 0, 24], sizes = [2, 8, 8], strides = [1, 1, 1]} : vector<2x8x32xbf16> to vector<2x8x8xbf16>
    %422 = vector.extract_strided_slice %364 {offsets = [0, 0, 24], sizes = [2, 8, 8], strides = [1, 1, 1]} : vector<2x8x32xbf16> to vector<2x8x8xbf16>
    "tpu.trace_start"() <{level = 10 : i32, message = "btd,bsd->bts"}> : () -> ()
    %cst_150 = arith.constant dense<0.000000e+00> : vector<2x8x8xf32>
    %423 = tpu.matmul %421, %422, %cst_150 {dimension_numbers = #tpu.dot_dimension_numbers<[2], [2], [1], [1], [0, 0, 0, 1, 1, 1], [0], [0]>} : vector<2x8x8xbf16>, vector<2x8x8xbf16>, vector<2x8x8xf32> -> vector<2x8x8xf32>
    "tpu.trace_stop"() : () -> ()
    %cst_151 = arith.constant 0.353553385 : f32
    %424 = vector.broadcast %cst_151 : f32 to vector<2x8x8xf32>
    %425 = arith.mulf %423, %424 : vector<2x8x8xf32>
    %cst_152 = arith.constant dense<0xFF800000> : vector<2x8xf32>
    %426 = vector.multi_reduction <maximumf>, %425, %cst_152 [2] : vector<2x8x8xf32> to vector<2x8xf32>
    %427 = vector.shape_cast %426 : vector<2x8xf32> to vector<2x8x1xf32>
    %428 = vector.broadcast %427 : vector<2x8x1xf32> to vector<2x8x8xf32>
    %429 = arith.subf %425, %428 : vector<2x8x8xf32>
    %430 = math.exp %429 : vector<2x8x8xf32>
    %cst_153 = arith.constant dense<0.000000e+00> : vector<2x8xf32>
    %431 = vector.multi_reduction <add>, %430, %cst_153 [2] : vector<2x8x8xf32> to vector<2x8xf32>
    %432 = vector.shape_cast %431 : vector<2x8xf32> to vector<2x8x1xf32>
    %433 = tpu.reciprocal %432 {approx = true} : vector<2x8x1xf32> -> vector<2x8x1xf32>
    %434 = vector.broadcast %433 : vector<2x8x1xf32> to vector<2x8x8xf32>
    %435 = arith.mulf %430, %434 : vector<2x8x8xf32>
    %436 = arith.truncf %435 : vector<2x8x8xf32> to vector<2x8x8xbf16>
    %437 = vector.extract_strided_slice %366 {offsets = [0, 0, 24], sizes = [2, 8, 8], strides = [1, 1, 1]} : vector<2x8x32xbf16> to vector<2x8x8xbf16>
    "tpu.trace_start"() <{level = 10 : i32, message = "bts,bsd->btd"}> : () -> ()
    %cst_154 = arith.constant dense<0.000000e+00> : vector<2x8x8xf32>
    %438 = tpu.matmul %436, %437, %cst_154 {dimension_numbers = #tpu.dot_dimension_numbers<[2], [1], [1], [2], [0, 0, 0, 1, 1, 2], [0], [0]>} : vector<2x8x8xbf16>, vector<2x8x8xbf16>, vector<2x8x8xf32> -> vector<2x8x8xf32>
    "tpu.trace_stop"() : () -> ()
    %439 = tpu.concatenate %384, %402, %420, %438 in 2 : vector<2x8x8xf32>, vector<2x8x8xf32>, vector<2x8x8xf32>, vector<2x8x8xf32> -> vector<2x8x32xf32>
    %440 = vector.shape_cast %439 : vector<2x8x32xf32> to vector<16x32xf32>
    %441 = arith.truncf %440 : vector<16x32xf32> to vector<16x32xbf16>
    %442 = arith.truncf %344 : vector<32x32xf32> to vector<32x32xbf16>
    %cst_155 = arith.constant dense<0.000000e+00> : vector<16x32xf32>
    %443 = tpu.matmul %441, %442, %cst_155 {dimension_numbers = #tpu.dot_dimension_numbers<[1], [0], [0], [1], [0, 0, 1, 1], [], []>} : vector<16x32xbf16>, vector<32x32xbf16>, vector<16x32xf32> -> vector<16x32xf32>
    %444 = vector.broadcast %345 : vector<1x32xf32> to vector<16x32xf32>
    %445 = arith.addf %443, %444 : vector<16x32xf32>
    %446 = arith.addf %330, %445 : vector<16x32xf32>
    %447 = vector.extract_strided_slice %332 {offsets = [9, 0], sizes = [1, 32], strides = [1, 1]} : vector<16x32xf32> to vector<1x32xf32>
    %448 = vector.extract_strided_slice %332 {offsets = [10, 0], sizes = [1, 32], strides = [1, 1]} : vector<16x32xf32> to vector<1x32xf32>
    %cst_156 = arith.constant dense<0.000000e+00> : vector<16xf32>
    %449 = vector.multi_reduction <add>, %446, %cst_156 [1] : vector<16x32xf32> to vector<16xf32>
    %450 = vector.shape_cast %449 : vector<16xf32> to vector<16x1xf32>
    %cst_157 = arith.constant 3.200000e+01 : f32
    %451 = vector.broadcast %cst_157 : f32 to vector<16x1xf32>
    %452 = arith.divf %450, %451 : vector<16x1xf32>
    %453 = vector.broadcast %452 : vector<16x1xf32> to vector<16x32xf32>
    %454 = arith.subf %446, %453 : vector<16x32xf32>
    %455 = arith.mulf %454, %454 : vector<16x32xf32>
    %cst_158 = arith.constant dense<0.000000e+00> : vector<16xf32>
    %456 = vector.multi_reduction <add>, %455, %cst_158 [1] : vector<16x32xf32> to vector<16xf32>
    %457 = vector.shape_cast %456 : vector<16xf32> to vector<16x1xf32>
    %cst_159 = arith.constant 3.200000e+01 : f32
    %458 = vector.broadcast %cst_159 : f32 to vector<16x1xf32>
    %459 = arith.divf %457, %458 : vector<16x1xf32>
    %460 = vector.broadcast %452 : vector<16x1xf32> to vector<16x32xf32>
    %461 = arith.subf %446, %460 : vector<16x32xf32>
    %cst_160 = arith.constant 9.99999974E-6 : f32
    %462 = vector.broadcast %cst_160 : f32 to vector<16x1xf32>
    %463 = arith.addf %459, %462 : vector<16x1xf32>
    %464 = math.rsqrt %463 : vector<16x1xf32>
    %465 = vector.broadcast %464 : vector<16x1xf32> to vector<16x32xf32>
    %466 = arith.mulf %461, %465 : vector<16x32xf32>
    %467 = vector.broadcast %447 : vector<1x32xf32> to vector<16x32xf32>
    %468 = arith.mulf %466, %467 : vector<16x32xf32>
    %469 = vector.broadcast %448 : vector<1x32xf32> to vector<16x32xf32>
    %470 = arith.addf %468, %469 : vector<16x32xf32>
    %471 = arith.addf %470, %3 : vector<16x32xf32>
    %c1_161 = arith.constant 1 : index
    %c4_162 = arith.constant 4 : index
    %c0_163 = arith.constant 0 : index
    %c0_164 = arith.constant 0 : index
    %472 = vector.load %arg4[%c1_161, %c4_162, %c0_163, %c0_164] : memref<2x8x32x32xf32, #tpu.memory_space<vmem>>, vector<1x1x32x32xf32>
    %473 = vector.shape_cast %472 : vector<1x1x32x32xf32> to vector<32x32xf32>
    %474 = vector.extract_strided_slice %332 {offsets = [4, 0], sizes = [1, 32], strides = [1, 1]} : vector<16x32xf32> to vector<1x32xf32>
    %c1_165 = arith.constant 1 : index
    %c5_166 = arith.constant 5 : index
    %c0_167 = arith.constant 0 : index
    %c0_168 = arith.constant 0 : index
    %475 = vector.load %arg4[%c1_165, %c5_166, %c0_167, %c0_168] : memref<2x8x32x32xf32, #tpu.memory_space<vmem>>, vector<1x1x32x32xf32>
    %476 = vector.shape_cast %475 : vector<1x1x32x32xf32> to vector<32x32xf32>
    %477 = vector.extract_strided_slice %332 {offsets = [5, 0], sizes = [1, 32], strides = [1, 1]} : vector<16x32xf32> to vector<1x32xf32>
    %c1_169 = arith.constant 1 : index
    %c6_170 = arith.constant 6 : index
    %c0_171 = arith.constant 0 : index
    %c0_172 = arith.constant 0 : index
    %478 = vector.load %arg4[%c1_169, %c6_170, %c0_171, %c0_172] : memref<2x8x32x32xf32, #tpu.memory_space<vmem>>, vector<1x1x32x32xf32>
    %479 = vector.shape_cast %478 : vector<1x1x32x32xf32> to vector<32x32xf32>
    %480 = vector.extract_strided_slice %332 {offsets = [6, 0], sizes = [1, 32], strides = [1, 1]} : vector<16x32xf32> to vector<1x32xf32>
    %c1_173 = arith.constant 1 : index
    %c7_174 = arith.constant 7 : index
    %c0_175 = arith.constant 0 : index
    %c0_176 = arith.constant 0 : index
    %481 = vector.load %arg4[%c1_173, %c7_174, %c0_175, %c0_176] : memref<2x8x32x32xf32, #tpu.memory_space<vmem>>, vector<1x1x32x32xf32>
    %482 = vector.shape_cast %481 : vector<1x1x32x32xf32> to vector<32x32xf32>
    %483 = vector.extract_strided_slice %332 {offsets = [7, 0], sizes = [1, 32], strides = [1, 1]} : vector<16x32xf32> to vector<1x32xf32>
    %484 = arith.truncf %471 : vector<16x32xf32> to vector<16x32xbf16>
    %485 = arith.truncf %473 : vector<32x32xf32> to vector<32x32xbf16>
    %cst_177 = arith.constant dense<0.000000e+00> : vector<16x32xf32>
    %486 = tpu.matmul %484, %485, %cst_177 {dimension_numbers = #tpu.dot_dimension_numbers<[1], [0], [0], [1], [0, 0, 1, 1], [], []>} : vector<16x32xbf16>, vector<32x32xbf16>, vector<16x32xf32> -> vector<16x32xf32>
    %487 = vector.broadcast %474 : vector<1x32xf32> to vector<16x32xf32>
    %488 = arith.addf %486, %487 : vector<16x32xf32>
    %489 = arith.truncf %8 : vector<32x32xf32> to vector<32x32xbf16>
    %490 = arith.truncf %476 : vector<32x32xf32> to vector<32x32xbf16>
    %cst_178 = arith.constant dense<0.000000e+00> : vector<32x32xf32>
    %491 = tpu.matmul %489, %490, %cst_178 {dimension_numbers = #tpu.dot_dimension_numbers<[1], [0], [0], [1], [0, 0, 1, 1], [], []>} : vector<32x32xbf16>, vector<32x32xbf16>, vector<32x32xf32> -> vector<32x32xf32>
    %492 = vector.broadcast %477 : vector<1x32xf32> to vector<32x32xf32>
    %493 = arith.addf %491, %492 : vector<32x32xf32>
    %494 = arith.truncf %5 : vector<32x32xf32> to vector<32x32xbf16>
    %495 = arith.truncf %479 : vector<32x32xf32> to vector<32x32xbf16>
    %cst_179 = arith.constant dense<0.000000e+00> : vector<32x32xf32>
    %496 = tpu.matmul %494, %495, %cst_179 {dimension_numbers = #tpu.dot_dimension_numbers<[1], [0], [0], [1], [0, 0, 1, 1], [], []>} : vector<32x32xbf16>, vector<32x32xbf16>, vector<32x32xf32> -> vector<32x32xf32>
    %497 = vector.broadcast %480 : vector<1x32xf32> to vector<32x32xf32>
    %498 = arith.addf %496, %497 : vector<32x32xf32>
    %499 = vector.shape_cast %488 : vector<16x32xf32> to vector<2x8x32xf32>
    %500 = arith.truncf %499 : vector<2x8x32xf32> to vector<2x8x32xbf16>
    %501 = vector.shape_cast %493 : vector<32x32xf32> to vector<2x16x32xf32>
    %502 = arith.truncf %501 : vector<2x16x32xf32> to vector<2x16x32xbf16>
    %503 = vector.shape_cast %498 : vector<32x32xf32> to vector<2x16x32xf32>
    %504 = arith.truncf %503 : vector<2x16x32xf32> to vector<2x16x32xbf16>
    %505 = vector.extract_strided_slice %500 {offsets = [0, 0, 0], sizes = [2, 8, 8], strides = [1, 1, 1]} : vector<2x8x32xbf16> to vector<2x8x8xbf16>
    %506 = vector.extract_strided_slice %502 {offsets = [0, 0, 0], sizes = [2, 16, 8], strides = [1, 1, 1]} : vector<2x16x32xbf16> to vector<2x16x8xbf16>
    "tpu.trace_start"() <{level = 10 : i32, message = "btd,bsd->bts"}> : () -> ()
    %cst_180 = arith.constant dense<0.000000e+00> : vector<2x8x16xf32>
    %507 = tpu.matmul %505, %506, %cst_180 {dimension_numbers = #tpu.dot_dimension_numbers<[2], [2], [1], [1], [0, 0, 0, 1, 1, 1], [0], [0]>} : vector<2x8x8xbf16>, vector<2x16x8xbf16>, vector<2x8x16xf32> -> vector<2x8x16xf32>
    "tpu.trace_stop"() : () -> ()
    %cst_181 = arith.constant 0.353553385 : f32
    %508 = vector.broadcast %cst_181 : f32 to vector<2x8x16xf32>
    %509 = arith.mulf %507, %508 : vector<2x8x16xf32>
    %cst_182 = arith.constant dense<0xFF800000> : vector<2x8xf32>
    %510 = vector.multi_reduction <maximumf>, %509, %cst_182 [2] : vector<2x8x16xf32> to vector<2x8xf32>
    %511 = vector.shape_cast %510 : vector<2x8xf32> to vector<2x8x1xf32>
    %512 = vector.broadcast %511 : vector<2x8x1xf32> to vector<2x8x16xf32>
    %513 = arith.subf %509, %512 : vector<2x8x16xf32>
    %514 = math.exp %513 : vector<2x8x16xf32>
    %cst_183 = arith.constant dense<0.000000e+00> : vector<2x8xf32>
    %515 = vector.multi_reduction <add>, %514, %cst_183 [2] : vector<2x8x16xf32> to vector<2x8xf32>
    %516 = vector.shape_cast %515 : vector<2x8xf32> to vector<2x8x1xf32>
    %517 = tpu.reciprocal %516 {approx = true} : vector<2x8x1xf32> -> vector<2x8x1xf32>
    %518 = vector.broadcast %517 : vector<2x8x1xf32> to vector<2x8x16xf32>
    %519 = arith.mulf %514, %518 : vector<2x8x16xf32>
    %520 = arith.truncf %519 : vector<2x8x16xf32> to vector<2x8x16xbf16>
    %521 = vector.extract_strided_slice %504 {offsets = [0, 0, 0], sizes = [2, 16, 8], strides = [1, 1, 1]} : vector<2x16x32xbf16> to vector<2x16x8xbf16>
    "tpu.trace_start"() <{level = 10 : i32, message = "bts,bsd->btd"}> : () -> ()
    %cst_184 = arith.constant dense<0.000000e+00> : vector<2x8x8xf32>
    %522 = tpu.matmul %520, %521, %cst_184 {dimension_numbers = #tpu.dot_dimension_numbers<[2], [1], [1], [2], [0, 0, 0, 1, 1, 2], [0], [0]>} : vector<2x8x16xbf16>, vector<2x16x8xbf16>, vector<2x8x8xf32> -> vector<2x8x8xf32>
    "tpu.trace_stop"() : () -> ()
    %523 = vector.extract_strided_slice %500 {offsets = [0, 0, 8], sizes = [2, 8, 8], strides = [1, 1, 1]} : vector<2x8x32xbf16> to vector<2x8x8xbf16>
    %524 = vector.extract_strided_slice %502 {offsets = [0, 0, 8], sizes = [2, 16, 8], strides = [1, 1, 1]} : vector<2x16x32xbf16> to vector<2x16x8xbf16>
    "tpu.trace_start"() <{level = 10 : i32, message = "btd,bsd->bts"}> : () -> ()
    %cst_185 = arith.constant dense<0.000000e+00> : vector<2x8x16xf32>
    %525 = tpu.matmul %523, %524, %cst_185 {dimension_numbers = #tpu.dot_dimension_numbers<[2], [2], [1], [1], [0, 0, 0, 1, 1, 1], [0], [0]>} : vector<2x8x8xbf16>, vector<2x16x8xbf16>, vector<2x8x16xf32> -> vector<2x8x16xf32>
    "tpu.trace_stop"() : () -> ()
    %cst_186 = arith.constant 0.353553385 : f32
    %526 = vector.broadcast %cst_186 : f32 to vector<2x8x16xf32>
    %527 = arith.mulf %525, %526 : vector<2x8x16xf32>
    %cst_187 = arith.constant dense<0xFF800000> : vector<2x8xf32>
    %528 = vector.multi_reduction <maximumf>, %527, %cst_187 [2] : vector<2x8x16xf32> to vector<2x8xf32>
    %529 = vector.shape_cast %528 : vector<2x8xf32> to vector<2x8x1xf32>
    %530 = vector.broadcast %529 : vector<2x8x1xf32> to vector<2x8x16xf32>
    %531 = arith.subf %527, %530 : vector<2x8x16xf32>
    %532 = math.exp %531 : vector<2x8x16xf32>
    %cst_188 = arith.constant dense<0.000000e+00> : vector<2x8xf32>
    %533 = vector.multi_reduction <add>, %532, %cst_188 [2] : vector<2x8x16xf32> to vector<2x8xf32>
    %534 = vector.shape_cast %533 : vector<2x8xf32> to vector<2x8x1xf32>
    %535 = tpu.reciprocal %534 {approx = true} : vector<2x8x1xf32> -> vector<2x8x1xf32>
    %536 = vector.broadcast %535 : vector<2x8x1xf32> to vector<2x8x16xf32>
    %537 = arith.mulf %532, %536 : vector<2x8x16xf32>
    %538 = arith.truncf %537 : vector<2x8x16xf32> to vector<2x8x16xbf16>
    %539 = vector.extract_strided_slice %504 {offsets = [0, 0, 8], sizes = [2, 16, 8], strides = [1, 1, 1]} : vector<2x16x32xbf16> to vector<2x16x8xbf16>
    "tpu.trace_start"() <{level = 10 : i32, message = "bts,bsd->btd"}> : () -> ()
    %cst_189 = arith.constant dense<0.000000e+00> : vector<2x8x8xf32>
    %540 = tpu.matmul %538, %539, %cst_189 {dimension_numbers = #tpu.dot_dimension_numbers<[2], [1], [1], [2], [0, 0, 0, 1, 1, 2], [0], [0]>} : vector<2x8x16xbf16>, vector<2x16x8xbf16>, vector<2x8x8xf32> -> vector<2x8x8xf32>
    "tpu.trace_stop"() : () -> ()
    %541 = vector.extract_strided_slice %500 {offsets = [0, 0, 16], sizes = [2, 8, 8], strides = [1, 1, 1]} : vector<2x8x32xbf16> to vector<2x8x8xbf16>
    %542 = vector.extract_strided_slice %502 {offsets = [0, 0, 16], sizes = [2, 16, 8], strides = [1, 1, 1]} : vector<2x16x32xbf16> to vector<2x16x8xbf16>
    "tpu.trace_start"() <{level = 10 : i32, message = "btd,bsd->bts"}> : () -> ()
    %cst_190 = arith.constant dense<0.000000e+00> : vector<2x8x16xf32>
    %543 = tpu.matmul %541, %542, %cst_190 {dimension_numbers = #tpu.dot_dimension_numbers<[2], [2], [1], [1], [0, 0, 0, 1, 1, 1], [0], [0]>} : vector<2x8x8xbf16>, vector<2x16x8xbf16>, vector<2x8x16xf32> -> vector<2x8x16xf32>
    "tpu.trace_stop"() : () -> ()
    %cst_191 = arith.constant 0.353553385 : f32
    %544 = vector.broadcast %cst_191 : f32 to vector<2x8x16xf32>
    %545 = arith.mulf %543, %544 : vector<2x8x16xf32>
    %cst_192 = arith.constant dense<0xFF800000> : vector<2x8xf32>
    %546 = vector.multi_reduction <maximumf>, %545, %cst_192 [2] : vector<2x8x16xf32> to vector<2x8xf32>
    %547 = vector.shape_cast %546 : vector<2x8xf32> to vector<2x8x1xf32>
    %548 = vector.broadcast %547 : vector<2x8x1xf32> to vector<2x8x16xf32>
    %549 = arith.subf %545, %548 : vector<2x8x16xf32>
    %550 = math.exp %549 : vector<2x8x16xf32>
    %cst_193 = arith.constant dense<0.000000e+00> : vector<2x8xf32>
    %551 = vector.multi_reduction <add>, %550, %cst_193 [2] : vector<2x8x16xf32> to vector<2x8xf32>
    %552 = vector.shape_cast %551 : vector<2x8xf32> to vector<2x8x1xf32>
    %553 = tpu.reciprocal %552 {approx = true} : vector<2x8x1xf32> -> vector<2x8x1xf32>
    %554 = vector.broadcast %553 : vector<2x8x1xf32> to vector<2x8x16xf32>
    %555 = arith.mulf %550, %554 : vector<2x8x16xf32>
    %556 = arith.truncf %555 : vector<2x8x16xf32> to vector<2x8x16xbf16>
    %557 = vector.extract_strided_slice %504 {offsets = [0, 0, 16], sizes = [2, 16, 8], strides = [1, 1, 1]} : vector<2x16x32xbf16> to vector<2x16x8xbf16>
    "tpu.trace_start"() <{level = 10 : i32, message = "bts,bsd->btd"}> : () -> ()
    %cst_194 = arith.constant dense<0.000000e+00> : vector<2x8x8xf32>
    %558 = tpu.matmul %556, %557, %cst_194 {dimension_numbers = #tpu.dot_dimension_numbers<[2], [1], [1], [2], [0, 0, 0, 1, 1, 2], [0], [0]>} : vector<2x8x16xbf16>, vector<2x16x8xbf16>, vector<2x8x8xf32> -> vector<2x8x8xf32>
    "tpu.trace_stop"() : () -> ()
    %559 = vector.extract_strided_slice %500 {offsets = [0, 0, 24], sizes = [2, 8, 8], strides = [1, 1, 1]} : vector<2x8x32xbf16> to vector<2x8x8xbf16>
    %560 = vector.extract_strided_slice %502 {offsets = [0, 0, 24], sizes = [2, 16, 8], strides = [1, 1, 1]} : vector<2x16x32xbf16> to vector<2x16x8xbf16>
    "tpu.trace_start"() <{level = 10 : i32, message = "btd,bsd->bts"}> : () -> ()
    %cst_195 = arith.constant dense<0.000000e+00> : vector<2x8x16xf32>
    %561 = tpu.matmul %559, %560, %cst_195 {dimension_numbers = #tpu.dot_dimension_numbers<[2], [2], [1], [1], [0, 0, 0, 1, 1, 1], [0], [0]>} : vector<2x8x8xbf16>, vector<2x16x8xbf16>, vector<2x8x16xf32> -> vector<2x8x16xf32>
    "tpu.trace_stop"() : () -> ()
    %cst_196 = arith.constant 0.353553385 : f32
    %562 = vector.broadcast %cst_196 : f32 to vector<2x8x16xf32>
    %563 = arith.mulf %561, %562 : vector<2x8x16xf32>
    %cst_197 = arith.constant dense<0xFF800000> : vector<2x8xf32>
    %564 = vector.multi_reduction <maximumf>, %563, %cst_197 [2] : vector<2x8x16xf32> to vector<2x8xf32>
    %565 = vector.shape_cast %564 : vector<2x8xf32> to vector<2x8x1xf32>
    %566 = vector.broadcast %565 : vector<2x8x1xf32> to vector<2x8x16xf32>
    %567 = arith.subf %563, %566 : vector<2x8x16xf32>
    %568 = math.exp %567 : vector<2x8x16xf32>
    %cst_198 = arith.constant dense<0.000000e+00> : vector<2x8xf32>
    %569 = vector.multi_reduction <add>, %568, %cst_198 [2] : vector<2x8x16xf32> to vector<2x8xf32>
    %570 = vector.shape_cast %569 : vector<2x8xf32> to vector<2x8x1xf32>
    %571 = tpu.reciprocal %570 {approx = true} : vector<2x8x1xf32> -> vector<2x8x1xf32>
    %572 = vector.broadcast %571 : vector<2x8x1xf32> to vector<2x8x16xf32>
    %573 = arith.mulf %568, %572 : vector<2x8x16xf32>
    %574 = arith.truncf %573 : vector<2x8x16xf32> to vector<2x8x16xbf16>
    %575 = vector.extract_strided_slice %504 {offsets = [0, 0, 24], sizes = [2, 16, 8], strides = [1, 1, 1]} : vector<2x16x32xbf16> to vector<2x16x8xbf16>
    "tpu.trace_start"() <{level = 10 : i32, message = "bts,bsd->btd"}> : () -> ()
    %cst_199 = arith.constant dense<0.000000e+00> : vector<2x8x8xf32>
    %576 = tpu.matmul %574, %575, %cst_199 {dimension_numbers = #tpu.dot_dimension_numbers<[2], [1], [1], [2], [0, 0, 0, 1, 1, 2], [0], [0]>} : vector<2x8x16xbf16>, vector<2x16x8xbf16>, vector<2x8x8xf32> -> vector<2x8x8xf32>
    "tpu.trace_stop"() : () -> ()
    %577 = tpu.concatenate %522, %540, %558, %576 in 2 : vector<2x8x8xf32>, vector<2x8x8xf32>, vector<2x8x8xf32>, vector<2x8x8xf32> -> vector<2x8x32xf32>
    %578 = vector.shape_cast %577 : vector<2x8x32xf32> to vector<16x32xf32>
    %579 = arith.truncf %578 : vector<16x32xf32> to vector<16x32xbf16>
    %580 = arith.truncf %482 : vector<32x32xf32> to vector<32x32xbf16>
    %cst_200 = arith.constant dense<0.000000e+00> : vector<16x32xf32>
    %581 = tpu.matmul %579, %580, %cst_200 {dimension_numbers = #tpu.dot_dimension_numbers<[1], [0], [0], [1], [0, 0, 1, 1], [], []>} : vector<16x32xbf16>, vector<32x32xbf16>, vector<16x32xf32> -> vector<16x32xf32>
    %582 = vector.broadcast %483 : vector<1x32xf32> to vector<16x32xf32>
    %583 = arith.addf %581, %582 : vector<16x32xf32>
    %584 = arith.addf %470, %583 : vector<16x32xf32>
    %585 = vector.extract_strided_slice %332 {offsets = [11, 0], sizes = [1, 32], strides = [1, 1]} : vector<16x32xf32> to vector<1x32xf32>
    %586 = vector.extract_strided_slice %332 {offsets = [12, 0], sizes = [1, 32], strides = [1, 1]} : vector<16x32xf32> to vector<1x32xf32>
    %cst_201 = arith.constant dense<0.000000e+00> : vector<16xf32>
    %587 = vector.multi_reduction <add>, %584, %cst_201 [1] : vector<16x32xf32> to vector<16xf32>
    %588 = vector.shape_cast %587 : vector<16xf32> to vector<16x1xf32>
    %cst_202 = arith.constant 3.200000e+01 : f32
    %589 = vector.broadcast %cst_202 : f32 to vector<16x1xf32>
    %590 = arith.divf %588, %589 : vector<16x1xf32>
    %591 = vector.broadcast %590 : vector<16x1xf32> to vector<16x32xf32>
    %592 = arith.subf %584, %591 : vector<16x32xf32>
    %593 = arith.mulf %592, %592 : vector<16x32xf32>
    %cst_203 = arith.constant dense<0.000000e+00> : vector<16xf32>
    %594 = vector.multi_reduction <add>, %593, %cst_203 [1] : vector<16x32xf32> to vector<16xf32>
    %595 = vector.shape_cast %594 : vector<16xf32> to vector<16x1xf32>
    %cst_204 = arith.constant 3.200000e+01 : f32
    %596 = vector.broadcast %cst_204 : f32 to vector<16x1xf32>
    %597 = arith.divf %595, %596 : vector<16x1xf32>
    %598 = vector.broadcast %590 : vector<16x1xf32> to vector<16x32xf32>
    %599 = arith.subf %584, %598 : vector<16x32xf32>
    %cst_205 = arith.constant 9.99999974E-6 : f32
    %600 = vector.broadcast %cst_205 : f32 to vector<16x1xf32>
    %601 = arith.addf %597, %600 : vector<16x1xf32>
    %602 = math.rsqrt %601 : vector<16x1xf32>
    %603 = vector.broadcast %602 : vector<16x1xf32> to vector<16x32xf32>
    %604 = arith.mulf %599, %603 : vector<16x32xf32>
    %605 = vector.broadcast %585 : vector<1x32xf32> to vector<16x32xf32>
    %606 = arith.mulf %604, %605 : vector<16x32xf32>
    %607 = vector.broadcast %586 : vector<1x32xf32> to vector<16x32xf32>
    %608 = arith.addf %606, %607 : vector<16x32xf32>
    %c1_206 = arith.constant 1 : index
    %c0_207 = arith.constant 0 : index
    %c0_208 = arith.constant 0 : index
    %609 = vector.load %arg5[%c1_206, %c0_207, %c0_208] : memref<2x32x64xf32, #tpu.memory_space<vmem>>, vector<1x32x64xf32>
    %610 = vector.shape_cast %609 : vector<1x32x64xf32> to vector<32x64xf32>
    %611 = arith.truncf %608 : vector<16x32xf32> to vector<16x32xbf16>
    %612 = arith.truncf %610 : vector<32x64xf32> to vector<32x64xbf16>
    %cst_209 = arith.constant dense<0.000000e+00> : vector<16x64xf32>
    %613 = tpu.matmul %611, %612, %cst_209 {dimension_numbers = #tpu.dot_dimension_numbers<[1], [0], [0], [1], [0, 0, 1, 1], [], []>} : vector<16x32xbf16>, vector<32x64xbf16>, vector<16x64xf32> -> vector<16x64xf32>
    %c1_210 = arith.constant 1 : index
    %c0_211 = arith.constant 0 : index
    %c0_212 = arith.constant 0 : index
    %614 = vector.load %arg8[%c1_210, %c0_211, %c0_212] : memref<2x1x64xf32, #tpu.memory_space<vmem>>, vector<1x1x64xf32>
    %615 = vector.shape_cast %614 : vector<1x1x64xf32> to vector<1x64xf32>
    %616 = vector.broadcast %615 : vector<1x64xf32> to vector<16x64xf32>
    %617 = arith.addf %613, %616 : vector<16x64xf32>
    %cst_213 = arith.constant 0.000000e+00 : f32
    %618 = vector.broadcast %cst_213 : f32 to vector<16x64xf32>
    %619 = arith.maximumf %617, %618 : vector<16x64xf32>
    %c1_214 = arith.constant 1 : index
    %c0_215 = arith.constant 0 : index
    %c0_216 = arith.constant 0 : index
    %620 = vector.load %arg6[%c1_214, %c0_215, %c0_216] : memref<2x64x32xf32, #tpu.memory_space<vmem>>, vector<1x64x32xf32>
    %621 = vector.shape_cast %620 : vector<1x64x32xf32> to vector<64x32xf32>
    %622 = arith.truncf %619 : vector<16x64xf32> to vector<16x64xbf16>
    %623 = arith.truncf %621 : vector<64x32xf32> to vector<64x32xbf16>
    %cst_217 = arith.constant dense<0.000000e+00> : vector<16x32xf32>
    %624 = tpu.matmul %622, %623, %cst_217 {dimension_numbers = #tpu.dot_dimension_numbers<[1], [0], [0], [1], [0, 0, 1, 1], [], []>} : vector<16x64xbf16>, vector<64x32xbf16>, vector<16x32xf32> -> vector<16x32xf32>
    %625 = vector.extract_strided_slice %332 {offsets = [8, 0], sizes = [1, 32], strides = [1, 1]} : vector<16x32xf32> to vector<1x32xf32>
    %626 = vector.broadcast %625 : vector<1x32xf32> to vector<16x32xf32>
    %627 = arith.addf %624, %626 : vector<16x32xf32>
    %628 = arith.addf %608, %627 : vector<16x32xf32>
    %629 = vector.extract_strided_slice %332 {offsets = [13, 0], sizes = [1, 32], strides = [1, 1]} : vector<16x32xf32> to vector<1x32xf32>
    %630 = vector.extract_strided_slice %332 {offsets = [14, 0], sizes = [1, 32], strides = [1, 1]} : vector<16x32xf32> to vector<1x32xf32>
    %cst_218 = arith.constant dense<0.000000e+00> : vector<16xf32>
    %631 = vector.multi_reduction <add>, %628, %cst_218 [1] : vector<16x32xf32> to vector<16xf32>
    %632 = vector.shape_cast %631 : vector<16xf32> to vector<16x1xf32>
    %cst_219 = arith.constant 3.200000e+01 : f32
    %633 = vector.broadcast %cst_219 : f32 to vector<16x1xf32>
    %634 = arith.divf %632, %633 : vector<16x1xf32>
    %635 = vector.broadcast %634 : vector<16x1xf32> to vector<16x32xf32>
    %636 = arith.subf %628, %635 : vector<16x32xf32>
    %637 = arith.mulf %636, %636 : vector<16x32xf32>
    %cst_220 = arith.constant dense<0.000000e+00> : vector<16xf32>
    %638 = vector.multi_reduction <add>, %637, %cst_220 [1] : vector<16x32xf32> to vector<16xf32>
    %639 = vector.shape_cast %638 : vector<16xf32> to vector<16x1xf32>
    %cst_221 = arith.constant 3.200000e+01 : f32
    %640 = vector.broadcast %cst_221 : f32 to vector<16x1xf32>
    %641 = arith.divf %639, %640 : vector<16x1xf32>
    %642 = vector.broadcast %634 : vector<16x1xf32> to vector<16x32xf32>
    %643 = arith.subf %628, %642 : vector<16x32xf32>
    %cst_222 = arith.constant 9.99999974E-6 : f32
    %644 = vector.broadcast %cst_222 : f32 to vector<16x1xf32>
    %645 = arith.addf %641, %644 : vector<16x1xf32>
    %646 = math.rsqrt %645 : vector<16x1xf32>
    %647 = vector.broadcast %646 : vector<16x1xf32> to vector<16x32xf32>
    %648 = arith.mulf %643, %647 : vector<16x32xf32>
    %649 = vector.broadcast %629 : vector<1x32xf32> to vector<16x32xf32>
    %650 = arith.mulf %648, %649 : vector<16x32xf32>
    %651 = vector.broadcast %630 : vector<1x32xf32> to vector<16x32xf32>
    %652 = arith.addf %650, %651 : vector<16x32xf32>
    %c0_223 = arith.constant 0 : index
    %c0_224 = arith.constant 0 : index
    %653 = vector.load %arg9[%c0_223, %c0_224] : memref<2x32xf32, #tpu.memory_space<vmem>>, vector<1x32xf32>
    %c1_225 = arith.constant 1 : index
    %c0_226 = arith.constant 0 : index
    %654 = vector.load %arg9[%c1_225, %c0_226] : memref<2x32xf32, #tpu.memory_space<vmem>>, vector<1x32xf32>
    %cst_227 = arith.constant dense<0.000000e+00> : vector<16xf32>
    %655 = vector.multi_reduction <add>, %652, %cst_227 [1] : vector<16x32xf32> to vector<16xf32>
    %656 = vector.shape_cast %655 : vector<16xf32> to vector<16x1xf32>
    %cst_228 = arith.constant 3.200000e+01 : f32
    %657 = vector.broadcast %cst_228 : f32 to vector<16x1xf32>
    %658 = arith.divf %656, %657 : vector<16x1xf32>
    %659 = vector.broadcast %658 : vector<16x1xf32> to vector<16x32xf32>
    %660 = arith.subf %652, %659 : vector<16x32xf32>
    %661 = arith.mulf %660, %660 : vector<16x32xf32>
    %cst_229 = arith.constant dense<0.000000e+00> : vector<16xf32>
    %662 = vector.multi_reduction <add>, %661, %cst_229 [1] : vector<16x32xf32> to vector<16xf32>
    %663 = vector.shape_cast %662 : vector<16xf32> to vector<16x1xf32>
    %cst_230 = arith.constant 3.200000e+01 : f32
    %664 = vector.broadcast %cst_230 : f32 to vector<16x1xf32>
    %665 = arith.divf %663, %664 : vector<16x1xf32>
    %666 = vector.broadcast %658 : vector<16x1xf32> to vector<16x32xf32>
    %667 = arith.subf %652, %666 : vector<16x32xf32>
    %cst_231 = arith.constant 9.99999974E-6 : f32
    %668 = vector.broadcast %cst_231 : f32 to vector<16x1xf32>
    %669 = arith.addf %665, %668 : vector<16x1xf32>
    %670 = math.rsqrt %669 : vector<16x1xf32>
    %671 = vector.broadcast %670 : vector<16x1xf32> to vector<16x32xf32>
    %672 = arith.mulf %667, %671 : vector<16x32xf32>
    %673 = vector.broadcast %653 : vector<1x32xf32> to vector<16x32xf32>
    %674 = arith.mulf %672, %673 : vector<16x32xf32>
    %675 = vector.broadcast %654 : vector<1x32xf32> to vector<16x32xf32>
    %676 = arith.addf %674, %675 : vector<16x32xf32>
    %677 = vector.shape_cast %676 : vector<16x32xf32> to vector<2x8x32xf32>
    %c0_232 = arith.constant 0 : index
    %c0_233 = arith.constant 0 : index
    %c0_234 = arith.constant 0 : index
    %678 = vector.load %arg10[%c0_232, %c0_233, %c0_234] : memref<2x8x32xf32, #tpu.memory_space<vmem>>, vector<2x8x32xf32>
    tpu.vector_store %arg10[%c0_232, %c0_233, %c0_234], %677 {strides = array<i32>} : memref<2x8x32xf32, #tpu.memory_space<vmem>>, vector<2x8x32xf32>,
    return
  }
}

</mosaic_0001>

<llo_original>
// kernel: transformer_decoder.1
$region0: #{transformer_decoder.1}
  #allocation0 [shape = 'u32[]', space=smem, size = 0x4, offset = 0x4, fixed_abs, tag = 'smem constant byte address 0x4 - core index']
  #allocation1 [shape = 'u32[72,128]{1,0:T(1,128)}', space=vmem, size = 0x9000, scoped, tag = 'internal scratch']
  %s0 = inlined_call_operand.vmem [shape: f32[2,8,32], index: 0, kind: input, shape index: {}]
  %s1 = inlined_call_operand.vmem [shape: f32[2,16,32], index: 1, kind: input, shape index: {}]
  %s2 = inlined_call_operand.vmem [shape: f32[2,8,32], index: 2, kind: input, shape index: {}]
  %s3 = inlined_call_operand.vmem [shape: f32[2,16,32], index: 3, kind: input, shape index: {}]
  %s4 = inlined_call_operand.vmem [shape: f32[2,8,32,32], index: 4, kind: input, shape index: {}]
  %s5 = inlined_call_operand.vmem [shape: f32[2,32,64], index: 5, kind: input, shape index: {}]
  %s6 = inlined_call_operand.vmem [shape: f32[2,64,32], index: 6, kind: input, shape index: {}]
  %s7 = inlined_call_operand.vmem [shape: f32[2,16,32], index: 7, kind: input, shape index: {}]
  %s8 = inlined_call_operand.vmem [shape: f32[2,1,64], index: 8, kind: input, shape index: {}]
  %s9 = inlined_call_operand.vmem [shape: f32[2,32], index: 9, kind: input, shape index: {}]
  %s10 = inlined_call_operand.vmem [shape: f32[2,8,32], index: 10, kind: output, shape index: {}]
  %s11 = sld [smem:[#allocation0]]
  $region50: #{transformer_decoder.1} parent=0
    _
  %s13 = ssub.s32 1, %s11
  %s14 = scalar_select 0, %s13, %s11
  // Predicated region
  $region2: #{transformer_decoder.1} parent=0 // pred_check
    _
  $region3: #{transformer_decoder.1} parent=0 // pred_check_branch
    %16 = sbr.rel (0) target = $region5
  $region4: #{transformer_decoder.1} parent=0 // pred_region
    _
  $region5: #{transformer_decoder.1} parent=0 // pred_fallthru
    _
  // Predicated region
  $region6: #{transformer_decoder.1} parent=0 // pred_check
    _
  $region7: #{transformer_decoder.1} parent=0 // pred_check_branch
    %18 = sbr.rel (0) target = $region9
  $region8: #{transformer_decoder.1} parent=0 // pred_region
    _
  $region9: #{transformer_decoder.1} parent=0 // pred_fallthru
    _
  // Predicated region
  $region10: #{transformer_decoder.1} parent=0 // pred_check
    _
  $region11: #{transformer_decoder.1} parent=0 // pred_check_branch
    %20 = sbr.rel (0) target = $region13
  $region12: #{transformer_decoder.1} parent=0 // pred_region
    _
  $region13: #{transformer_decoder.1} parent=0 // pred_fallthru
    _
  // Predicated region
  $region14: #{transformer_decoder.1} parent=0 // pred_check
    _
  $region15: #{transformer_decoder.1} parent=0 // pred_check_branch
    %22 = sbr.rel (0) target = $region17
  $region16: #{transformer_decoder.1} parent=0 // pred_region
    _
  $region17: #{transformer_decoder.1} parent=0 // pred_fallthru
    _
  // Predicated region
  $region18: #{transformer_decoder.1} parent=0 // pred_check
    _
  $region19: #{transformer_decoder.1} parent=0 // pred_check_branch
    %24 = sbr.rel (0) target = $region21
  $region20: #{transformer_decoder.1} parent=0 // pred_region
    _
  $region21: #{transformer_decoder.1} parent=0 // pred_fallthru
    _
  // Predicated region
  $region22: #{transformer_decoder.1} parent=0 // pred_check
    _
  $region23: #{transformer_decoder.1} parent=0 // pred_check_branch
    %26 = sbr.rel (0) target = $region25
  $region24: #{transformer_decoder.1} parent=0 // pred_region
    _
  $region25: #{transformer_decoder.1} parent=0 // pred_fallthru
    _
  // Predicated region
  $region26: #{transformer_decoder.1} parent=0 // pred_check
    _
  $region27: #{transformer_decoder.1} parent=0 // pred_check_branch
    %28 = sbr.rel (0) target = $region29
  $region28: #{transformer_decoder.1} parent=0 // pred_region
    _
  $region29: #{transformer_decoder.1} parent=0 // pred_fallthru
    _
  // Predicated region
  $region30: #{transformer_decoder.1} parent=0 // pred_check
    _
  $region31: #{transformer_decoder.1} parent=0 // pred_check_branch
    %30 = sbr.rel (0) target = $region33
  $region32: #{transformer_decoder.1} parent=0 // pred_region
    _
  $region33: #{transformer_decoder.1} parent=0 // pred_fallthru
    _
  // Predicated region
  $region34: #{transformer_decoder.1} parent=0 // pred_check
    _
  $region35: #{transformer_decoder.1} parent=0 // pred_check_branch
    %32 = sbr.rel (0) target = $region37
  $region36: #{transformer_decoder.1} parent=0 // pred_region
    _
  $region37: #{transformer_decoder.1} parent=0 // pred_fallthru
    _
  // Predicated region
  $region38: #{transformer_decoder.1} parent=0 // pred_check
    _
  $region39: #{transformer_decoder.1} parent=0 // pred_check_branch
    %34 = sbr.rel (0) target = $region41
  $region40: #{transformer_decoder.1} parent=0 // pred_region
    _
  $region41: #{transformer_decoder.1} parent=0 // pred_fallthru
    _
  %v36 = vld [vmem:[%s0] sm:$0xff]
  %v37 = vld [vmem:[%s0 + $0x8] sm:$0xff]
  %v38 = vld [vmem:[%s2] sm:$0xff]
  %v39 = vld [vmem:[%s2 + $0x8] sm:$0xff]
  %v40 = vld [vmem:[%s1] sm:$0xff]
  %v41 = vld [vmem:[%s1 + $0x8] sm:$0xff]
  %v42 = vld [vmem:[%s1 + $0x10] sm:$0xff]
  %v43 = vld [vmem:[%s1 + $0x18] sm:$0xff]
  %v44 = vld [vmem:[%s3] sm:$0xff]
  %v45 = vld [vmem:[%s3 + $0x8] sm:$0xff]
  %v46 = vld [vmem:[%s3 + $0x10] sm:$0xff]
  %v47 = vld [vmem:[%s3 + $0x18] sm:$0xff]
  %v48 = vadd.f32 %v40, %v44
  %v49 = vadd.f32 %v41, %v45
  %v50 = vadd.f32 %v42, %v46
  %v51 = vadd.f32 %v43, %v47
  %v52 = vld [vmem:[%s7] sm:$0xff]
  %v53 = vld [vmem:[%s7 + $0x8] sm:$0xff]
  %v54 = vadd.f32 %v36, %v38
  %v55 = vadd.f32 %v37, %v39
  %v56 = vld [vmem:[%s4] sm:$0xff]
  %v57 = vld [vmem:[%s4 + $0x8] sm:$0xff]
  %v58 = vld [vmem:[%s4 + $0x10] sm:$0xff]
  %v59 = vld [vmem:[%s4 + $0x18] sm:$0xff]
  %s60 = scalar_lea.vmem %s4, 32
  %v61 = vld [vmem:[%s60] sm:$0xff]
  %v62 = vld [vmem:[%s60 + $0x8] sm:$0xff]
  %v63 = vld [vmem:[%s60 + $0x10] sm:$0xff]
  %v64 = vld [vmem:[%s60 + $0x18] sm:$0xff]
  %s65 = scalar_lea.vmem %s4, 64
  %v66 = vld [vmem:[%s65] sm:$0xff]
  %v67 = vld [vmem:[%s65 + $0x8] sm:$0xff]
  %v68 = vld [vmem:[%s65 + $0x10] sm:$0xff]
  %v69 = vld [vmem:[%s65 + $0x18] sm:$0xff]
  %s70 = scalar_lea.vmem %s4, 96
  %v71 = vld [vmem:[%s70] sm:$0xff]
  %v72 = vld [vmem:[%s70 + $0x8] sm:$0xff]
  %v73 = vld [vmem:[%s70 + $0x10] sm:$0xff]
  %v74 = vld [vmem:[%s70 + $0x18] sm:$0xff]
  %v75 = vpack.c.bf16 %v55, %v54
  %v76 = vpack.c.bf16 %v57, %v56
  %v77 = vpack.c.bf16 %v59, %v58
  %v78 = vperm.slane %v52, 0
  %vm79 = vcmask 261120
  %v81 = vsel %vm79, %v75, 0
  %83 = vmatpush.bf16.msra.mxu0 0
  %84 = vmatpush.bf16.msra.mxu0 0
  %85 = vmatpush.bf16.msra.mxu0 0
  %86 = vmatpush.bf16.msra.mxu0 0
  %87 = vmatpush.bf16.msra.mxu0 0
  %88 = vmatpush.bf16.msra.mxu0 0
  %89 = vmatpush.bf16.msra.mxu0 %v77
  %90 = vmatpush.bf16.msra.mxu0 %v76
  %91 = vmatmul.bf16.gmra.mxu0 %v81
  %v92 = vpop.f32.mrf.mxu0
  %v93 = vadd.f32 %v78, %v92
  %v94 = vpop.f32.mrf.mxu0
  %v95 = vadd.f32 %v78, %v94
  %96 = vdwg.mxu0
  %v97 = vpack.c.bf16 %v62, %v61
  %v98 = vpack.c.bf16 %v64, %v63
  %v99 = vperm.slane %v52, 1
  %100 = vmatpush.bf16.msra.mxu0 0
  %101 = vmatpush.bf16.msra.mxu0 0
  %102 = vmatpush.bf16.msra.mxu0 0
  %103 = vmatpush.bf16.msra.mxu0 0
  %104 = vmatpush.bf16.msra.mxu0 0
  %105 = vmatpush.bf16.msra.mxu0 0
  %106 = vmatpush.bf16.msra.mxu0 %v98
  %107 = vmatpush.bf16.msra.mxu0 %v97
  %108 = vmatmul.bf16.gmra.mxu0 %v81
  %v109 = vpop.f32.mrf.mxu0
  %v110 = vadd.f32 %v99, %v109
  %v111 = vpop.f32.mrf.mxu0
  %v112 = vadd.f32 %v99, %v111
  %113 = vdwg.mxu0
  %v114 = vpack.c.bf16 %v37, %v36
  %v115 = vpack.c.bf16 %v67, %v66
  %v116 = vpack.c.bf16 %v69, %v68
  %v117 = vperm.slane %v52, 2
  %v119 = vsel %vm79, %v114, 0
  %121 = vmatpush.bf16.msra.mxu0 0
  %122 = vmatpush.bf16.msra.mxu0 0
  %123 = vmatpush.bf16.msra.mxu0 0
  %124 = vmatpush.bf16.msra.mxu0 0
  %125 = vmatpush.bf16.msra.mxu0 0
  %126 = vmatpush.bf16.msra.mxu0 0
  %127 = vmatpush.bf16.msra.mxu0 %v116
  %128 = vmatpush.bf16.msra.mxu0 %v115
  %129 = vmatmul.bf16.gmra.mxu0 %v119
  %v130 = vpop.f32.mrf.mxu0
  %v131 = vadd.f32 %v117, %v130
  %v132 = vpop.f32.mrf.mxu0
  %v133 = vadd.f32 %v117, %v132
  %134 = vdwg.mxu0
  %v135 = vpack.c.bf16 %v93, %v93
  %v136 = vpack.c.bf16 %v95, %v95
  %v137 = vpack.c.bf16 %v110, %v110
  %v138 = vpack.c.bf16 %v112, %v112
  %v139 = vpack.c.bf16 %v131, %v131
  %v140 = vpack.c.bf16 %v133, %v133
  %vm141 = vcmask 64512
  %v143 = vsel %vm141, %v135, 0
  %v146 = vsel %vm141, %v137, 0
  %148 = vmatpush.bf16.xpose.msra.mxu0 0
  %149 = vmatpush.bf16.xpose.msra.mxu0 0
  %150 = vmatpush.bf16.xpose.msra.mxu0 0
  %151 = vmatpush.bf16.xpose.msra.mxu0 0
  %152 = vmatpush.bf16.xpose.msra.mxu0 0
  %153 = vmatpush.bf16.xpose.msra.mxu0 0
  %154 = vmatpush.bf16.xpose.msra.mxu0 0
  %155 = vmatpush.bf16.xpose.msra.mxu0 %v146
  %156 = vmatmul.bf16.gmra.mxu0 %v143
  %v157 = vpop.f32.mrf.mxu0
  %v158 = vadd.f32 0.0, %v157
  %v159 = vpop.f32.mrf.mxu0
  %160 = vdwg.mxu0
  %v162 = vsel %vm141, %v136, 0
  %v165 = vsel %vm141, %v138, 0
  %167 = vmatpush.bf16.xpose.msra.mxu0 0
  %168 = vmatpush.bf16.xpose.msra.mxu0 0
  %169 = vmatpush.bf16.xpose.msra.mxu0 0
  %170 = vmatpush.bf16.xpose.msra.mxu0 0
  %171 = vmatpush.bf16.xpose.msra.mxu0 0
  %172 = vmatpush.bf16.xpose.msra.mxu0 0
  %173 = vmatpush.bf16.xpose.msra.mxu0 0
  %174 = vmatpush.bf16.xpose.msra.mxu0 %v165
  %175 = vmatmul.bf16.gmra.mxu0 %v162
  %v176 = vpop.f32.mrf.mxu0
  %v177 = vadd.f32 0.0, %v176
  %v178 = vpop.f32.mrf.mxu0
  %179 = vdwg.mxu0
  %v180 = vmul.f32 %v158, 0.35355338
  %v181 = vmul.f32 %v177, 0.35355338
  %v182 = vsel %vm141, %v180, -inf
  %183 = vmax.xlane.f32.xlu0 %v182
  %v184 = vpop.xlane.xlu0 %183
  %v185 = vsel %vm141, %v181, -inf
  %186 = vmax.xlane.f32.xlu0 %v185
  %v187 = vpop.xlane.xlu0 %186
  %v188 = vsub.f32 %v180, %v184
  %v189 = vsub.f32 %v181, %v187
  %v190 = vmul.f32 %v188, 1.442695
  %v191 = vpow.pop %v190
  %v192 = vmul.f32 %v189, 1.442695
  %v193 = vpow.pop %v192
  %v194 = vsel %vm141, %v191, 0.0
  %195 = vadd.xlane.f32.xlu0 %v194
  %v196 = vpop.xlane.xlu0 %195
  %v197 = vsel %vm141, %v193, 0.0
  %198 = vadd.xlane.f32.xlu0 %v197
  %v199 = vpop.xlane.xlu0 %198
  %v200 = vrcp.pop %v196
  %v201 = vrcp.pop %v199
  %v202 = vmul.f32 %v191, %v200
  %v203 = vmul.f32 %v193, %v201
  %v204 = vpack.c.bf16 %v202, %v202
  %v205 = vpack.c.bf16 %v203, %v203
  %v207 = vsel %vm141, %v204, 0
  %vm209 = vcmask 1043456
  %v211 = vsel %vm209, %v139, 0
  %213 = vmatpush.bf16.msra.mxu0 0
  %214 = vmatpush.bf16.msra.mxu0 0
  %215 = vmatpush.bf16.msra.mxu0 0
  %216 = vmatpush.bf16.msra.mxu0 0
  %217 = vmatpush.bf16.msra.mxu0 0
  %218 = vmatpush.bf16.msra.mxu0 0
  %219 = vmatpush.bf16.msra.mxu0 0
  %220 = vmatpush.bf16.msra.mxu0 %v211
  %221 = vmatmul.bf16.gmra.mxu0 %v207
  %v222 = vpop.f32.mrf.mxu0
  %v223 = vadd.f32 0.0, %v222
  %v224 = vpop.f32.mrf.mxu0
  %225 = vdwg.mxu0
  %v227 = vsel %vm141, %v205, 0
  %v230 = vsel %vm209, %v140, 0
  %232 = vmatpush.bf16.msra.mxu0 0
  %233 = vmatpush.bf16.msra.mxu0 0
  %234 = vmatpush.bf16.msra.mxu0 0
  %235 = vmatpush.bf16.msra.mxu0 0
  %236 = vmatpush.bf16.msra.mxu0 0
  %237 = vmatpush.bf16.msra.mxu0 0
  %238 = vmatpush.bf16.msra.mxu0 0
  %239 = vmatpush.bf16.msra.mxu0 %v230
  %240 = vmatmul.bf16.gmra.mxu0 %v227
  %v241 = vpop.f32.mrf.mxu0
  %v242 = vadd.f32 0.0, %v241
  %v243 = vpop.f32.mrf.mxu0
  %244 = vdwg.mxu0
  %v246 = vunpack.c.l.b16 %v135
  %v247 = vpack.c.b16 %v246, %v246
  %248 = vrot.lane.b32.xlu0 %v247, 120
  %v249 = vpop.permute.xlu0 %248
  %v251 = vunpack.c.l.b16 %v137
  %v252 = vpack.c.b16 %v251, %v251
  %253 = vrot.lane.b32.xlu0 %v252, 120
  %v254 = vpop.permute.xlu0 %253
  %v256 = vsel %vm141, %v249, 0
  %v259 = vsel %vm141, %v254, 0
  %261 = vmatpush.bf16.xpose.msra.mxu0 0
  %262 = vmatpush.bf16.xpose.msra.mxu0 0
  %263 = vmatpush.bf16.xpose.msra.mxu0 0
  %264 = vmatpush.bf16.xpose.msra.mxu0 0
  %265 = vmatpush.bf16.xpose.msra.mxu0 0
  %266 = vmatpush.bf16.xpose.msra.mxu0 0
  %267 = vmatpush.bf16.xpose.msra.mxu0 0
  %268 = vmatpush.bf16.xpose.msra.mxu0 %v259
  %269 = vmatmul.bf16.gmra.mxu0 %v256
  %v270 = vpop.f32.mrf.mxu0
  %v271 = vadd.f32 0.0, %v270
  %v272 = vpop.f32.mrf.mxu0
  %273 = vdwg.mxu0
  %v275 = vunpack.c.l.b16 %v136
  %v276 = vpack.c.b16 %v275, %v275
  %277 = vrot.lane.b32.xlu0 %v276, 120
  %v278 = vpop.permute.xlu0 %277
  %v280 = vunpack.c.l.b16 %v138
  %v281 = vpack.c.b16 %v280, %v280
  %282 = vrot.lane.b32.xlu0 %v281, 120
  %v283 = vpop.permute.xlu0 %282
  %v285 = vsel %vm141, %v278, 0
  %v288 = vsel %vm141, %v283, 0
  %290 = vmatpush.bf16.xpose.msra.mxu0 0
  %291 = vmatpush.bf16.xpose.msra.mxu0 0
  %292 = vmatpush.bf16.xpose.msra.mxu0 0
  %293 = vmatpush.bf16.xpose.msra.mxu0 0
  %294 = vmatpush.bf16.xpose.msra.mxu0 0
  %295 = vmatpush.bf16.xpose.msra.mxu0 0
  %296 = vmatpush.bf16.xpose.msra.mxu0 0
  %297 = vmatpush.bf16.xpose.msra.mxu0 %v288
  %298 = vmatmul.bf16.gmra.mxu0 %v285
  %v299 = vpop.f32.mrf.mxu0
  %v300 = vadd.f32 0.0, %v299
  %v301 = vpop.f32.mrf.mxu0
  %302 = vdwg.mxu0
  %v303 = vmul.f32 %v271, 0.35355338
  %v304 = vmul.f32 %v300, 0.35355338
  %v305 = vsel %vm141, %v303, -inf
  %306 = vmax.xlane.f32.xlu0 %v305
  %v307 = vpop.xlane.xlu0 %306
  %v308 = vsel %vm141, %v304, -inf
  %309 = vmax.xlane.f32.xlu0 %v308
  %v310 = vpop.xlane.xlu0 %309
  %v311 = vsub.f32 %v303, %v307
  %v312 = vsub.f32 %v304, %v310
  %v313 = vmul.f32 %v311, 1.442695
  %v314 = vpow.pop %v313
  %v315 = vmul.f32 %v312, 1.442695
  %v316 = vpow.pop %v315
  %v317 = vsel %vm141, %v314, 0.0
  %318 = vadd.xlane.f32.xlu0 %v317
  %v319 = vpop.xlane.xlu0 %318
  %v320 = vsel %vm141, %v316, 0.0
  %321 = vadd.xlane.f32.xlu0 %v320
  %v322 = vpop.xlane.xlu0 %321
  %v323 = vrcp.pop %v319
  %v324 = vrcp.pop %v322
  %v325 = vmul.f32 %v314, %v323
  %v326 = vmul.f32 %v316, %v324
  %v327 = vpack.c.bf16 %v325, %v325
  %v328 = vpack.c.bf16 %v326, %v326
  %v330 = vunpack.c.l.b16 %v139
  %v331 = vpack.c.b16 %v330, %v330
  %332 = vrot.lane.b32.xlu0 %v331, 120
  %v333 = vpop.permute.xlu0 %332
  %v335 = vsel %vm141, %v327, 0
  %v338 = vsel %vm209, %v333, 0
  %340 = vmatpush.bf16.msra.mxu0 0
  %341 = vmatpush.bf16.msra.mxu0 0
  %342 = vmatpush.bf16.msra.mxu0 0
  %343 = vmatpush.bf16.msra.mxu0 0
  %344 = vmatpush.bf16.msra.mxu0 0
  %345 = vmatpush.bf16.msra.mxu0 0
  %346 = vmatpush.bf16.msra.mxu0 0
  %347 = vmatpush.bf16.msra.mxu0 %v338
  %348 = vmatmul.bf16.gmra.mxu0 %v335
  %v349 = vpop.f32.mrf.mxu0
  %v350 = vadd.f32 0.0, %v349
  %v351 = vpop.f32.mrf.mxu0
  %352 = vdwg.mxu0
  %v354 = vunpack.c.l.b16 %v140
  %v355 = vpack.c.b16 %v354, %v354
  %356 = vrot.lane.b32.xlu0 %v355, 120
  %v357 = vpop.permute.xlu0 %356
  %v359 = vsel %vm141, %v328, 0
  %v362 = vsel %vm209, %v357, 0
  %364 = vmatpush.bf16.msra.mxu0 0
  %365 = vmatpush.bf16.msra.mxu0 0
  %366 = vmatpush.bf16.msra.mxu0 0
  %367 = vmatpush.bf16.msra.mxu0 0
  %368 = vmatpush.bf16.msra.mxu0 0
  %369 = vmatpush.bf16.msra.mxu0 0
  %370 = vmatpush.bf16.msra.mxu0 0
  %371 = vmatpush.bf16.msra.mxu0 %v362
  %372 = vmatmul.bf16.gmra.mxu0 %v359
  %v373 = vpop.f32.mrf.mxu0
  %v374 = vadd.f32 0.0, %v373
  %v375 = vpop.f32.mrf.mxu0
  %376 = vdwg.mxu0
  %377 = vrot.lane.b32.xlu0 %v247, 112
  %v378 = vpop.permute.xlu0 %377
  %379 = vrot.lane.b32.xlu0 %v252, 112
  %v380 = vpop.permute.xlu0 %379
  %v382 = vsel %vm141, %v378, 0
  %v385 = vsel %vm141, %v380, 0
  %387 = vmatpush.bf16.xpose.msra.mxu0 0
  %388 = vmatpush.bf16.xpose.msra.mxu0 0
  %389 = vmatpush.bf16.xpose.msra.mxu0 0
  %390 = vmatpush.bf16.xpose.msra.mxu0 0
  %391 = vmatpush.bf16.xpose.msra.mxu0 0
  %392 = vmatpush.bf16.xpose.msra.mxu0 0
  %393 = vmatpush.bf16.xpose.msra.mxu0 0
  %394 = vmatpush.bf16.xpose.msra.mxu0 %v385
  %395 = vmatmul.bf16.gmra.mxu0 %v382
  %v396 = vpop.f32.mrf.mxu0
  %v397 = vadd.f32 0.0, %v396
  %v398 = vpop.f32.mrf.mxu0
  %399 = vdwg.mxu0
  %400 = vrot.lane.b32.xlu0 %v276, 112
  %v401 = vpop.permute.xlu0 %400
  %402 = vrot.lane.b32.xlu0 %v281, 112
  %v403 = vpop.permute.xlu0 %402
  %v405 = vsel %vm141, %v401, 0
  %v408 = vsel %vm141, %v403, 0
  %410 = vmatpush.bf16.xpose.msra.mxu0 0
  %411 = vmatpush.bf16.xpose.msra.mxu0 0
  %412 = vmatpush.bf16.xpose.msra.mxu0 0
  %413 = vmatpush.bf16.xpose.msra.mxu0 0
  %414 = vmatpush.bf16.xpose.msra.mxu0 0
  %415 = vmatpush.bf16.xpose.msra.mxu0 0
  %416 = vmatpush.bf16.xpose.msra.mxu0 0
  %417 = vmatpush.bf16.xpose.msra.mxu0 %v408
  %418 = vmatmul.bf16.gmra.mxu0 %v405
  %v419 = vpop.f32.mrf.mxu0
  %v420 = vadd.f32 0.0, %v419
  %v421 = vpop.f32.mrf.mxu0
  %422 = vdwg.mxu0
  %v423 = vmul.f32 %v397, 0.35355338
  %v424 = vmul.f32 %v420, 0.35355338
  %v425 = vsel %vm141, %v423, -inf
  %426 = vmax.xlane.f32.xlu0 %v425
  %v427 = vpop.xlane.xlu0 %426
  %v428 = vsel %vm141, %v424, -inf
  %429 = vmax.xlane.f32.xlu0 %v428
  %v430 = vpop.xlane.xlu0 %429
  %v431 = vsub.f32 %v423, %v427
  %v432 = vsub.f32 %v424, %v430
  %v433 = vmul.f32 %v431, 1.442695
  %v434 = vpow.pop %v433
  %v435 = vmul.f32 %v432, 1.442695
  %v436 = vpow.pop %v435
  %v437 = vsel %vm141, %v434, 0.0
  %438 = vadd.xlane.f32.xlu0 %v437
  %v439 = vpop.xlane.xlu0 %438
  %v440 = vsel %vm141, %v436, 0.0
  %441 = vadd.xlane.f32.xlu0 %v440
  %v442 = vpop.xlane.xlu0 %441
  %v443 = vrcp.pop %v439
  %v444 = vrcp.pop %v442
  %v445 = vmul.f32 %v434, %v443
  %v446 = vmul.f32 %v436, %v444
  %v447 = vpack.c.bf16 %v445, %v445
  %v448 = vpack.c.bf16 %v446, %v446
  %449 = vrot.lane.b32.xlu0 %v331, 112
  %v450 = vpop.permute.xlu0 %449
  %v452 = vsel %vm141, %v447, 0
  %v455 = vsel %vm209, %v450, 0
  %457 = vmatpush.bf16.msra.mxu0 0
  %458 = vmatpush.bf16.msra.mxu0 0
  %459 = vmatpush.bf16.msra.mxu0 0
  %460 = vmatpush.bf16.msra.mxu0 0
  %461 = vmatpush.bf16.msra.mxu0 0
  %462 = vmatpush.bf16.msra.mxu0 0
  %463 = vmatpush.bf16.msra.mxu0 0
  %464 = vmatpush.bf16.msra.mxu0 %v455
  %465 = vmatmul.bf16.gmra.mxu0 %v452
  %v466 = vpop.f32.mrf.mxu0
  %v467 = vadd.f32 0.0, %v466
  %v468 = vpop.f32.mrf.mxu0
  %469 = vdwg.mxu0
  %470 = vrot.lane.b32.xlu0 %v355, 112
  %v471 = vpop.permute.xlu0 %470
  %v473 = vsel %vm141, %v448, 0
  %v476 = vsel %vm209, %v471, 0
  %478 = vmatpush.bf16.msra.mxu0 0
  %479 = vmatpush.bf16.msra.mxu0 0
  %480 = vmatpush.bf16.msra.mxu0 0
  %481 = vmatpush.bf16.msra.mxu0 0
  %482 = vmatpush.bf16.msra.mxu0 0
  %483 = vmatpush.bf16.msra.mxu0 0
  %484 = vmatpush.bf16.msra.mxu0 0
  %485 = vmatpush.bf16.msra.mxu0 %v476
  %486 = vmatmul.bf16.gmra.mxu0 %v473
  %v487 = vpop.f32.mrf.mxu0
  %v488 = vadd.f32 0.0, %v487
  %v489 = vpop.f32.mrf.mxu0
  %490 = vdwg.mxu0
  %491 = vrot.lane.b32.xlu0 %v247, 104
  %v492 = vpop.permute.xlu0 %491
  %493 = vrot.lane.b32.xlu0 %v252, 104
  %v494 = vpop.permute.xlu0 %493
  %v496 = vsel %vm141, %v492, 0
  %v499 = vsel %vm141, %v494, 0
  %501 = vmatpush.bf16.xpose.msra.mxu0 0
  %502 = vmatpush.bf16.xpose.msra.mxu0 0
  %503 = vmatpush.bf16.xpose.msra.mxu0 0
  %504 = vmatpush.bf16.xpose.msra.mxu0 0
  %505 = vmatpush.bf16.xpose.msra.mxu0 0
  %506 = vmatpush.bf16.xpose.msra.mxu0 0
  %507 = vmatpush.bf16.xpose.msra.mxu0 0
  %508 = vmatpush.bf16.xpose.msra.mxu0 %v499
  %509 = vmatmul.bf16.gmra.mxu0 %v496
  %v510 = vpop.f32.mrf.mxu0
  %v511 = vadd.f32 0.0, %v510
  %v512 = vpop.f32.mrf.mxu0
  %513 = vdwg.mxu0
  %514 = vrot.lane.b32.xlu0 %v276, 104
  %v515 = vpop.permute.xlu0 %514
  %516 = vrot.lane.b32.xlu0 %v281, 104
  %v517 = vpop.permute.xlu0 %516
  %v519 = vsel %vm141, %v515, 0
  %v522 = vsel %vm141, %v517, 0
  %524 = vmatpush.bf16.xpose.msra.mxu0 0
  %525 = vmatpush.bf16.xpose.msra.mxu0 0
  %526 = vmatpush.bf16.xpose.msra.mxu0 0
  %527 = vmatpush.bf16.xpose.msra.mxu0 0
  %528 = vmatpush.bf16.xpose.msra.mxu0 0
  %529 = vmatpush.bf16.xpose.msra.mxu0 0
  %530 = vmatpush.bf16.xpose.msra.mxu0 0
  %531 = vmatpush.bf16.xpose.msra.mxu0 %v522
  %532 = vmatmul.bf16.gmra.mxu0 %v519
  %v533 = vpop.f32.mrf.mxu0
  %v534 = vadd.f32 0.0, %v533
  %v535 = vpop.f32.mrf.mxu0
  %536 = vdwg.mxu0
  %v537 = vmul.f32 %v511, 0.35355338
  %v538 = vmul.f32 %v534, 0.35355338
  %v539 = vsel %vm141, %v537, -inf
  %540 = vmax.xlane.f32.xlu0 %v539
  %v541 = vpop.xlane.xlu0 %540
  %v542 = vsel %vm141, %v538, -inf
  %543 = vmax.xlane.f32.xlu0 %v542
  %v544 = vpop.xlane.xlu0 %543
  %v545 = vsub.f32 %v537, %v541
  %v546 = vsub.f32 %v538, %v544
  %v547 = vmul.f32 %v545, 1.442695
  %v548 = vpow.pop %v547
  %v549 = vmul.f32 %v546, 1.442695
  %v550 = vpow.pop %v549
  %v551 = vsel %vm141, %v548, 0.0
  %552 = vadd.xlane.f32.xlu0 %v551
  %v553 = vpop.xlane.xlu0 %552
  %v554 = vsel %vm141, %v550, 0.0
  %555 = vadd.xlane.f32.xlu0 %v554
  %v556 = vpop.xlane.xlu0 %555
  %v557 = vrcp.pop %v553
  %v558 = vrcp.pop %v556
  %v559 = vmul.f32 %v548, %v557
  %v560 = vmul.f32 %v550, %v558
  %v561 = vpack.c.bf16 %v559, %v559
  %v562 = vpack.c.bf16 %v560, %v560
  %563 = vrot.lane.b32.xlu0 %v331, 104
  %v564 = vpop.permute.xlu0 %563
  %v566 = vsel %vm141, %v561, 0
  %v569 = vsel %vm209, %v564, 0
  %571 = vmatpush.bf16.msra.mxu0 0
  %572 = vmatpush.bf16.msra.mxu0 0
  %573 = vmatpush.bf16.msra.mxu0 0
  %574 = vmatpush.bf16.msra.mxu0 0
  %575 = vmatpush.bf16.msra.mxu0 0
  %576 = vmatpush.bf16.msra.mxu0 0
  %577 = vmatpush.bf16.msra.mxu0 0
  %578 = vmatpush.bf16.msra.mxu0 %v569
  %579 = vmatmul.bf16.gmra.mxu0 %v566
  %v580 = vpop.f32.mrf.mxu0
  %v581 = vadd.f32 0.0, %v580
  %v582 = vpop.f32.mrf.mxu0
  %583 = vdwg.mxu0
  %584 = vrot.lane.b32.xlu0 %v355, 104
  %v585 = vpop.permute.xlu0 %584
  %v587 = vsel %vm141, %v562, 0
  %v590 = vsel %vm209, %v585, 0
  %592 = vmatpush.bf16.msra.mxu0 0
  %593 = vmatpush.bf16.msra.mxu0 0
  %594 = vmatpush.bf16.msra.mxu0 0
  %595 = vmatpush.bf16.msra.mxu0 0
  %596 = vmatpush.bf16.msra.mxu0 0
  %597 = vmatpush.bf16.msra.mxu0 0
  %598 = vmatpush.bf16.msra.mxu0 0
  %599 = vmatpush.bf16.msra.mxu0 %v590
  %600 = vmatmul.bf16.gmra.mxu0 %v587
  %v601 = vpop.f32.mrf.mxu0
  %v602 = vadd.f32 0.0, %v601
  %v603 = vpop.f32.mrf.mxu0
  %604 = vdwg.mxu0
  %607 = vrot.lane.b32.xlu0 %v350, 8
  %v608 = vpop.permute.xlu0 %607
  %609 = vrot.lane.b32.xlu0 %v374, 8
  %v610 = vpop.permute.xlu0 %609
  %615 = vrot.lane.b32.xlu0 %v467, 16
  %v616 = vpop.permute.xlu0 %615
  %617 = vrot.lane.b32.xlu0 %v488, 16
  %v618 = vpop.permute.xlu0 %617
  %623 = vrot.lane.b32.xlu0 %v581, 24
  %v624 = vpop.permute.xlu0 %623
  %625 = vrot.lane.b32.xlu0 %v602, 24
  %v626 = vpop.permute.xlu0 %625
  %v629 = vsel %vm141, %v223, %v608
  %v630 = vsel %vm141, %v242, %v610
  %vm631 = vcmask 130048
  %v632 = vsel %vm631, %v629, %v616
  %v633 = vsel %vm631, %v630, %v618
  %vm634 = vcmask 195584
  %v635 = vsel %vm634, %v632, %v624
  %v636 = vsel %vm634, %v633, %v626
  %v637 = vpack.c.bf16 %v636, %v635
  %v638 = vpack.c.bf16 %v72, %v71
  %v639 = vpack.c.bf16 %v74, %v73
  %v640 = vperm.slane %v52, 3
  %v642 = vsel %vm79, %v637, 0
  %644 = vmatpush.bf16.msra.mxu0 0
  %645 = vmatpush.bf16.msra.mxu0 0
  %646 = vmatpush.bf16.msra.mxu0 0
  %647 = vmatpush.bf16.msra.mxu0 0
  %648 = vmatpush.bf16.msra.mxu0 0
  %649 = vmatpush.bf16.msra.mxu0 0
  %650 = vmatpush.bf16.msra.mxu0 %v639
  %651 = vmatpush.bf16.msra.mxu0 %v638
  %652 = vmatmul.bf16.gmra.mxu0 %v642
  %v653 = vpop.f32.mrf.mxu0
  %v654 = vadd.f32 %v640, %v653
  %v655 = vpop.f32.mrf.mxu0
  %v656 = vadd.f32 %v640, %v655
  %657 = vdwg.mxu0
  %v658 = vadd.f32 %v36, %v654
  %v659 = vadd.f32 %v37, %v656
  %v660 = vsel %vm79, %v658, 0.0
  %661 = vadd.xlane.f32.xlu0 %v660
  %v662 = vpop.xlane.xlu0 %661
  %v663 = vsel %vm79, %v659, 0.0
  %664 = vadd.xlane.f32.xlu0 %v663
  %v665 = vpop.xlane.xlu0 %664
  %v666 = vrcp.pop 32.0
  %v667 = vmul.f32 32.0, %v666
  %v668 = vsub.f32 1.0, %v667
  %v669 = vmul.f32 %v666, %v668
  %v670 = vadd.f32 %v666, %v669
  %vm671 = vweird.f32 %v666
  %v672 = vsel %vm671, %v666, %v670
  %v673 = vmul.f32 %v662, %v672
  %v674 = vmul.f32 %v665, %v672
  %v675 = vsub.f32 %v658, %v673
  %v676 = vsub.f32 %v659, %v674
  %v677 = vmul.f32 %v675, %v675
  %v678 = vmul.f32 %v676, %v676
  %v679 = vsel %vm79, %v677, 0.0
  %680 = vadd.xlane.f32.xlu0 %v679
  %v681 = vpop.xlane.xlu0 %680
  %v682 = vsel %vm79, %v678, 0.0
  %683 = vadd.xlane.f32.xlu0 %v682
  %v684 = vpop.xlane.xlu0 %683
  %v685 = vmul.f32 %v681, %v672
  %v686 = vmul.f32 %v684, %v672
  %v687 = vadd.f32 %v685, 1e-05
  %v688 = vadd.f32 %v686, 1e-05
  %v689 = vrsqrt.pop %v687
  %v690 = vmul.f32 %v689, %v687
  %v691 = vmul.f32 %v690, %v689
  %v692 = vmul.f32 0.5, %v691
  %v693 = vsub.f32 1.5, %v692
  %v694 = vmul.f32 %v689, %v693
  %vm695 = vweird.f32 %v687
  %vm696 = vweird.f32 %v689
  %vm697 = vmor %vm695, %vm696
  %v698 = vsel %vm697, %v689, %v694
  %v699 = vrsqrt.pop %v688
  %v700 = vmul.f32 %v699, %v688
  %v701 = vmul.f32 %v700, %v699
  %v702 = vmul.f32 0.5, %v701
  %v703 = vsub.f32 1.5, %v702
  %v704 = vmul.f32 %v699, %v703
  %vm705 = vweird.f32 %v688
  %vm706 = vweird.f32 %v699
  %vm707 = vmor %vm705, %vm706
  %v708 = vsel %vm707, %v699, %v704
  %v709 = vmul.f32 %v675, %v698
  %v710 = vmul.f32 %v676, %v708
  %v711 = vperm.slane %v53, 1
  %v712 = vmul.f32 %v709, %v711
  %v713 = vmul.f32 %v710, %v711
  %v714 = vperm.slane %v53, 2
  %v715 = vadd.f32 %v712, %v714
  %v716 = vadd.f32 %v713, %v714
  %v717 = vadd.f32 %v715, %v38
  %v718 = vadd.f32 %v716, %v39
  %s719 = scalar_lea.vmem %s4, 128
  %v720 = vld [vmem:[%s719] sm:$0xff]
  %v721 = vld [vmem:[%s719 + $0x8] sm:$0xff]
  %v722 = vld [vmem:[%s719 + $0x10] sm:$0xff]
  %v723 = vld [vmem:[%s719 + $0x18] sm:$0xff]
  %s724 = scalar_lea.vmem %s4, 160
  %v725 = vld [vmem:[%s724] sm:$0xff]
  %v726 = vld [vmem:[%s724 + $0x8] sm:$0xff]
  %v727 = vld [vmem:[%s724 + $0x10] sm:$0xff]
  %v728 = vld [vmem:[%s724 + $0x18] sm:$0xff]
  %s729 = scalar_lea.vmem %s4, 192
  %v730 = vld [vmem:[%s729] sm:$0xff]
  %v731 = vld [vmem:[%s729 + $0x8] sm:$0xff]
  %v732 = vld [vmem:[%s729 + $0x10] sm:$0xff]
  %v733 = vld [vmem:[%s729 + $0x18] sm:$0xff]
  %s734 = scalar_lea.vmem %s4, 224
  %v735 = vld [vmem:[%s734] sm:$0xff]
  %v736 = vld [vmem:[%s734 + $0x8] sm:$0xff]
  %v737 = vld [vmem:[%s734 + $0x10] sm:$0xff]
  %v738 = vld [vmem:[%s734 + $0x18] sm:$0xff]
  %v739 = vpack.c.bf16 %v718, %v717
  %v740 = vpack.c.bf16 %v721, %v720
  %v741 = vpack.c.bf16 %v723, %v722
  %v742 = vperm.slane %v52, 4
  %v744 = vsel %vm79, %v739, 0
  %746 = vmatpush.bf16.msra.mxu0 0
  %747 = vmatpush.bf16.msra.mxu0 0
  %748 = vmatpush.bf16.msra.mxu0 0
  %749 = vmatpush.bf16.msra.mxu0 0
  %750 = vmatpush.bf16.msra.mxu0 0
  %751 = vmatpush.bf16.msra.mxu0 0
  %752 = vmatpush.bf16.msra.mxu0 %v741
  %753 = vmatpush.bf16.msra.mxu0 %v740
  %754 = vmatmul.bf16.gmra.mxu0 %v744
  %v755 = vpop.f32.mrf.mxu0
  %v756 = vadd.f32 %v742, %v755
  %v757 = vpop.f32.mrf.mxu0
  %v758 = vadd.f32 %v742, %v757
  %759 = vdwg.mxu0
  %v760 = vpack.c.bf16 %v49, %v48
  %v761 = vpack.c.bf16 %v51, %v50
  %v762 = vpack.c.bf16 %v726, %v725
  %v763 = vpack.c.bf16 %v728, %v727
  %v764 = vperm.slane %v52, 5
  %v766 = vsel %vm79, %v760, 0
  %v769 = vsel %vm79, %v761, 0
  %771 = vmatpush.bf16.msra.mxu0 0
  %772 = vmatpush.bf16.msra.mxu0 0
  %773 = vmatpush.bf16.msra.mxu0 0
  %774 = vmatpush.bf16.msra.mxu0 0
  %775 = vmatpush.bf16.msra.mxu0 0
  %776 = vmatpush.bf16.msra.mxu0 0
  %777 = vmatpush.bf16.msra.mxu0 %v763
  %778 = vmatpush.bf16.msra.mxu0 %v762
  %779 = vmatmul.bf16.gmra.mxu0 %v766
  %v780 = vpop.f32.mrf.mxu0
  %v781 = vadd.f32 %v764, %v780
  %v782 = vpop.f32.mrf.mxu0
  %v783 = vadd.f32 %v764, %v782
  %784 = vmatmul.bf16.gmra.mxu0 %v769
  %v785 = vpop.f32.mrf.mxu0
  %v786 = vadd.f32 %v764, %v785
  %v787 = vpop.f32.mrf.mxu0
  %v788 = vadd.f32 %v764, %v787
  %789 = vdwg.mxu0
  %v790 = vpack.c.bf16 %v41, %v40
  %v791 = vpack.c.bf16 %v43, %v42
  %v792 = vpack.c.bf16 %v731, %v730
  %v793 = vpack.c.bf16 %v733, %v732
  %v794 = vperm.slane %v52, 6
  %v796 = vsel %vm79, %v790, 0
  %v799 = vsel %vm79, %v791, 0
  %801 = vmatpush.bf16.msra.mxu0 0
  %802 = vmatpush.bf16.msra.mxu0 0
  %803 = vmatpush.bf16.msra.mxu0 0
  %804 = vmatpush.bf16.msra.mxu0 0
  %805 = vmatpush.bf16.msra.mxu0 0
  %806 = vmatpush.bf16.msra.mxu0 0
  %807 = vmatpush.bf16.msra.mxu0 %v793
  %808 = vmatpush.bf16.msra.mxu0 %v792
  %809 = vmatmul.bf16.gmra.mxu0 %v796
  %v810 = vpop.f32.mrf.mxu0
  %v811 = vadd.f32 %v794, %v810
  %v812 = vpop.f32.mrf.mxu0
  %v813 = vadd.f32 %v794, %v812
  %814 = vmatmul.bf16.gmra.mxu0 %v799
  %v815 = vpop.f32.mrf.mxu0
  %v816 = vadd.f32 %v794, %v815
  %v817 = vpop.f32.mrf.mxu0
  %v818 = vadd.f32 %v794, %v817
  %819 = vdwg.mxu0
  %v820 = vpack.c.bf16 %v756, %v756
  %v821 = vpack.c.bf16 %v758, %v758
  %v822 = vpack.c.bf16 %v781, %v781
  %v823 = vpack.c.bf16 %v783, %v783
  %v824 = vpack.c.bf16 %v786, %v786
  %v825 = vpack.c.bf16 %v788, %v788
  %v826 = vpack.c.bf16 %v811, %v811
  %v827 = vpack.c.bf16 %v813, %v813
  %v828 = vpack.c.bf16 %v816, %v816
  %v829 = vpack.c.bf16 %v818, %v818
  %v832 = vunpack.c.l.b16 %v822
  %v833 = vunpack.c.l.b16 %v823
  %v834 = vpack.c.b16 %v833, %v832
  %v836 = vsel %vm141, %v820, 0
  %v839 = vsel %vm141, %v834, 0
  %841 = vmatpush.bf16.xpose.msra.mxu0 0
  %842 = vmatpush.bf16.xpose.msra.mxu0 0
  %843 = vmatpush.bf16.xpose.msra.mxu0 0
  %844 = vmatpush.bf16.xpose.msra.mxu0 0
  %845 = vmatpush.bf16.xpose.msra.mxu0 0
  %846 = vmatpush.bf16.xpose.msra.mxu0 0
  %847 = vmatpush.bf16.xpose.msra.mxu0 0
  %848 = vmatpush.bf16.xpose.msra.mxu0 %v839
  %849 = vmatmul.bf16.gmra.mxu0 %v836
  %v850 = vpop.f32.mrf.mxu0
  %v851 = vadd.f32 0.0, %v850
  %v852 = vpop.f32.mrf.mxu0
  %853 = vdwg.mxu0
  %v856 = vunpack.c.l.b16 %v824
  %v857 = vunpack.c.l.b16 %v825
  %v858 = vpack.c.b16 %v857, %v856
  %v860 = vsel %vm141, %v821, 0
  %v863 = vsel %vm141, %v858, 0
  %865 = vmatpush.bf16.xpose.msra.mxu0 0
  %866 = vmatpush.bf16.xpose.msra.mxu0 0
  %867 = vmatpush.bf16.xpose.msra.mxu0 0
  %868 = vmatpush.bf16.xpose.msra.mxu0 0
  %869 = vmatpush.bf16.xpose.msra.mxu0 0
  %870 = vmatpush.bf16.xpose.msra.mxu0 0
  %871 = vmatpush.bf16.xpose.msra.mxu0 0
  %872 = vmatpush.bf16.xpose.msra.mxu0 %v863
  %873 = vmatmul.bf16.gmra.mxu0 %v860
  %v874 = vpop.f32.mrf.mxu0
  %v875 = vadd.f32 0.0, %v874
  %v876 = vpop.f32.mrf.mxu0
  %877 = vdwg.mxu0
  %v878 = vmul.f32 %v851, 0.35355338
  %v879 = vmul.f32 %v875, 0.35355338
  %v880 = vsel %vm631, %v878, -inf
  %881 = vmax.xlane.f32.xlu0 %v880
  %v882 = vpop.xlane.xlu0 %881
  %v883 = vsel %vm631, %v879, -inf
  %884 = vmax.xlane.f32.xlu0 %v883
  %v885 = vpop.xlane.xlu0 %884
  %v886 = vsub.f32 %v878, %v882
  %v887 = vsub.f32 %v879, %v885
  %v888 = vmul.f32 %v886, 1.442695
  %v889 = vpow.pop %v888
  %v890 = vmul.f32 %v887, 1.442695
  %v891 = vpow.pop %v890
  %v892 = vsel %vm631, %v889, 0.0
  %893 = vadd.xlane.f32.xlu0 %v892
  %v894 = vpop.xlane.xlu0 %893
  %v895 = vsel %vm631, %v891, 0.0
  %896 = vadd.xlane.f32.xlu0 %v895
  %v897 = vpop.xlane.xlu0 %896
  %v898 = vrcp.pop %v894
  %v899 = vrcp.pop %v897
  %v900 = vmul.f32 %v889, %v898
  %v901 = vmul.f32 %v891, %v899
  %v902 = vpack.c.bf16 %v900, %v900
  %v903 = vpack.c.bf16 %v901, %v901
  %v906 = vunpack.c.l.b16 %v826
  %v907 = vunpack.c.l.b16 %v827
  %v908 = vpack.c.b16 %v907, %v906
  %v911 = vsel %vm631, %v902, 0
  %913 = vmatpush.bf16.msra.mxu0 0
  %914 = vmatpush.bf16.msra.mxu0 0
  %915 = vmatpush.bf16.msra.mxu0 0
  %916 = vmatpush.bf16.msra.mxu0 0
  %917 = vmatpush.bf16.msra.mxu0 0
  %918 = vmatpush.bf16.msra.mxu0 0
  %919 = vmatpush.bf16.msra.mxu0 0
  %920 = vmatpush.bf16.msra.mxu0 %v908
  %921 = vmatmul.bf16.gmra.mxu0 %v911
  %v922 = vpop.f32.mrf.mxu0
  %v923 = vadd.f32 0.0, %v922
  %v924 = vpop.f32.mrf.mxu0
  %925 = vdwg.mxu0
  %v928 = vunpack.c.l.b16 %v828
  %v929 = vunpack.c.l.b16 %v829
  %v930 = vpack.c.b16 %v929, %v928
  %v933 = vsel %vm631, %v903, 0
  %935 = vmatpush.bf16.msra.mxu0 0
  %936 = vmatpush.bf16.msra.mxu0 0
  %937 = vmatpush.bf16.msra.mxu0 0
  %938 = vmatpush.bf16.msra.mxu0 0
  %939 = vmatpush.bf16.msra.mxu0 0
  %940 = vmatpush.bf16.msra.mxu0 0
  %941 = vmatpush.bf16.msra.mxu0 0
  %942 = vmatpush.bf16.msra.mxu0 %v930
  %943 = vmatmul.bf16.gmra.mxu0 %v933
  %v944 = vpop.f32.mrf.mxu0
  %v945 = vadd.f32 0.0, %v944
  %v946 = vpop.f32.mrf.mxu0
  %947 = vdwg.mxu0
  %v949 = vunpack.c.l.b16 %v820
  %v950 = vpack.c.b16 %v949, %v949
  %951 = vrot.lane.b32.xlu0 %v950, 120
  %v952 = vpop.permute.xlu0 %951
  %953 = vrot.lane.b32.xlu0 %v834, 120
  %v954 = vpop.permute.xlu0 %953
  %v956 = vsel %vm141, %v952, 0
  %v959 = vsel %vm141, %v954, 0
  %961 = vmatpush.bf16.xpose.msra.mxu0 0
  %962 = vmatpush.bf16.xpose.msra.mxu0 0
  %963 = vmatpush.bf16.xpose.msra.mxu0 0
  %964 = vmatpush.bf16.xpose.msra.mxu0 0
  %965 = vmatpush.bf16.xpose.msra.mxu0 0
  %966 = vmatpush.bf16.xpose.msra.mxu0 0
  %967 = vmatpush.bf16.xpose.msra.mxu0 0
  %968 = vmatpush.bf16.xpose.msra.mxu0 %v959
  %969 = vmatmul.bf16.gmra.mxu0 %v956
  %v970 = vpop.f32.mrf.mxu0
  %v971 = vadd.f32 0.0, %v970
  %v972 = vpop.f32.mrf.mxu0
  %973 = vdwg.mxu0
  %v975 = vunpack.c.l.b16 %v821
  %v976 = vpack.c.b16 %v975, %v975
  %977 = vrot.lane.b32.xlu0 %v976, 120
  %v978 = vpop.permute.xlu0 %977
  %979 = vrot.lane.b32.xlu0 %v858, 120
  %v980 = vpop.permute.xlu0 %979
  %v982 = vsel %vm141, %v978, 0
  %v985 = vsel %vm141, %v980, 0
  %987 = vmatpush.bf16.xpose.msra.mxu0 0
  %988 = vmatpush.bf16.xpose.msra.mxu0 0
  %989 = vmatpush.bf16.xpose.msra.mxu0 0
  %990 = vmatpush.bf16.xpose.msra.mxu0 0
  %991 = vmatpush.bf16.xpose.msra.mxu0 0
  %992 = vmatpush.bf16.xpose.msra.mxu0 0
  %993 = vmatpush.bf16.xpose.msra.mxu0 0
  %994 = vmatpush.bf16.xpose.msra.mxu0 %v985
  %995 = vmatmul.bf16.gmra.mxu0 %v982
  %v996 = vpop.f32.mrf.mxu0
  %v997 = vadd.f32 0.0, %v996
  %v998 = vpop.f32.mrf.mxu0
  %999 = vdwg.mxu0
  %v1000 = vmul.f32 %v971, 0.35355338
  %v1001 = vmul.f32 %v997, 0.35355338
  %v1002 = vsel %vm631, %v1000, -inf
  %1003 = vmax.xlane.f32.xlu0 %v1002
  %v1004 = vpop.xlane.xlu0 %1003
  %v1005 = vsel %vm631, %v1001, -inf
  %1006 = vmax.xlane.f32.xlu0 %v1005
  %v1007 = vpop.xlane.xlu0 %1006
  %v1008 = vsub.f32 %v1000, %v1004
  %v1009 = vsub.f32 %v1001, %v1007
  %v1010 = vmul.f32 %v1008, 1.442695
  %v1011 = vpow.pop %v1010
  %v1012 = vmul.f32 %v1009, 1.442695
  %v1013 = vpow.pop %v1012
  %v1014 = vsel %vm631, %v1011, 0.0
  %1015 = vadd.xlane.f32.xlu0 %v1014
  %v1016 = vpop.xlane.xlu0 %1015
  %v1017 = vsel %vm631, %v1013, 0.0
  %1018 = vadd.xlane.f32.xlu0 %v1017
  %v1019 = vpop.xlane.xlu0 %1018
  %v1020 = vrcp.pop %v1016
  %v1021 = vrcp.pop %v1019
  %v1022 = vmul.f32 %v1011, %v1020
  %v1023 = vmul.f32 %v1013, %v1021
  %v1024 = vpack.c.bf16 %v1022, %v1022
  %v1025 = vpack.c.bf16 %v1023, %v1023
  %1026 = vrot.lane.b32.xlu0 %v908, 120
  %v1027 = vpop.permute.xlu0 %1026
  %v1030 = vsel %vm631, %v1024, 0
  %1032 = vmatpush.bf16.msra.mxu0 0
  %1033 = vmatpush.bf16.msra.mxu0 0
  %1034 = vmatpush.bf16.msra.mxu0 0
  %1035 = vmatpush.bf16.msra.mxu0 0
  %1036 = vmatpush.bf16.msra.mxu0 0
  %1037 = vmatpush.bf16.msra.mxu0 0
  %1038 = vmatpush.bf16.msra.mxu0 0
  %1039 = vmatpush.bf16.msra.mxu0 %v1027
  %1040 = vmatmul.bf16.gmra.mxu0 %v1030
  %v1041 = vpop.f32.mrf.mxu0
  %v1042 = vadd.f32 0.0, %v1041
  %v1043 = vpop.f32.mrf.mxu0
  %1044 = vdwg.mxu0
  %1045 = vrot.lane.b32.xlu0 %v930, 120
  %v1046 = vpop.permute.xlu0 %1045
  %v1049 = vsel %vm631, %v1025, 0
  %1051 = vmatpush.bf16.msra.mxu0 0
  %1052 = vmatpush.bf16.msra.mxu0 0
  %1053 = vmatpush.bf16.msra.mxu0 0
  %1054 = vmatpush.bf16.msra.mxu0 0
  %1055 = vmatpush.bf16.msra.mxu0 0
  %1056 = vmatpush.bf16.msra.mxu0 0
  %1057 = vmatpush.bf16.msra.mxu0 0
  %1058 = vmatpush.bf16.msra.mxu0 %v1046
  %1059 = vmatmul.bf16.gmra.mxu0 %v1049
  %v1060 = vpop.f32.mrf.mxu0
  %v1061 = vadd.f32 0.0, %v1060
  %v1062 = vpop.f32.mrf.mxu0
  %1063 = vdwg.mxu0
  %1064 = vrot.lane.b32.xlu0 %v950, 112
  %v1065 = vpop.permute.xlu0 %1064
  %1066 = vrot.lane.b32.xlu0 %v834, 112
  %v1067 = vpop.permute.xlu0 %1066
  %v1069 = vsel %vm141, %v1065, 0
  %v1072 = vsel %vm141, %v1067, 0
  %1074 = vmatpush.bf16.xpose.msra.mxu0 0
  %1075 = vmatpush.bf16.xpose.msra.mxu0 0
  %1076 = vmatpush.bf16.xpose.msra.mxu0 0
  %1077 = vmatpush.bf16.xpose.msra.mxu0 0
  %1078 = vmatpush.bf16.xpose.msra.mxu0 0
  %1079 = vmatpush.bf16.xpose.msra.mxu0 0
  %1080 = vmatpush.bf16.xpose.msra.mxu0 0
  %1081 = vmatpush.bf16.xpose.msra.mxu0 %v1072
  %1082 = vmatmul.bf16.gmra.mxu0 %v1069
  %v1083 = vpop.f32.mrf.mxu0
  %v1084 = vadd.f32 0.0, %v1083
  %v1085 = vpop.f32.mrf.mxu0
  %1086 = vdwg.mxu0
  %1087 = vrot.lane.b32.xlu0 %v976, 112
  %v1088 = vpop.permute.xlu0 %1087
  %1089 = vrot.lane.b32.xlu0 %v858, 112
  %v1090 = vpop.permute.xlu0 %1089
  %v1092 = vsel %vm141, %v1088, 0
  %v1095 = vsel %vm141, %v1090, 0
  %1097 = vmatpush.bf16.xpose.msra.mxu0 0
  %1098 = vmatpush.bf16.xpose.msra.mxu0 0
  %1099 = vmatpush.bf16.xpose.msra.mxu0 0
  %1100 = vmatpush.bf16.xpose.msra.mxu0 0
  %1101 = vmatpush.bf16.xpose.msra.mxu0 0
  %1102 = vmatpush.bf16.xpose.msra.mxu0 0
  %1103 = vmatpush.bf16.xpose.msra.mxu0 0
  %1104 = vmatpush.bf16.xpose.msra.mxu0 %v1095
  %1105 = vmatmul.bf16.gmra.mxu0 %v1092
  %v1106 = vpop.f32.mrf.mxu0
  %v1107 = vadd.f32 0.0, %v1106
  %v1108 = vpop.f32.mrf.mxu0
  %1109 = vdwg.mxu0
  %v1110 = vmul.f32 %v1084, 0.35355338
  %v1111 = vmul.f32 %v1107, 0.35355338
  %v1112 = vsel %vm631, %v1110, -inf
  %1113 = vmax.xlane.f32.xlu0 %v1112
  %v1114 = vpop.xlane.xlu0 %1113
  %v1115 = vsel %vm631, %v1111, -inf
  %1116 = vmax.xlane.f32.xlu0 %v1115
  %v1117 = vpop.xlane.xlu0 %1116
  %v1118 = vsub.f32 %v1110, %v1114
  %v1119 = vsub.f32 %v1111, %v1117
  %v1120 = vmul.f32 %v1118, 1.442695
  %v1121 = vpow.pop %v1120
  %v1122 = vmul.f32 %v1119, 1.442695
  %v1123 = vpow.pop %v1122
  %v1124 = vsel %vm631, %v1121, 0.0
  %1125 = vadd.xlane.f32.xlu0 %v1124
  %v1126 = vpop.xlane.xlu0 %1125
  %v1127 = vsel %vm631, %v1123, 0.0
  %1128 = vadd.xlane.f32.xlu0 %v1127
  %v1129 = vpop.xlane.xlu0 %1128
  %v1130 = vrcp.pop %v1126
  %v1131 = vrcp.pop %v1129
  %v1132 = vmul.f32 %v1121, %v1130
  %v1133 = vmul.f32 %v1123, %v1131
  %v1134 = vpack.c.bf16 %v1132, %v1132
  %v1135 = vpack.c.bf16 %v1133, %v1133
  %1136 = vrot.lane.b32.xlu0 %v908, 112
  %v1137 = vpop.permute.xlu0 %1136
  %v1140 = vsel %vm631, %v1134, 0
  %1142 = vmatpush.bf16.msra.mxu0 0
  %1143 = vmatpush.bf16.msra.mxu0 0
  %1144 = vmatpush.bf16.msra.mxu0 0
  %1145 = vmatpush.bf16.msra.mxu0 0
  %1146 = vmatpush.bf16.msra.mxu0 0
  %1147 = vmatpush.bf16.msra.mxu0 0
  %1148 = vmatpush.bf16.msra.mxu0 0
  %1149 = vmatpush.bf16.msra.mxu0 %v1137
  %1150 = vmatmul.bf16.gmra.mxu0 %v1140
  %v1151 = vpop.f32.mrf.mxu0
  %v1152 = vadd.f32 0.0, %v1151
  %v1153 = vpop.f32.mrf.mxu0
  %1154 = vdwg.mxu0
  %1155 = vrot.lane.b32.xlu0 %v930, 112
  %v1156 = vpop.permute.xlu0 %1155
  %v1159 = vsel %vm631, %v1135, 0
  %1161 = vmatpush.bf16.msra.mxu0 0
  %1162 = vmatpush.bf16.msra.mxu0 0
  %1163 = vmatpush.bf16.msra.mxu0 0
  %1164 = vmatpush.bf16.msra.mxu0 0
  %1165 = vmatpush.bf16.msra.mxu0 0
  %1166 = vmatpush.bf16.msra.mxu0 0
  %1167 = vmatpush.bf16.msra.mxu0 0
  %1168 = vmatpush.bf16.msra.mxu0 %v1156
  %1169 = vmatmul.bf16.gmra.mxu0 %v1159
  %v1170 = vpop.f32.mrf.mxu0
  %v1171 = vadd.f32 0.0, %v1170
  %v1172 = vpop.f32.mrf.mxu0
  %1173 = vdwg.mxu0
  %1174 = vrot.lane.b32.xlu0 %v950, 104
  %v1175 = vpop.permute.xlu0 %1174
  %1176 = vrot.lane.b32.xlu0 %v834, 104
  %v1177 = vpop.permute.xlu0 %1176
  %v1179 = vsel %vm141, %v1175, 0
  %v1182 = vsel %vm141, %v1177, 0
  %1184 = vmatpush.bf16.xpose.msra.mxu0 0
  %1185 = vmatpush.bf16.xpose.msra.mxu0 0
  %1186 = vmatpush.bf16.xpose.msra.mxu0 0
  %1187 = vmatpush.bf16.xpose.msra.mxu0 0
  %1188 = vmatpush.bf16.xpose.msra.mxu0 0
  %1189 = vmatpush.bf16.xpose.msra.mxu0 0
  %1190 = vmatpush.bf16.xpose.msra.mxu0 0
  %1191 = vmatpush.bf16.xpose.msra.mxu0 %v1182
  %1192 = vmatmul.bf16.gmra.mxu0 %v1179
  %v1193 = vpop.f32.mrf.mxu0
  %v1194 = vadd.f32 0.0, %v1193
  %v1195 = vpop.f32.mrf.mxu0
  %1196 = vdwg.mxu0
  %1197 = vrot.lane.b32.xlu0 %v976, 104
  %v1198 = vpop.permute.xlu0 %1197
  %1199 = vrot.lane.b32.xlu0 %v858, 104
  %v1200 = vpop.permute.xlu0 %1199
  %v1202 = vsel %vm141, %v1198, 0
  %v1205 = vsel %vm141, %v1200, 0
  %1207 = vmatpush.bf16.xpose.msra.mxu0 0
  %1208 = vmatpush.bf16.xpose.msra.mxu0 0
  %1209 = vmatpush.bf16.xpose.msra.mxu0 0
  %1210 = vmatpush.bf16.xpose.msra.mxu0 0
  %1211 = vmatpush.bf16.xpose.msra.mxu0 0
  %1212 = vmatpush.bf16.xpose.msra.mxu0 0
  %1213 = vmatpush.bf16.xpose.msra.mxu0 0
  %1214 = vmatpush.bf16.xpose.msra.mxu0 %v1205
  %1215 = vmatmul.bf16.gmra.mxu0 %v1202
  %v1216 = vpop.f32.mrf.mxu0
  %v1217 = vadd.f32 0.0, %v1216
  %v1218 = vpop.f32.mrf.mxu0
  %1219 = vdwg.mxu0
  %v1220 = vmul.f32 %v1194, 0.35355338
  %v1221 = vmul.f32 %v1217, 0.35355338
  %v1222 = vsel %vm631, %v1220, -inf
  %1223 = vmax.xlane.f32.xlu0 %v1222
  %v1224 = vpop.xlane.xlu0 %1223
  %v1225 = vsel %vm631, %v1221, -inf
  %1226 = vmax.xlane.f32.xlu0 %v1225
  %v1227 = vpop.xlane.xlu0 %1226
  %v1228 = vsub.f32 %v1220, %v1224
  %v1229 = vsub.f32 %v1221, %v1227
  %v1230 = vmul.f32 %v1228, 1.442695
  %v1231 = vpow.pop %v1230
  %v1232 = vmul.f32 %v1229, 1.442695
  %v1233 = vpow.pop %v1232
  %v1234 = vsel %vm631, %v1231, 0.0
  %1235 = vadd.xlane.f32.xlu0 %v1234
  %v1236 = vpop.xlane.xlu0 %1235
  %v1237 = vsel %vm631, %v1233, 0.0
  %1238 = vadd.xlane.f32.xlu0 %v1237
  %v1239 = vpop.xlane.xlu0 %1238
  %v1240 = vrcp.pop %v1236
  %v1241 = vrcp.pop %v1239
  %v1242 = vmul.f32 %v1231, %v1240
  %v1243 = vmul.f32 %v1233, %v1241
  %v1244 = vpack.c.bf16 %v1242, %v1242
  %v1245 = vpack.c.bf16 %v1243, %v1243
  %1246 = vrot.lane.b32.xlu0 %v908, 104
  %v1247 = vpop.permute.xlu0 %1246
  %v1250 = vsel %vm631, %v1244, 0
  %1252 = vmatpush.bf16.msra.mxu0 0
  %1253 = vmatpush.bf16.msra.mxu0 0
  %1254 = vmatpush.bf16.msra.mxu0 0
  %1255 = vmatpush.bf16.msra.mxu0 0
  %1256 = vmatpush.bf16.msra.mxu0 0
  %1257 = vmatpush.bf16.msra.mxu0 0
  %1258 = vmatpush.bf16.msra.mxu0 0
  %1259 = vmatpush.bf16.msra.mxu0 %v1247
  %1260 = vmatmul.bf16.gmra.mxu0 %v1250
  %v1261 = vpop.f32.mrf.mxu0
  %v1262 = vadd.f32 0.0, %v1261
  %v1263 = vpop.f32.mrf.mxu0
  %1264 = vdwg.mxu0
  %1265 = vrot.lane.b32.xlu0 %v930, 104
  %v1266 = vpop.permute.xlu0 %1265
  %v1269 = vsel %vm631, %v1245, 0
  %1271 = vmatpush.bf16.msra.mxu0 0
  %1272 = vmatpush.bf16.msra.mxu0 0
  %1273 = vmatpush.bf16.msra.mxu0 0
  %1274 = vmatpush.bf16.msra.mxu0 0
  %1275 = vmatpush.bf16.msra.mxu0 0
  %1276 = vmatpush.bf16.msra.mxu0 0
  %1277 = vmatpush.bf16.msra.mxu0 0
  %1278 = vmatpush.bf16.msra.mxu0 %v1266
  %1279 = vmatmul.bf16.gmra.mxu0 %v1269
  %v1280 = vpop.f32.mrf.mxu0
  %v1281 = vadd.f32 0.0, %v1280
  %v1282 = vpop.f32.mrf.mxu0
  %1283 = vdwg.mxu0
  %1286 = vrot.lane.b32.xlu0 %v1042, 8
  %v1287 = vpop.permute.xlu0 %1286
  %1288 = vrot.lane.b32.xlu0 %v1061, 8
  %v1289 = vpop.permute.xlu0 %1288
  %1294 = vrot.lane.b32.xlu0 %v1152, 16
  %v1295 = vpop.permute.xlu0 %1294
  %1296 = vrot.lane.b32.xlu0 %v1171, 16
  %v1297 = vpop.permute.xlu0 %1296
  %1302 = vrot.lane.b32.xlu0 %v1262, 24
  %v1303 = vpop.permute.xlu0 %1302
  %1304 = vrot.lane.b32.xlu0 %v1281, 24
  %v1305 = vpop.permute.xlu0 %1304
  %v1308 = vsel %vm141, %v923, %v1287
  %v1309 = vsel %vm141, %v945, %v1289
  %v1310 = vsel %vm631, %v1308, %v1295
  %v1311 = vsel %vm631, %v1309, %v1297
  %v1312 = vsel %vm634, %v1310, %v1303
  %v1313 = vsel %vm634, %v1311, %v1305
  %v1314 = vpack.c.bf16 %v1313, %v1312
  %v1315 = vpack.c.bf16 %v736, %v735
  %v1316 = vpack.c.bf16 %v738, %v737
  %v1317 = vperm.slane %v52, 7
  %v1319 = vsel %vm79, %v1314, 0
  %1321 = vmatpush.bf16.msra.mxu0 0
  %1322 = vmatpush.bf16.msra.mxu0 0
  %1323 = vmatpush.bf16.msra.mxu0 0
  %1324 = vmatpush.bf16.msra.mxu0 0
  %1325 = vmatpush.bf16.msra.mxu0 0
  %1326 = vmatpush.bf16.msra.mxu0 0
  %1327 = vmatpush.bf16.msra.mxu0 %v1316
  %1328 = vmatpush.bf16.msra.mxu0 %v1315
  %1329 = vmatmul.bf16.gmra.mxu0 %v1319
  %v1330 = vpop.f32.mrf.mxu0
  %v1331 = vadd.f32 %v1317, %v1330
  %v1332 = vpop.f32.mrf.mxu0
  %v1333 = vadd.f32 %v1317, %v1332
  %1334 = vdwg.mxu0
  %v1335 = vadd.f32 %v715, %v1331
  %v1336 = vadd.f32 %v716, %v1333
  %v1337 = vsel %vm79, %v1335, 0.0
  %1338 = vadd.xlane.f32.xlu0 %v1337
  %v1339 = vpop.xlane.xlu0 %1338
  %v1340 = vsel %vm79, %v1336, 0.0
  %1341 = vadd.xlane.f32.xlu0 %v1340
  %v1342 = vpop.xlane.xlu0 %1341
  %v1343 = vmul.f32 %v1339, %v672
  %v1344 = vmul.f32 %v1342, %v672
  %v1345 = vsub.f32 %v1335, %v1343
  %v1346 = vsub.f32 %v1336, %v1344
  %v1347 = vmul.f32 %v1345, %v1345
  %v1348 = vmul.f32 %v1346, %v1346
  %v1349 = vsel %vm79, %v1347, 0.0
  %1350 = vadd.xlane.f32.xlu0 %v1349
  %v1351 = vpop.xlane.xlu0 %1350
  %v1352 = vsel %vm79, %v1348, 0.0
  %1353 = vadd.xlane.f32.xlu0 %v1352
  %v1354 = vpop.xlane.xlu0 %1353
  %v1355 = vmul.f32 %v1351, %v672
  %v1356 = vmul.f32 %v1354, %v672
  %v1357 = vadd.f32 %v1355, 1e-05
  %v1358 = vadd.f32 %v1356, 1e-05
  %v1359 = vrsqrt.pop %v1357
  %v1360 = vmul.f32 %v1359, %v1357
  %v1361 = vmul.f32 %v1360, %v1359
  %v1362 = vmul.f32 0.5, %v1361
  %v1363 = vsub.f32 1.5, %v1362
  %v1364 = vmul.f32 %v1359, %v1363
  %vm1365 = vweird.f32 %v1357
  %vm1366 = vweird.f32 %v1359
  %vm1367 = vmor %vm1365, %vm1366
  %v1368 = vsel %vm1367, %v1359, %v1364
  %v1369 = vrsqrt.pop %v1358
  %v1370 = vmul.f32 %v1369, %v1358
  %v1371 = vmul.f32 %v1370, %v1369
  %v1372 = vmul.f32 0.5, %v1371
  %v1373 = vsub.f32 1.5, %v1372
  %v1374 = vmul.f32 %v1369, %v1373
  %vm1375 = vweird.f32 %v1358
  %vm1376 = vweird.f32 %v1369
  %vm1377 = vmor %vm1375, %vm1376
  %v1378 = vsel %vm1377, %v1369, %v1374
  %v1379 = vmul.f32 %v1345, %v1368
  %v1380 = vmul.f32 %v1346, %v1378
  %v1381 = vperm.slane %v53, 3
  %v1382 = vmul.f32 %v1379, %v1381
  %v1383 = vmul.f32 %v1380, %v1381
  %v1384 = vperm.slane %v53, 4
  %v1385 = vadd.f32 %v1382, %v1384
  %v1386 = vadd.f32 %v1383, %v1384
  %v1387 = vld [vmem:[%s5] sm:$0xff]
  %v1388 = vld [vmem:[%s5 + $0x8] sm:$0xff]
  %v1389 = vld [vmem:[%s5 + $0x10] sm:$0xff]
  %v1390 = vld [vmem:[%s5 + $0x18] sm:$0xff]
  %v1391 = vpack.c.bf16 %v1386, %v1385
  %v1392 = vpack.c.bf16 %v1388, %v1387
  %v1393 = vpack.c.bf16 %v1390, %v1389
  %v1394 = vld [vmem:[%s8] sm:$0x1]
  %v1396 = vperm.slane %v1394, 0
  %v1399 = vsel %vm79, %v1391, 0
  %1401 = vmatpush.bf16.msra.mxu0 0
  %1402 = vmatpush.bf16.msra.mxu0 0
  %1403 = vmatpush.bf16.msra.mxu0 0
  %1404 = vmatpush.bf16.msra.mxu0 0
  %1405 = vmatpush.bf16.msra.mxu0 0
  %1406 = vmatpush.bf16.msra.mxu0 0
  %1407 = vmatpush.bf16.msra.mxu0 %v1393
  %1408 = vmatpush.bf16.msra.mxu0 %v1392
  %1409 = vmatmul.bf16.gmra.mxu0 %v1399
  %v1410 = vpop.f32.mrf.mxu0
  %v1411 = vadd.f32 %v1396, %v1410
  %v1412 = vpop.f32.mrf.mxu0
  %v1413 = vadd.f32 %v1396, %v1412
  %1414 = vdwg.mxu0
  %v1415 = vmax.f32 %v1411, 0.0
  %v1416 = vmax.f32 %v1413, 0.0
  %v1417 = vld [vmem:[%s6] sm:$0xff]
  %v1418 = vld [vmem:[%s6 + $0x8] sm:$0xff]
  %v1419 = vld [vmem:[%s6 + $0x10] sm:$0xff]
  %v1420 = vld [vmem:[%s6 + $0x18] sm:$0xff]
  %v1421 = vld [vmem:[%s6 + $0x20] sm:$0xff]
  %v1422 = vld [vmem:[%s6 + $0x28] sm:$0xff]
  %v1423 = vld [vmem:[%s6 + $0x30] sm:$0xff]
  %v1424 = vld [vmem:[%s6 + $0x38] sm:$0xff]
  %v1425 = vpack.c.bf16 %v1416, %v1415
  %v1426 = vpack.c.bf16 %v1418, %v1417
  %v1427 = vpack.c.bf16 %v1420, %v1419
  %v1428 = vpack.c.bf16 %v1422, %v1421
  %v1429 = vpack.c.bf16 %v1424, %v1423
  %v1430 = vperm.slane %v53, 0
  %vm1431 = vcmask 523264
  %v1433 = vsel %vm1431, %v1425, 0
  %1435 = vmatpush.bf16.msra.mxu0 0
  %1436 = vmatpush.bf16.msra.mxu0 0
  %1437 = vmatpush.bf16.msra.mxu0 0
  %1438 = vmatpush.bf16.msra.mxu0 0
  %1439 = vmatpush.bf16.msra.mxu0 %v1429
  %1440 = vmatpush.bf16.msra.mxu0 %v1428
  %1441 = vmatpush.bf16.msra.mxu0 %v1427
  %1442 = vmatpush.bf16.msra.mxu0 %v1426
  %1443 = vmatmul.bf16.gmra.mxu0 %v1433
  %v1444 = vpop.f32.mrf.mxu0
  %v1445 = vadd.f32 %v1430, %v1444
  %v1446 = vpop.f32.mrf.mxu0
  %v1447 = vadd.f32 %v1430, %v1446
  %1448 = vdwg.mxu0
  %v1449 = vadd.f32 %v1385, %v1445
  %v1450 = vadd.f32 %v1386, %v1447
  %v1451 = vsel %vm79, %v1449, 0.0
  %1452 = vadd.xlane.f32.xlu0 %v1451
  %v1453 = vpop.xlane.xlu0 %1452
  %v1454 = vsel %vm79, %v1450, 0.0
  %1455 = vadd.xlane.f32.xlu0 %v1454
  %v1456 = vpop.xlane.xlu0 %1455
  %v1457 = vmul.f32 %v1453, %v672
  %v1458 = vmul.f32 %v1456, %v672
  %v1459 = vsub.f32 %v1449, %v1457
  %v1460 = vsub.f32 %v1450, %v1458
  %v1461 = vmul.f32 %v1459, %v1459
  %v1462 = vmul.f32 %v1460, %v1460
  %v1463 = vsel %vm79, %v1461, 0.0
  %1464 = vadd.xlane.f32.xlu0 %v1463
  %v1465 = vpop.xlane.xlu0 %1464
  %v1466 = vsel %vm79, %v1462, 0.0
  %1467 = vadd.xlane.f32.xlu0 %v1466
  %v1468 = vpop.xlane.xlu0 %1467
  %v1469 = vmul.f32 %v1465, %v672
  %v1470 = vmul.f32 %v1468, %v672
  %v1471 = vadd.f32 %v1469, 1e-05
  %v1472 = vadd.f32 %v1470, 1e-05
  %v1473 = vrsqrt.pop %v1471
  %v1474 = vmul.f32 %v1473, %v1471
  %v1475 = vmul.f32 %v1474, %v1473
  %v1476 = vmul.f32 0.5, %v1475
  %v1477 = vsub.f32 1.5, %v1476
  %v1478 = vmul.f32 %v1473, %v1477
  %vm1479 = vweird.f32 %v1471
  %vm1480 = vweird.f32 %v1473
  %vm1481 = vmor %vm1479, %vm1480
  %v1482 = vsel %vm1481, %v1473, %v1478
  %v1483 = vrsqrt.pop %v1472
  %v1484 = vmul.f32 %v1483, %v1472
  %v1485 = vmul.f32 %v1484, %v1483
  %v1486 = vmul.f32 0.5, %v1485
  %v1487 = vsub.f32 1.5, %v1486
  %v1488 = vmul.f32 %v1483, %v1487
  %vm1489 = vweird.f32 %v1472
  %vm1490 = vweird.f32 %v1483
  %vm1491 = vmor %vm1489, %vm1490
  %v1492 = vsel %vm1491, %v1483, %v1488
  %v1493 = vmul.f32 %v1459, %v1482
  %v1494 = vmul.f32 %v1460, %v1492
  %v1495 = vperm.slane %v53, 5
  %v1496 = vmul.f32 %v1493, %v1495
  %v1497 = vmul.f32 %v1494, %v1495
  %v1498 = vperm.slane %v53, 6
  %v1499 = vadd.f32 %v1496, %v1498
  %v1500 = vadd.f32 %v1497, %v1498
  %s1501 = scalar_lea.vmem %s7, 16
  %v1502 = vld [vmem:[%s1501] sm:$0xff]
  %v1503 = vld [vmem:[%s1501 + $0x8] sm:$0xff]
  %v1504 = vadd.f32 %v1499, %v38
  %v1505 = vadd.f32 %v1500, %v39
  %s1506 = scalar_lea.vmem %s4, 256
  %v1507 = vld [vmem:[%s1506] sm:$0xff]
  %v1508 = vld [vmem:[%s1506 + $0x8] sm:$0xff]
  %v1509 = vld [vmem:[%s1506 + $0x10] sm:$0xff]
  %v1510 = vld [vmem:[%s1506 + $0x18] sm:$0xff]
  %s1511 = scalar_lea.vmem %s4, 288
  %v1512 = vld [vmem:[%s1511] sm:$0xff]
  %v1513 = vld [vmem:[%s1511 + $0x8] sm:$0xff]
  %v1514 = vld [vmem:[%s1511 + $0x10] sm:$0xff]
  %v1515 = vld [vmem:[%s1511 + $0x18] sm:$0xff]
  %s1516 = scalar_lea.vmem %s4, 320
  %v1517 = vld [vmem:[%s1516] sm:$0xff]
  %v1518 = vld [vmem:[%s1516 + $0x8] sm:$0xff]
  %v1519 = vld [vmem:[%s1516 + $0x10] sm:$0xff]
  %v1520 = vld [vmem:[%s1516 + $0x18] sm:$0xff]
  %s1521 = scalar_lea.vmem %s4, 352
  %v1522 = vld [vmem:[%s1521] sm:$0xff]
  %v1523 = vld [vmem:[%s1521 + $0x8] sm:$0xff]
  %v1524 = vld [vmem:[%s1521 + $0x10] sm:$0xff]
  %v1525 = vld [vmem:[%s1521 + $0x18] sm:$0xff]
  %v1526 = vpack.c.bf16 %v1505, %v1504
  %v1527 = vpack.c.bf16 %v1508, %v1507
  %v1528 = vpack.c.bf16 %v1510, %v1509
  %v1529 = vperm.slane %v1502, 0
  %v1531 = vsel %vm79, %v1526, 0
  %1533 = vmatpush.bf16.msra.mxu0 0
  %1534 = vmatpush.bf16.msra.mxu0 0
  %1535 = vmatpush.bf16.msra.mxu0 0
  %1536 = vmatpush.bf16.msra.mxu0 0
  %1537 = vmatpush.bf16.msra.mxu0 0
  %1538 = vmatpush.bf16.msra.mxu0 0
  %1539 = vmatpush.bf16.msra.mxu0 %v1528
  %1540 = vmatpush.bf16.msra.mxu0 %v1527
  %1541 = vmatmul.bf16.gmra.mxu0 %v1531
  %v1542 = vpop.f32.mrf.mxu0
  %v1543 = vadd.f32 %v1529, %v1542
  %v1544 = vpop.f32.mrf.mxu0
  %v1545 = vadd.f32 %v1529, %v1544
  %1546 = vdwg.mxu0
  %v1547 = vpack.c.bf16 %v1513, %v1512
  %v1548 = vpack.c.bf16 %v1515, %v1514
  %v1549 = vperm.slane %v1502, 1
  %1550 = vmatpush.bf16.msra.mxu0 0
  %1551 = vmatpush.bf16.msra.mxu0 0
  %1552 = vmatpush.bf16.msra.mxu0 0
  %1553 = vmatpush.bf16.msra.mxu0 0
  %1554 = vmatpush.bf16.msra.mxu0 0
  %1555 = vmatpush.bf16.msra.mxu0 0
  %1556 = vmatpush.bf16.msra.mxu0 %v1548
  %1557 = vmatpush.bf16.msra.mxu0 %v1547
  %1558 = vmatmul.bf16.gmra.mxu0 %v1531
  %v1559 = vpop.f32.mrf.mxu0
  %v1560 = vadd.f32 %v1549, %v1559
  %v1561 = vpop.f32.mrf.mxu0
  %v1562 = vadd.f32 %v1549, %v1561
  %1563 = vdwg.mxu0
  %v1564 = vpack.c.bf16 %v1500, %v1499
  %v1565 = vpack.c.bf16 %v1518, %v1517
  %v1566 = vpack.c.bf16 %v1520, %v1519
  %v1567 = vperm.slane %v1502, 2
  %v1569 = vsel %vm79, %v1564, 0
  %1571 = vmatpush.bf16.msra.mxu0 0
  %1572 = vmatpush.bf16.msra.mxu0 0
  %1573 = vmatpush.bf16.msra.mxu0 0
  %1574 = vmatpush.bf16.msra.mxu0 0
  %1575 = vmatpush.bf16.msra.mxu0 0
  %1576 = vmatpush.bf16.msra.mxu0 0
  %1577 = vmatpush.bf16.msra.mxu0 %v1566
  %1578 = vmatpush.bf16.msra.mxu0 %v1565
  %1579 = vmatmul.bf16.gmra.mxu0 %v1569
  %v1580 = vpop.f32.mrf.mxu0
  %v1581 = vadd.f32 %v1567, %v1580
  %v1582 = vpop.f32.mrf.mxu0
  %v1583 = vadd.f32 %v1567, %v1582
  %1584 = vdwg.mxu0
  %v1585 = vpack.c.bf16 %v1543, %v1543
  %v1586 = vpack.c.bf16 %v1545, %v1545
  %v1587 = vpack.c.bf16 %v1560, %v1560
  %v1588 = vpack.c.bf16 %v1562, %v1562
  %v1589 = vpack.c.bf16 %v1581, %v1581
  %v1590 = vpack.c.bf16 %v1583, %v1583
  %v1592 = vsel %vm141, %v1585, 0
  %v1595 = vsel %vm141, %v1587, 0
  %1597 = vmatpush.bf16.xpose.msra.mxu0 0
  %1598 = vmatpush.bf16.xpose.msra.mxu0 0
  %1599 = vmatpush.bf16.xpose.msra.mxu0 0
  %1600 = vmatpush.bf16.xpose.msra.mxu0 0
  %1601 = vmatpush.bf16.xpose.msra.mxu0 0
  %1602 = vmatpush.bf16.xpose.msra.mxu0 0
  %1603 = vmatpush.bf16.xpose.msra.mxu0 0
  %1604 = vmatpush.bf16.xpose.msra.mxu0 %v1595
  %1605 = vmatmul.bf16.gmra.mxu0 %v1592
  %v1606 = vpop.f32.mrf.mxu0
  %v1607 = vadd.f32 0.0, %v1606
  %v1608 = vpop.f32.mrf.mxu0
  %1609 = vdwg.mxu0
  %v1611 = vsel %vm141, %v1586, 0
  %v1614 = vsel %vm141, %v1588, 0
  %1616 = vmatpush.bf16.xpose.msra.mxu0 0
  %1617 = vmatpush.bf16.xpose.msra.mxu0 0
  %1618 = vmatpush.bf16.xpose.msra.mxu0 0
  %1619 = vmatpush.bf16.xpose.msra.mxu0 0
  %1620 = vmatpush.bf16.xpose.msra.mxu0 0
  %1621 = vmatpush.bf16.xpose.msra.mxu0 0
  %1622 = vmatpush.bf16.xpose.msra.mxu0 0
  %1623 = vmatpush.bf16.xpose.msra.mxu0 %v1614
  %1624 = vmatmul.bf16.gmra.mxu0 %v1611
  %v1625 = vpop.f32.mrf.mxu0
  %v1626 = vadd.f32 0.0, %v1625
  %v1627 = vpop.f32.mrf.mxu0
  %1628 = vdwg.mxu0
  %v1629 = vmul.f32 %v1607, 0.35355338
  %v1630 = vmul.f32 %v1626, 0.35355338
  %v1631 = vsel %vm141, %v1629, -inf
  %1632 = vmax.xlane.f32.xlu0 %v1631
  %v1633 = vpop.xlane.xlu0 %1632
  %v1634 = vsel %vm141, %v1630, -inf
  %1635 = vmax.xlane.f32.xlu0 %v1634
  %v1636 = vpop.xlane.xlu0 %1635
  %v1637 = vsub.f32 %v1629, %v1633
  %v1638 = vsub.f32 %v1630, %v1636
  %v1639 = vmul.f32 %v1637, 1.442695
  %v1640 = vpow.pop %v1639
  %v1641 = vmul.f32 %v1638, 1.442695
  %v1642 = vpow.pop %v1641
  %v1643 = vsel %vm141, %v1640, 0.0
  %1644 = vadd.xlane.f32.xlu0 %v1643
  %v1645 = vpop.xlane.xlu0 %1644
  %v1646 = vsel %vm141, %v1642, 0.0
  %1647 = vadd.xlane.f32.xlu0 %v1646
  %v1648 = vpop.xlane.xlu0 %1647
  %v1649 = vrcp.pop %v1645
  %v1650 = vrcp.pop %v1648
  %v1651 = vmul.f32 %v1640, %v1649
  %v1652 = vmul.f32 %v1642, %v1650
  %v1653 = vpack.c.bf16 %v1651, %v1651
  %v1654 = vpack.c.bf16 %v1652, %v1652
  %v1656 = vsel %vm141, %v1653, 0
  %v1659 = vsel %vm209, %v1589, 0
  %1661 = vmatpush.bf16.msra.mxu0 0
  %1662 = vmatpush.bf16.msra.mxu0 0
  %1663 = vmatpush.bf16.msra.mxu0 0
  %1664 = vmatpush.bf16.msra.mxu0 0
  %1665 = vmatpush.bf16.msra.mxu0 0
  %1666 = vmatpush.bf16.msra.mxu0 0
  %1667 = vmatpush.bf16.msra.mxu0 0
  %1668 = vmatpush.bf16.msra.mxu0 %v1659
  %1669 = vmatmul.bf16.gmra.mxu0 %v1656
  %v1670 = vpop.f32.mrf.mxu0
  %v1671 = vadd.f32 0.0, %v1670
  %v1672 = vpop.f32.mrf.mxu0
  %1673 = vdwg.mxu0
  %v1675 = vsel %vm141, %v1654, 0
  %v1678 = vsel %vm209, %v1590, 0
  %1680 = vmatpush.bf16.msra.mxu0 0
  %1681 = vmatpush.bf16.msra.mxu0 0
  %1682 = vmatpush.bf16.msra.mxu0 0
  %1683 = vmatpush.bf16.msra.mxu0 0
  %1684 = vmatpush.bf16.msra.mxu0 0
  %1685 = vmatpush.bf16.msra.mxu0 0
  %1686 = vmatpush.bf16.msra.mxu0 0
  %1687 = vmatpush.bf16.msra.mxu0 %v1678
  %1688 = vmatmul.bf16.gmra.mxu0 %v1675
  %v1689 = vpop.f32.mrf.mxu0
  %v1690 = vadd.f32 0.0, %v1689
  %v1691 = vpop.f32.mrf.mxu0
  %1692 = vdwg.mxu0
  %v1694 = vunpack.c.l.b16 %v1585
  %v1695 = vpack.c.b16 %v1694, %v1694
  %1696 = vrot.lane.b32.xlu0 %v1695, 120
  %v1697 = vpop.permute.xlu0 %1696
  %v1699 = vunpack.c.l.b16 %v1587
  %v1700 = vpack.c.b16 %v1699, %v1699
  %1701 = vrot.lane.b32.xlu0 %v1700, 120
  %v1702 = vpop.permute.xlu0 %1701
  %v1704 = vsel %vm141, %v1697, 0
  %v1707 = vsel %vm141, %v1702, 0
  %1709 = vmatpush.bf16.xpose.msra.mxu0 0
  %1710 = vmatpush.bf16.xpose.msra.mxu0 0
  %1711 = vmatpush.bf16.xpose.msra.mxu0 0
  %1712 = vmatpush.bf16.xpose.msra.mxu0 0
  %1713 = vmatpush.bf16.xpose.msra.mxu0 0
  %1714 = vmatpush.bf16.xpose.msra.mxu0 0
  %1715 = vmatpush.bf16.xpose.msra.mxu0 0
  %1716 = vmatpush.bf16.xpose.msra.mxu0 %v1707
  %1717 = vmatmul.bf16.gmra.mxu0 %v1704
  %v1718 = vpop.f32.mrf.mxu0
  %v1719 = vadd.f32 0.0, %v1718
  %v1720 = vpop.f32.mrf.mxu0
  %1721 = vdwg.mxu0
  %v1723 = vunpack.c.l.b16 %v1586
  %v1724 = vpack.c.b16 %v1723, %v1723
  %1725 = vrot.lane.b32.xlu0 %v1724, 120
  %v1726 = vpop.permute.xlu0 %1725
  %v1728 = vunpack.c.l.b16 %v1588
  %v1729 = vpack.c.b16 %v1728, %v1728
  %1730 = vrot.lane.b32.xlu0 %v1729, 120
  %v1731 = vpop.permute.xlu0 %1730
  %v1733 = vsel %vm141, %v1726, 0
  %v1736 = vsel %vm141, %v1731, 0
  %1738 = vmatpush.bf16.xpose.msra.mxu0 0
  %1739 = vmatpush.bf16.xpose.msra.mxu0 0
  %1740 = vmatpush.bf16.xpose.msra.mxu0 0
  %1741 = vmatpush.bf16.xpose.msra.mxu0 0
  %1742 = vmatpush.bf16.xpose.msra.mxu0 0
  %1743 = vmatpush.bf16.xpose.msra.mxu0 0
  %1744 = vmatpush.bf16.xpose.msra.mxu0 0
  %1745 = vmatpush.bf16.xpose.msra.mxu0 %v1736
  %1746 = vmatmul.bf16.gmra.mxu0 %v1733
  %v1747 = vpop.f32.mrf.mxu0
  %v1748 = vadd.f32 0.0, %v1747
  %v1749 = vpop.f32.mrf.mxu0
  %1750 = vdwg.mxu0
  %v1751 = vmul.f32 %v1719, 0.35355338
  %v1752 = vmul.f32 %v1748, 0.35355338
  %v1753 = vsel %vm141, %v1751, -inf
  %1754 = vmax.xlane.f32.xlu0 %v1753
  %v1755 = vpop.xlane.xlu0 %1754
  %v1756 = vsel %vm141, %v1752, -inf
  %1757 = vmax.xlane.f32.xlu0 %v1756
  %v1758 = vpop.xlane.xlu0 %1757
  %v1759 = vsub.f32 %v1751, %v1755
  %v1760 = vsub.f32 %v1752, %v1758
  %v1761 = vmul.f32 %v1759, 1.442695
  %v1762 = vpow.pop %v1761
  %v1763 = vmul.f32 %v1760, 1.442695
  %v1764 = vpow.pop %v1763
  %v1765 = vsel %vm141, %v1762, 0.0
  %1766 = vadd.xlane.f32.xlu0 %v1765
  %v1767 = vpop.xlane.xlu0 %1766
  %v1768 = vsel %vm141, %v1764, 0.0
  %1769 = vadd.xlane.f32.xlu0 %v1768
  %v1770 = vpop.xlane.xlu0 %1769
  %v1771 = vrcp.pop %v1767
  %v1772 = vrcp.pop %v1770
  %v1773 = vmul.f32 %v1762, %v1771
  %v1774 = vmul.f32 %v1764, %v1772
  %v1775 = vpack.c.bf16 %v1773, %v1773
  %v1776 = vpack.c.bf16 %v1774, %v1774
  %v1778 = vunpack.c.l.b16 %v1589
  %v1779 = vpack.c.b16 %v1778, %v1778
  %1780 = vrot.lane.b32.xlu0 %v1779, 120
  %v1781 = vpop.permute.xlu0 %1780
  %v1783 = vsel %vm141, %v1775, 0
  %v1786 = vsel %vm209, %v1781, 0
  %1788 = vmatpush.bf16.msra.mxu0 0
  %1789 = vmatpush.bf16.msra.mxu0 0
  %1790 = vmatpush.bf16.msra.mxu0 0
  %1791 = vmatpush.bf16.msra.mxu0 0
  %1792 = vmatpush.bf16.msra.mxu0 0
  %1793 = vmatpush.bf16.msra.mxu0 0
  %1794 = vmatpush.bf16.msra.mxu0 0
  %1795 = vmatpush.bf16.msra.mxu0 %v1786
  %1796 = vmatmul.bf16.gmra.mxu0 %v1783
  %v1797 = vpop.f32.mrf.mxu0
  %v1798 = vadd.f32 0.0, %v1797
  %v1799 = vpop.f32.mrf.mxu0
  %1800 = vdwg.mxu0
  %v1802 = vunpack.c.l.b16 %v1590
  %v1803 = vpack.c.b16 %v1802, %v1802
  %1804 = vrot.lane.b32.xlu0 %v1803, 120
  %v1805 = vpop.permute.xlu0 %1804
  %v1807 = vsel %vm141, %v1776, 0
  %v1810 = vsel %vm209, %v1805, 0
  %1812 = vmatpush.bf16.msra.mxu0 0
  %1813 = vmatpush.bf16.msra.mxu0 0
  %1814 = vmatpush.bf16.msra.mxu0 0
  %1815 = vmatpush.bf16.msra.mxu0 0
  %1816 = vmatpush.bf16.msra.mxu0 0
  %1817 = vmatpush.bf16.msra.mxu0 0
  %1818 = vmatpush.bf16.msra.mxu0 0
  %1819 = vmatpush.bf16.msra.mxu0 %v1810
  %1820 = vmatmul.bf16.gmra.mxu0 %v1807
  %v1821 = vpop.f32.mrf.mxu0
  %v1822 = vadd.f32 0.0, %v1821
  %v1823 = vpop.f32.mrf.mxu0
  %1824 = vdwg.mxu0
  %1825 = vrot.lane.b32.xlu0 %v1695, 112
  %v1826 = vpop.permute.xlu0 %1825
  %1827 = vrot.lane.b32.xlu0 %v1700, 112
  %v1828 = vpop.permute.xlu0 %1827
  %v1830 = vsel %vm141, %v1826, 0
  %v1833 = vsel %vm141, %v1828, 0
  %1835 = vmatpush.bf16.xpose.msra.mxu0 0
  %1836 = vmatpush.bf16.xpose.msra.mxu0 0
  %1837 = vmatpush.bf16.xpose.msra.mxu0 0
  %1838 = vmatpush.bf16.xpose.msra.mxu0 0
  %1839 = vmatpush.bf16.xpose.msra.mxu0 0
  %1840 = vmatpush.bf16.xpose.msra.mxu0 0
  %1841 = vmatpush.bf16.xpose.msra.mxu0 0
  %1842 = vmatpush.bf16.xpose.msra.mxu0 %v1833
  %1843 = vmatmul.bf16.gmra.mxu0 %v1830
  %v1844 = vpop.f32.mrf.mxu0
  %v1845 = vadd.f32 0.0, %v1844
  %v1846 = vpop.f32.mrf.mxu0
  %1847 = vdwg.mxu0
  %1848 = vrot.lane.b32.xlu0 %v1724, 112
  %v1849 = vpop.permute.xlu0 %1848
  %1850 = vrot.lane.b32.xlu0 %v1729, 112
  %v1851 = vpop.permute.xlu0 %1850
  %v1853 = vsel %vm141, %v1849, 0
  %v1856 = vsel %vm141, %v1851, 0
  %1858 = vmatpush.bf16.xpose.msra.mxu0 0
  %1859 = vmatpush.bf16.xpose.msra.mxu0 0
  %1860 = vmatpush.bf16.xpose.msra.mxu0 0
  %1861 = vmatpush.bf16.xpose.msra.mxu0 0
  %1862 = vmatpush.bf16.xpose.msra.mxu0 0
  %1863 = vmatpush.bf16.xpose.msra.mxu0 0
  %1864 = vmatpush.bf16.xpose.msra.mxu0 0
  %1865 = vmatpush.bf16.xpose.msra.mxu0 %v1856
  %1866 = vmatmul.bf16.gmra.mxu0 %v1853
  %v1867 = vpop.f32.mrf.mxu0
  %v1868 = vadd.f32 0.0, %v1867
  %v1869 = vpop.f32.mrf.mxu0
  %1870 = vdwg.mxu0
  %v1871 = vmul.f32 %v1845, 0.35355338
  %v1872 = vmul.f32 %v1868, 0.35355338
  %v1873 = vsel %vm141, %v1871, -inf
  %1874 = vmax.xlane.f32.xlu0 %v1873
  %v1875 = vpop.xlane.xlu0 %1874
  %v1876 = vsel %vm141, %v1872, -inf
  %1877 = vmax.xlane.f32.xlu0 %v1876
  %v1878 = vpop.xlane.xlu0 %1877
  %v1879 = vsub.f32 %v1871, %v1875
  %v1880 = vsub.f32 %v1872, %v1878
  %v1881 = vmul.f32 %v1879, 1.442695
  %v1882 = vpow.pop %v1881
  %v1883 = vmul.f32 %v1880, 1.442695
  %v1884 = vpow.pop %v1883
  %v1885 = vsel %vm141, %v1882, 0.0
  %1886 = vadd.xlane.f32.xlu0 %v1885
  %v1887 = vpop.xlane.xlu0 %1886
  %v1888 = vsel %vm141, %v1884, 0.0
  %1889 = vadd.xlane.f32.xlu0 %v1888
  %v1890 = vpop.xlane.xlu0 %1889
  %v1891 = vrcp.pop %v1887
  %v1892 = vrcp.pop %v1890
  %v1893 = vmul.f32 %v1882, %v1891
  %v1894 = vmul.f32 %v1884, %v1892
  %v1895 = vpack.c.bf16 %v1893, %v1893
  %v1896 = vpack.c.bf16 %v1894, %v1894
  %1897 = vrot.lane.b32.xlu0 %v1779, 112
  %v1898 = vpop.permute.xlu0 %1897
  %v1900 = vsel %vm141, %v1895, 0
  %v1903 = vsel %vm209, %v1898, 0
  %1905 = vmatpush.bf16.msra.mxu0 0
  %1906 = vmatpush.bf16.msra.mxu0 0
  %1907 = vmatpush.bf16.msra.mxu0 0
  %1908 = vmatpush.bf16.msra.mxu0 0
  %1909 = vmatpush.bf16.msra.mxu0 0
  %1910 = vmatpush.bf16.msra.mxu0 0
  %1911 = vmatpush.bf16.msra.mxu0 0
  %1912 = vmatpush.bf16.msra.mxu0 %v1903
  %1913 = vmatmul.bf16.gmra.mxu0 %v1900
  %v1914 = vpop.f32.mrf.mxu0
  %v1915 = vadd.f32 0.0, %v1914
  %v1916 = vpop.f32.mrf.mxu0
  %1917 = vdwg.mxu0
  %1918 = vrot.lane.b32.xlu0 %v1803, 112
  %v1919 = vpop.permute.xlu0 %1918
  %v1921 = vsel %vm141, %v1896, 0
  %v1924 = vsel %vm209, %v1919, 0
  %1926 = vmatpush.bf16.msra.mxu0 0
  %1927 = vmatpush.bf16.msra.mxu0 0
  %1928 = vmatpush.bf16.msra.mxu0 0
  %1929 = vmatpush.bf16.msra.mxu0 0
  %1930 = vmatpush.bf16.msra.mxu0 0
  %1931 = vmatpush.bf16.msra.mxu0 0
  %1932 = vmatpush.bf16.msra.mxu0 0
  %1933 = vmatpush.bf16.msra.mxu0 %v1924
  %1934 = vmatmul.bf16.gmra.mxu0 %v1921
  %v1935 = vpop.f32.mrf.mxu0
  %v1936 = vadd.f32 0.0, %v1935
  %v1937 = vpop.f32.mrf.mxu0
  %1938 = vdwg.mxu0
  %1939 = vrot.lane.b32.xlu0 %v1695, 104
  %v1940 = vpop.permute.xlu0 %1939
  %1941 = vrot.lane.b32.xlu0 %v1700, 104
  %v1942 = vpop.permute.xlu0 %1941
  %v1944 = vsel %vm141, %v1940, 0
  %v1947 = vsel %vm141, %v1942, 0
  %1949 = vmatpush.bf16.xpose.msra.mxu0 0
  %1950 = vmatpush.bf16.xpose.msra.mxu0 0
  %1951 = vmatpush.bf16.xpose.msra.mxu0 0
  %1952 = vmatpush.bf16.xpose.msra.mxu0 0
  %1953 = vmatpush.bf16.xpose.msra.mxu0 0
  %1954 = vmatpush.bf16.xpose.msra.mxu0 0
  %1955 = vmatpush.bf16.xpose.msra.mxu0 0
  %1956 = vmatpush.bf16.xpose.msra.mxu0 %v1947
  %1957 = vmatmul.bf16.gmra.mxu0 %v1944
  %v1958 = vpop.f32.mrf.mxu0
  %v1959 = vadd.f32 0.0, %v1958
  %v1960 = vpop.f32.mrf.mxu0
  %1961 = vdwg.mxu0
  %1962 = vrot.lane.b32.xlu0 %v1724, 104
  %v1963 = vpop.permute.xlu0 %1962
  %1964 = vrot.lane.b32.xlu0 %v1729, 104
  %v1965 = vpop.permute.xlu0 %1964
  %v1967 = vsel %vm141, %v1963, 0
  %v1970 = vsel %vm141, %v1965, 0
  %1972 = vmatpush.bf16.xpose.msra.mxu0 0
  %1973 = vmatpush.bf16.xpose.msra.mxu0 0
  %1974 = vmatpush.bf16.xpose.msra.mxu0 0
  %1975 = vmatpush.bf16.xpose.msra.mxu0 0
  %1976 = vmatpush.bf16.xpose.msra.mxu0 0
  %1977 = vmatpush.bf16.xpose.msra.mxu0 0
  %1978 = vmatpush.bf16.xpose.msra.mxu0 0
  %1979 = vmatpush.bf16.xpose.msra.mxu0 %v1970
  %1980 = vmatmul.bf16.gmra.mxu0 %v1967
  %v1981 = vpop.f32.mrf.mxu0
  %v1982 = vadd.f32 0.0, %v1981
  %v1983 = vpop.f32.mrf.mxu0
  %1984 = vdwg.mxu0
  %v1985 = vmul.f32 %v1959, 0.35355338
  %v1986 = vmul.f32 %v1982, 0.35355338
  %v1987 = vsel %vm141, %v1985, -inf
  %1988 = vmax.xlane.f32.xlu0 %v1987
  %v1989 = vpop.xlane.xlu0 %1988
  %v1990 = vsel %vm141, %v1986, -inf
  %1991 = vmax.xlane.f32.xlu0 %v1990
  %v1992 = vpop.xlane.xlu0 %1991
  %v1993 = vsub.f32 %v1985, %v1989
  %v1994 = vsub.f32 %v1986, %v1992
  %v1995 = vmul.f32 %v1993, 1.442695
  %v1996 = vpow.pop %v1995
  %v1997 = vmul.f32 %v1994, 1.442695
  %v1998 = vpow.pop %v1997
  %v1999 = vsel %vm141, %v1996, 0.0
  %2000 = vadd.xlane.f32.xlu0 %v1999
  %v2001 = vpop.xlane.xlu0 %2000
  %v2002 = vsel %vm141, %v1998, 0.0
  %2003 = vadd.xlane.f32.xlu0 %v2002
  %v2004 = vpop.xlane.xlu0 %2003
  %v2005 = vrcp.pop %v2001
  %v2006 = vrcp.pop %v2004
  %v2007 = vmul.f32 %v1996, %v2005
  %v2008 = vmul.f32 %v1998, %v2006
  %v2009 = vpack.c.bf16 %v2007, %v2007
  %v2010 = vpack.c.bf16 %v2008, %v2008
  %2011 = vrot.lane.b32.xlu0 %v1779, 104
  %v2012 = vpop.permute.xlu0 %2011
  %v2014 = vsel %vm141, %v2009, 0
  %v2017 = vsel %vm209, %v2012, 0
  %2019 = vmatpush.bf16.msra.mxu0 0
  %2020 = vmatpush.bf16.msra.mxu0 0
  %2021 = vmatpush.bf16.msra.mxu0 0
  %2022 = vmatpush.bf16.msra.mxu0 0
  %2023 = vmatpush.bf16.msra.mxu0 0
  %2024 = vmatpush.bf16.msra.mxu0 0
  %2025 = vmatpush.bf16.msra.mxu0 0
  %2026 = vmatpush.bf16.msra.mxu0 %v2017
  %2027 = vmatmul.bf16.gmra.mxu0 %v2014
  %v2028 = vpop.f32.mrf.mxu0
  %v2029 = vadd.f32 0.0, %v2028
  %v2030 = vpop.f32.mrf.mxu0
  %2031 = vdwg.mxu0
  %2032 = vrot.lane.b32.xlu0 %v1803, 104
  %v2033 = vpop.permute.xlu0 %2032
  %v2035 = vsel %vm141, %v2010, 0
  %v2038 = vsel %vm209, %v2033, 0
  %2040 = vmatpush.bf16.msra.mxu0 0
  %2041 = vmatpush.bf16.msra.mxu0 0
  %2042 = vmatpush.bf16.msra.mxu0 0
  %2043 = vmatpush.bf16.msra.mxu0 0
  %2044 = vmatpush.bf16.msra.mxu0 0
  %2045 = vmatpush.bf16.msra.mxu0 0
  %2046 = vmatpush.bf16.msra.mxu0 0
  %2047 = vmatpush.bf16.msra.mxu0 %v2038
  %2048 = vmatmul.bf16.gmra.mxu0 %v2035
  %v2049 = vpop.f32.mrf.mxu0
  %v2050 = vadd.f32 0.0, %v2049
  %v2051 = vpop.f32.mrf.mxu0
  %2052 = vdwg.mxu0
  %2055 = vrot.lane.b32.xlu0 %v1798, 8
  %v2056 = vpop.permute.xlu0 %2055
  %2057 = vrot.lane.b32.xlu0 %v1822, 8
  %v2058 = vpop.permute.xlu0 %2057
  %2063 = vrot.lane.b32.xlu0 %v1915, 16
  %v2064 = vpop.permute.xlu0 %2063
  %2065 = vrot.lane.b32.xlu0 %v1936, 16
  %v2066 = vpop.permute.xlu0 %2065
  %2071 = vrot.lane.b32.xlu0 %v2029, 24
  %v2072 = vpop.permute.xlu0 %2071
  %2073 = vrot.lane.b32.xlu0 %v2050, 24
  %v2074 = vpop.permute.xlu0 %2073
  %v2077 = vsel %vm141, %v1671, %v2056
  %v2078 = vsel %vm141, %v1690, %v2058
  %v2079 = vsel %vm631, %v2077, %v2064
  %v2080 = vsel %vm631, %v2078, %v2066
  %v2081 = vsel %vm634, %v2079, %v2072
  %v2082 = vsel %vm634, %v2080, %v2074
  %v2083 = vpack.c.bf16 %v2082, %v2081
  %v2084 = vpack.c.bf16 %v1523, %v1522
  %v2085 = vpack.c.bf16 %v1525, %v1524
  %v2086 = vperm.slane %v1502, 3
  %v2088 = vsel %vm79, %v2083, 0
  %2090 = vmatpush.bf16.msra.mxu0 0
  %2091 = vmatpush.bf16.msra.mxu0 0
  %2092 = vmatpush.bf16.msra.mxu0 0
  %2093 = vmatpush.bf16.msra.mxu0 0
  %2094 = vmatpush.bf16.msra.mxu0 0
  %2095 = vmatpush.bf16.msra.mxu0 0
  %2096 = vmatpush.bf16.msra.mxu0 %v2085
  %2097 = vmatpush.bf16.msra.mxu0 %v2084
  %2098 = vmatmul.bf16.gmra.mxu0 %v2088
  %v2099 = vpop.f32.mrf.mxu0
  %v2100 = vadd.f32 %v2086, %v2099
  %v2101 = vpop.f32.mrf.mxu0
  %v2102 = vadd.f32 %v2086, %v2101
  %2103 = vdwg.mxu0
  %v2104 = vadd.f32 %v1499, %v2100
  %v2105 = vadd.f32 %v1500, %v2102
  %v2106 = vsel %vm79, %v2104, 0.0
  %2107 = vadd.xlane.f32.xlu0 %v2106
  %v2108 = vpop.xlane.xlu0 %2107
  %v2109 = vsel %vm79, %v2105, 0.0
  %2110 = vadd.xlane.f32.xlu0 %v2109
  %v2111 = vpop.xlane.xlu0 %2110
  %v2112 = vmul.f32 %v2108, %v672
  %v2113 = vmul.f32 %v2111, %v672
  %v2114 = vsub.f32 %v2104, %v2112
  %v2115 = vsub.f32 %v2105, %v2113
  %v2116 = vmul.f32 %v2114, %v2114
  %v2117 = vmul.f32 %v2115, %v2115
  %v2118 = vsel %vm79, %v2116, 0.0
  %2119 = vadd.xlane.f32.xlu0 %v2118
  %v2120 = vpop.xlane.xlu0 %2119
  %v2121 = vsel %vm79, %v2117, 0.0
  %2122 = vadd.xlane.f32.xlu0 %v2121
  %v2123 = vpop.xlane.xlu0 %2122
  %v2124 = vmul.f32 %v2120, %v672
  %v2125 = vmul.f32 %v2123, %v672
  %v2126 = vadd.f32 %v2124, 1e-05
  %v2127 = vadd.f32 %v2125, 1e-05
  %v2128 = vrsqrt.pop %v2126
  %v2129 = vmul.f32 %v2128, %v2126
  %v2130 = vmul.f32 %v2129, %v2128
  %v2131 = vmul.f32 0.5, %v2130
  %v2132 = vsub.f32 1.5, %v2131
  %v2133 = vmul.f32 %v2128, %v2132
  %vm2134 = vweird.f32 %v2126
  %vm2135 = vweird.f32 %v2128
  %vm2136 = vmor %vm2134, %vm2135
  %v2137 = vsel %vm2136, %v2128, %v2133
  %v2138 = vrsqrt.pop %v2127
  %v2139 = vmul.f32 %v2138, %v2127
  %v2140 = vmul.f32 %v2139, %v2138
  %v2141 = vmul.f32 0.5, %v2140
  %v2142 = vsub.f32 1.5, %v2141
  %v2143 = vmul.f32 %v2138, %v2142
  %vm2144 = vweird.f32 %v2127
  %vm2145 = vweird.f32 %v2138
  %vm2146 = vmor %vm2144, %vm2145
  %v2147 = vsel %vm2146, %v2138, %v2143
  %v2148 = vmul.f32 %v2114, %v2137
  %v2149 = vmul.f32 %v2115, %v2147
  %v2150 = vperm.slane %v1503, 1
  %v2151 = vmul.f32 %v2148, %v2150
  %v2152 = vmul.f32 %v2149, %v2150
  %v2153 = vperm.slane %v1503, 2
  %v2154 = vadd.f32 %v2151, %v2153
  %v2155 = vadd.f32 %v2152, %v2153
  %v2156 = vadd.f32 %v2154, %v38
  %v2157 = vadd.f32 %v2155, %v39
  %s2158 = scalar_lea.vmem %s4, 384
  %v2159 = vld [vmem:[%s2158] sm:$0xff]
  %v2160 = vld [vmem:[%s2158 + $0x8] sm:$0xff]
  %v2161 = vld [vmem:[%s2158 + $0x10] sm:$0xff]
  %v2162 = vld [vmem:[%s2158 + $0x18] sm:$0xff]
  %s2163 = scalar_lea.vmem %s4, 416
  %v2164 = vld [vmem:[%s2163] sm:$0xff]
  %v2165 = vld [vmem:[%s2163 + $0x8] sm:$0xff]
  %v2166 = vld [vmem:[%s2163 + $0x10] sm:$0xff]
  %v2167 = vld [vmem:[%s2163 + $0x18] sm:$0xff]
  %s2168 = scalar_lea.vmem %s4, 448
  %v2169 = vld [vmem:[%s2168] sm:$0xff]
  %v2170 = vld [vmem:[%s2168 + $0x8] sm:$0xff]
  %v2171 = vld [vmem:[%s2168 + $0x10] sm:$0xff]
  %v2172 = vld [vmem:[%s2168 + $0x18] sm:$0xff]
  %s2173 = scalar_lea.vmem %s4, 480
  %v2174 = vld [vmem:[%s2173] sm:$0xff]
  %v2175 = vld [vmem:[%s2173 + $0x8] sm:$0xff]
  %v2176 = vld [vmem:[%s2173 + $0x10] sm:$0xff]
  %v2177 = vld [vmem:[%s2173 + $0x18] sm:$0xff]
  %v2178 = vpack.c.bf16 %v2157, %v2156
  %v2179 = vpack.c.bf16 %v2160, %v2159
  %v2180 = vpack.c.bf16 %v2162, %v2161
  %v2181 = vperm.slane %v1502, 4
  %v2183 = vsel %vm79, %v2178, 0
  %2185 = vmatpush.bf16.msra.mxu0 0
  %2186 = vmatpush.bf16.msra.mxu0 0
  %2187 = vmatpush.bf16.msra.mxu0 0
  %2188 = vmatpush.bf16.msra.mxu0 0
  %2189 = vmatpush.bf16.msra.mxu0 0
  %2190 = vmatpush.bf16.msra.mxu0 0
  %2191 = vmatpush.bf16.msra.mxu0 %v2180
  %2192 = vmatpush.bf16.msra.mxu0 %v2179
  %2193 = vmatmul.bf16.gmra.mxu0 %v2183
  %v2194 = vpop.f32.mrf.mxu0
  %v2195 = vadd.f32 %v2181, %v2194
  %v2196 = vpop.f32.mrf.mxu0
  %v2197 = vadd.f32 %v2181, %v2196
  %2198 = vdwg.mxu0
  %v2199 = vpack.c.bf16 %v2165, %v2164
  %v2200 = vpack.c.bf16 %v2167, %v2166
  %v2201 = vperm.slane %v1502, 5
  %2202 = vmatpush.bf16.msra.mxu0 0
  %2203 = vmatpush.bf16.msra.mxu0 0
  %2204 = vmatpush.bf16.msra.mxu0 0
  %2205 = vmatpush.bf16.msra.mxu0 0
  %2206 = vmatpush.bf16.msra.mxu0 0
  %2207 = vmatpush.bf16.msra.mxu0 0
  %2208 = vmatpush.bf16.msra.mxu0 %v2200
  %2209 = vmatpush.bf16.msra.mxu0 %v2199
  %2210 = vmatmul.bf16.gmra.mxu0 %v766
  %v2211 = vpop.f32.mrf.mxu0
  %v2212 = vadd.f32 %v2201, %v2211
  %v2213 = vpop.f32.mrf.mxu0
  %v2214 = vadd.f32 %v2201, %v2213
  %2215 = vmatmul.bf16.gmra.mxu0 %v769
  %v2216 = vpop.f32.mrf.mxu0
  %v2217 = vadd.f32 %v2201, %v2216
  %v2218 = vpop.f32.mrf.mxu0
  %v2219 = vadd.f32 %v2201, %v2218
  %2220 = vdwg.mxu0
  %v2221 = vpack.c.bf16 %v2170, %v2169
  %v2222 = vpack.c.bf16 %v2172, %v2171
  %v2223 = vperm.slane %v1502, 6
  %2224 = vmatpush.bf16.msra.mxu0 0
  %2225 = vmatpush.bf16.msra.mxu0 0
  %2226 = vmatpush.bf16.msra.mxu0 0
  %2227 = vmatpush.bf16.msra.mxu0 0
  %2228 = vmatpush.bf16.msra.mxu0 0
  %2229 = vmatpush.bf16.msra.mxu0 0
  %2230 = vmatpush.bf16.msra.mxu0 %v2222
  %2231 = vmatpush.bf16.msra.mxu0 %v2221
  %2232 = vmatmul.bf16.gmra.mxu0 %v796
  %v2233 = vpop.f32.mrf.mxu0
  %v2234 = vadd.f32 %v2223, %v2233
  %v2235 = vpop.f32.mrf.mxu0
  %v2236 = vadd.f32 %v2223, %v2235
  %2237 = vmatmul.bf16.gmra.mxu0 %v799
  %v2238 = vpop.f32.mrf.mxu0
  %v2239 = vadd.f32 %v2223, %v2238
  %v2240 = vpop.f32.mrf.mxu0
  %v2241 = vadd.f32 %v2223, %v2240
  %2242 = vdwg.mxu0
  %v2243 = vpack.c.bf16 %v2195, %v2195
  %v2244 = vpack.c.bf16 %v2197, %v2197
  %v2245 = vpack.c.bf16 %v2212, %v2212
  %v2246 = vpack.c.bf16 %v2214, %v2214
  %v2247 = vpack.c.bf16 %v2217, %v2217
  %v2248 = vpack.c.bf16 %v2219, %v2219
  %v2249 = vpack.c.bf16 %v2234, %v2234
  %v2250 = vpack.c.bf16 %v2236, %v2236
  %v2251 = vpack.c.bf16 %v2239, %v2239
  %v2252 = vpack.c.bf16 %v2241, %v2241
  %v2255 = vunpack.c.l.b16 %v2245
  %v2256 = vunpack.c.l.b16 %v2246
  %v2257 = vpack.c.b16 %v2256, %v2255
  %v2259 = vsel %vm141, %v2243, 0
  %v2262 = vsel %vm141, %v2257, 0
  %2264 = vmatpush.bf16.xpose.msra.mxu0 0
  %2265 = vmatpush.bf16.xpose.msra.mxu0 0
  %2266 = vmatpush.bf16.xpose.msra.mxu0 0
  %2267 = vmatpush.bf16.xpose.msra.mxu0 0
  %2268 = vmatpush.bf16.xpose.msra.mxu0 0
  %2269 = vmatpush.bf16.xpose.msra.mxu0 0
  %2270 = vmatpush.bf16.xpose.msra.mxu0 0
  %2271 = vmatpush.bf16.xpose.msra.mxu0 %v2262
  %2272 = vmatmul.bf16.gmra.mxu0 %v2259
  %v2273 = vpop.f32.mrf.mxu0
  %v2274 = vadd.f32 0.0, %v2273
  %v2275 = vpop.f32.mrf.mxu0
  %2276 = vdwg.mxu0
  %v2279 = vunpack.c.l.b16 %v2247
  %v2280 = vunpack.c.l.b16 %v2248
  %v2281 = vpack.c.b16 %v2280, %v2279
  %v2283 = vsel %vm141, %v2244, 0
  %v2286 = vsel %vm141, %v2281, 0
  %2288 = vmatpush.bf16.xpose.msra.mxu0 0
  %2289 = vmatpush.bf16.xpose.msra.mxu0 0
  %2290 = vmatpush.bf16.xpose.msra.mxu0 0
  %2291 = vmatpush.bf16.xpose.msra.mxu0 0
  %2292 = vmatpush.bf16.xpose.msra.mxu0 0
  %2293 = vmatpush.bf16.xpose.msra.mxu0 0
  %2294 = vmatpush.bf16.xpose.msra.mxu0 0
  %2295 = vmatpush.bf16.xpose.msra.mxu0 %v2286
  %2296 = vmatmul.bf16.gmra.mxu0 %v2283
  %v2297 = vpop.f32.mrf.mxu0
  %v2298 = vadd.f32 0.0, %v2297
  %v2299 = vpop.f32.mrf.mxu0
  %2300 = vdwg.mxu0
  %v2301 = vmul.f32 %v2274, 0.35355338
  %v2302 = vmul.f32 %v2298, 0.35355338
  %v2303 = vsel %vm631, %v2301, -inf
  %2304 = vmax.xlane.f32.xlu0 %v2303
  %v2305 = vpop.xlane.xlu0 %2304
  %v2306 = vsel %vm631, %v2302, -inf
  %2307 = vmax.xlane.f32.xlu0 %v2306
  %v2308 = vpop.xlane.xlu0 %2307
  %v2309 = vsub.f32 %v2301, %v2305
  %v2310 = vsub.f32 %v2302, %v2308
  %v2311 = vmul.f32 %v2309, 1.442695
  %v2312 = vpow.pop %v2311
  %v2313 = vmul.f32 %v2310, 1.442695
  %v2314 = vpow.pop %v2313
  %v2315 = vsel %vm631, %v2312, 0.0
  %2316 = vadd.xlane.f32.xlu0 %v2315
  %v2317 = vpop.xlane.xlu0 %2316
  %v2318 = vsel %vm631, %v2314, 0.0
  %2319 = vadd.xlane.f32.xlu0 %v2318
  %v2320 = vpop.xlane.xlu0 %2319
  %v2321 = vrcp.pop %v2317
  %v2322 = vrcp.pop %v2320
  %v2323 = vmul.f32 %v2312, %v2321
  %v2324 = vmul.f32 %v2314, %v2322
  %v2325 = vpack.c.bf16 %v2323, %v2323
  %v2326 = vpack.c.bf16 %v2324, %v2324
  %v2329 = vunpack.c.l.b16 %v2249
  %v2330 = vunpack.c.l.b16 %v2250
  %v2331 = vpack.c.b16 %v2330, %v2329
  %v2334 = vsel %vm631, %v2325, 0
  %2336 = vmatpush.bf16.msra.mxu0 0
  %2337 = vmatpush.bf16.msra.mxu0 0
  %2338 = vmatpush.bf16.msra.mxu0 0
  %2339 = vmatpush.bf16.msra.mxu0 0
  %2340 = vmatpush.bf16.msra.mxu0 0
  %2341 = vmatpush.bf16.msra.mxu0 0
  %2342 = vmatpush.bf16.msra.mxu0 0
  %2343 = vmatpush.bf16.msra.mxu0 %v2331
  %2344 = vmatmul.bf16.gmra.mxu0 %v2334
  %v2345 = vpop.f32.mrf.mxu0
  %v2346 = vadd.f32 0.0, %v2345
  %v2347 = vpop.f32.mrf.mxu0
  %2348 = vdwg.mxu0
  %v2351 = vunpack.c.l.b16 %v2251
  %v2352 = vunpack.c.l.b16 %v2252
  %v2353 = vpack.c.b16 %v2352, %v2351
  %v2356 = vsel %vm631, %v2326, 0
  %2358 = vmatpush.bf16.msra.mxu0 0
  %2359 = vmatpush.bf16.msra.mxu0 0
  %2360 = vmatpush.bf16.msra.mxu0 0
  %2361 = vmatpush.bf16.msra.mxu0 0
  %2362 = vmatpush.bf16.msra.mxu0 0
  %2363 = vmatpush.bf16.msra.mxu0 0
  %2364 = vmatpush.bf16.msra.mxu0 0
  %2365 = vmatpush.bf16.msra.mxu0 %v2353
  %2366 = vmatmul.bf16.gmra.mxu0 %v2356
  %v2367 = vpop.f32.mrf.mxu0
  %v2368 = vadd.f32 0.0, %v2367
  %v2369 = vpop.f32.mrf.mxu0
  %2370 = vdwg.mxu0
  %v2372 = vunpack.c.l.b16 %v2243
  %v2373 = vpack.c.b16 %v2372, %v2372
  %2374 = vrot.lane.b32.xlu0 %v2373, 120
  %v2375 = vpop.permute.xlu0 %2374
  %2376 = vrot.lane.b32.xlu0 %v2257, 120
  %v2377 = vpop.permute.xlu0 %2376
  %v2379 = vsel %vm141, %v2375, 0
  %v2382 = vsel %vm141, %v2377, 0
  %2384 = vmatpush.bf16.xpose.msra.mxu0 0
  %2385 = vmatpush.bf16.xpose.msra.mxu0 0
  %2386 = vmatpush.bf16.xpose.msra.mxu0 0
  %2387 = vmatpush.bf16.xpose.msra.mxu0 0
  %2388 = vmatpush.bf16.xpose.msra.mxu0 0
  %2389 = vmatpush.bf16.xpose.msra.mxu0 0
  %2390 = vmatpush.bf16.xpose.msra.mxu0 0
  %2391 = vmatpush.bf16.xpose.msra.mxu0 %v2382
  %2392 = vmatmul.bf16.gmra.mxu0 %v2379
  %v2393 = vpop.f32.mrf.mxu0
  %v2394 = vadd.f32 0.0, %v2393
  %v2395 = vpop.f32.mrf.mxu0
  %2396 = vdwg.mxu0
  %v2398 = vunpack.c.l.b16 %v2244
  %v2399 = vpack.c.b16 %v2398, %v2398
  %2400 = vrot.lane.b32.xlu0 %v2399, 120
  %v2401 = vpop.permute.xlu0 %2400
  %2402 = vrot.lane.b32.xlu0 %v2281, 120
  %v2403 = vpop.permute.xlu0 %2402
  %v2405 = vsel %vm141, %v2401, 0
  %v2408 = vsel %vm141, %v2403, 0
  %2410 = vmatpush.bf16.xpose.msra.mxu0 0
  %2411 = vmatpush.bf16.xpose.msra.mxu0 0
  %2412 = vmatpush.bf16.xpose.msra.mxu0 0
  %2413 = vmatpush.bf16.xpose.msra.mxu0 0
  %2414 = vmatpush.bf16.xpose.msra.mxu0 0
  %2415 = vmatpush.bf16.xpose.msra.mxu0 0
  %2416 = vmatpush.bf16.xpose.msra.mxu0 0
  %2417 = vmatpush.bf16.xpose.msra.mxu0 %v2408
  %2418 = vmatmul.bf16.gmra.mxu0 %v2405
  %v2419 = vpop.f32.mrf.mxu0
  %v2420 = vadd.f32 0.0, %v2419
  %v2421 = vpop.f32.mrf.mxu0
  %2422 = vdwg.mxu0
  %v2423 = vmul.f32 %v2394, 0.35355338
  %v2424 = vmul.f32 %v2420, 0.35355338
  %v2425 = vsel %vm631, %v2423, -inf
  %2426 = vmax.xlane.f32.xlu0 %v2425
  %v2427 = vpop.xlane.xlu0 %2426
  %v2428 = vsel %vm631, %v2424, -inf
  %2429 = vmax.xlane.f32.xlu0 %v2428
  %v2430 = vpop.xlane.xlu0 %2429
  %v2431 = vsub.f32 %v2423, %v2427
  %v2432 = vsub.f32 %v2424, %v2430
  %v2433 = vmul.f32 %v2431, 1.442695
  %v2434 = vpow.pop %v2433
  %v2435 = vmul.f32 %v2432, 1.442695
  %v2436 = vpow.pop %v2435
  %v2437 = vsel %vm631, %v2434, 0.0
  %2438 = vadd.xlane.f32.xlu0 %v2437
  %v2439 = vpop.xlane.xlu0 %2438
  %v2440 = vsel %vm631, %v2436, 0.0
  %2441 = vadd.xlane.f32.xlu0 %v2440
  %v2442 = vpop.xlane.xlu0 %2441
  %v2443 = vrcp.pop %v2439
  %v2444 = vrcp.pop %v2442
  %v2445 = vmul.f32 %v2434, %v2443
  %v2446 = vmul.f32 %v2436, %v2444
  %v2447 = vpack.c.bf16 %v2445, %v2445
  %v2448 = vpack.c.bf16 %v2446, %v2446
  %2449 = vrot.lane.b32.xlu0 %v2331, 120
  %v2450 = vpop.permute.xlu0 %2449
  %v2453 = vsel %vm631, %v2447, 0
  %2455 = vmatpush.bf16.msra.mxu0 0
  %2456 = vmatpush.bf16.msra.mxu0 0
  %2457 = vmatpush.bf16.msra.mxu0 0
  %2458 = vmatpush.bf16.msra.mxu0 0
  %2459 = vmatpush.bf16.msra.mxu0 0
  %2460 = vmatpush.bf16.msra.mxu0 0
  %2461 = vmatpush.bf16.msra.mxu0 0
  %2462 = vmatpush.bf16.msra.mxu0 %v2450
  %2463 = vmatmul.bf16.gmra.mxu0 %v2453
  %v2464 = vpop.f32.mrf.mxu0
  %v2465 = vadd.f32 0.0, %v2464
  %v2466 = vpop.f32.mrf.mxu0
  %2467 = vdwg.mxu0
  %2468 = vrot.lane.b32.xlu0 %v2353, 120
  %v2469 = vpop.permute.xlu0 %2468
  %v2472 = vsel %vm631, %v2448, 0
  %2474 = vmatpush.bf16.msra.mxu0 0
  %2475 = vmatpush.bf16.msra.mxu0 0
  %2476 = vmatpush.bf16.msra.mxu0 0
  %2477 = vmatpush.bf16.msra.mxu0 0
  %2478 = vmatpush.bf16.msra.mxu0 0
  %2479 = vmatpush.bf16.msra.mxu0 0
  %2480 = vmatpush.bf16.msra.mxu0 0
  %2481 = vmatpush.bf16.msra.mxu0 %v2469
  %2482 = vmatmul.bf16.gmra.mxu0 %v2472
  %v2483 = vpop.f32.mrf.mxu0
  %v2484 = vadd.f32 0.0, %v2483
  %v2485 = vpop.f32.mrf.mxu0
  %2486 = vdwg.mxu0
  %2487 = vrot.lane.b32.xlu0 %v2373, 112
  %v2488 = vpop.permute.xlu0 %2487
  %2489 = vrot.lane.b32.xlu0 %v2257, 112
  %v2490 = vpop.permute.xlu0 %2489
  %v2492 = vsel %vm141, %v2488, 0
  %v2495 = vsel %vm141, %v2490, 0
  %2497 = vmatpush.bf16.xpose.msra.mxu0 0
  %2498 = vmatpush.bf16.xpose.msra.mxu0 0
  %2499 = vmatpush.bf16.xpose.msra.mxu0 0
  %2500 = vmatpush.bf16.xpose.msra.mxu0 0
  %2501 = vmatpush.bf16.xpose.msra.mxu0 0
  %2502 = vmatpush.bf16.xpose.msra.mxu0 0
  %2503 = vmatpush.bf16.xpose.msra.mxu0 0
  %2504 = vmatpush.bf16.xpose.msra.mxu0 %v2495
  %2505 = vmatmul.bf16.gmra.mxu0 %v2492
  %v2506 = vpop.f32.mrf.mxu0
  %v2507 = vadd.f32 0.0, %v2506
  %v2508 = vpop.f32.mrf.mxu0
  %2509 = vdwg.mxu0
  %2510 = vrot.lane.b32.xlu0 %v2399, 112
  %v2511 = vpop.permute.xlu0 %2510
  %2512 = vrot.lane.b32.xlu0 %v2281, 112
  %v2513 = vpop.permute.xlu0 %2512
  %v2515 = vsel %vm141, %v2511, 0
  %v2518 = vsel %vm141, %v2513, 0
  %2520 = vmatpush.bf16.xpose.msra.mxu0 0
  %2521 = vmatpush.bf16.xpose.msra.mxu0 0
  %2522 = vmatpush.bf16.xpose.msra.mxu0 0
  %2523 = vmatpush.bf16.xpose.msra.mxu0 0
  %2524 = vmatpush.bf16.xpose.msra.mxu0 0
  %2525 = vmatpush.bf16.xpose.msra.mxu0 0
  %2526 = vmatpush.bf16.xpose.msra.mxu0 0
  %2527 = vmatpush.bf16.xpose.msra.mxu0 %v2518
  %2528 = vmatmul.bf16.gmra.mxu0 %v2515
  %v2529 = vpop.f32.mrf.mxu0
  %v2530 = vadd.f32 0.0, %v2529
  %v2531 = vpop.f32.mrf.mxu0
  %2532 = vdwg.mxu0
  %v2533 = vmul.f32 %v2507, 0.35355338
  %v2534 = vmul.f32 %v2530, 0.35355338
  %v2535 = vsel %vm631, %v2533, -inf
  %2536 = vmax.xlane.f32.xlu0 %v2535
  %v2537 = vpop.xlane.xlu0 %2536
  %v2538 = vsel %vm631, %v2534, -inf
  %2539 = vmax.xlane.f32.xlu0 %v2538
  %v2540 = vpop.xlane.xlu0 %2539
  %v2541 = vsub.f32 %v2533, %v2537
  %v2542 = vsub.f32 %v2534, %v2540
  %v2543 = vmul.f32 %v2541, 1.442695
  %v2544 = vpow.pop %v2543
  %v2545 = vmul.f32 %v2542, 1.442695
  %v2546 = vpow.pop %v2545
  %v2547 = vsel %vm631, %v2544, 0.0
  %2548 = vadd.xlane.f32.xlu0 %v2547
  %v2549 = vpop.xlane.xlu0 %2548
  %v2550 = vsel %vm631, %v2546, 0.0
  %2551 = vadd.xlane.f32.xlu0 %v2550
  %v2552 = vpop.xlane.xlu0 %2551
  %v2553 = vrcp.pop %v2549
  %v2554 = vrcp.pop %v2552
  %v2555 = vmul.f32 %v2544, %v2553
  %v2556 = vmul.f32 %v2546, %v2554
  %v2557 = vpack.c.bf16 %v2555, %v2555
  %v2558 = vpack.c.bf16 %v2556, %v2556
  %2559 = vrot.lane.b32.xlu0 %v2331, 112
  %v2560 = vpop.permute.xlu0 %2559
  %v2563 = vsel %vm631, %v2557, 0
  %2565 = vmatpush.bf16.msra.mxu0 0
  %2566 = vmatpush.bf16.msra.mxu0 0
  %2567 = vmatpush.bf16.msra.mxu0 0
  %2568 = vmatpush.bf16.msra.mxu0 0
  %2569 = vmatpush.bf16.msra.mxu0 0
  %2570 = vmatpush.bf16.msra.mxu0 0
  %2571 = vmatpush.bf16.msra.mxu0 0
  %2572 = vmatpush.bf16.msra.mxu0 %v2560
  %2573 = vmatmul.bf16.gmra.mxu0 %v2563
  %v2574 = vpop.f32.mrf.mxu0
  %v2575 = vadd.f32 0.0, %v2574
  %v2576 = vpop.f32.mrf.mxu0
  %2577 = vdwg.mxu0
  %2578 = vrot.lane.b32.xlu0 %v2353, 112
  %v2579 = vpop.permute.xlu0 %2578
  %v2582 = vsel %vm631, %v2558, 0
  %2584 = vmatpush.bf16.msra.mxu0 0
  %2585 = vmatpush.bf16.msra.mxu0 0
  %2586 = vmatpush.bf16.msra.mxu0 0
  %2587 = vmatpush.bf16.msra.mxu0 0
  %2588 = vmatpush.bf16.msra.mxu0 0
  %2589 = vmatpush.bf16.msra.mxu0 0
  %2590 = vmatpush.bf16.msra.mxu0 0
  %2591 = vmatpush.bf16.msra.mxu0 %v2579
  %2592 = vmatmul.bf16.gmra.mxu0 %v2582
  %v2593 = vpop.f32.mrf.mxu0
  %v2594 = vadd.f32 0.0, %v2593
  %v2595 = vpop.f32.mrf.mxu0
  %2596 = vdwg.mxu0
  %2597 = vrot.lane.b32.xlu0 %v2373, 104
  %v2598 = vpop.permute.xlu0 %2597
  %2599 = vrot.lane.b32.xlu0 %v2257, 104
  %v2600 = vpop.permute.xlu0 %2599
  %v2602 = vsel %vm141, %v2598, 0
  %v2605 = vsel %vm141, %v2600, 0
  %2607 = vmatpush.bf16.xpose.msra.mxu0 0
  %2608 = vmatpush.bf16.xpose.msra.mxu0 0
  %2609 = vmatpush.bf16.xpose.msra.mxu0 0
  %2610 = vmatpush.bf16.xpose.msra.mxu0 0
  %2611 = vmatpush.bf16.xpose.msra.mxu0 0
  %2612 = vmatpush.bf16.xpose.msra.mxu0 0
  %2613 = vmatpush.bf16.xpose.msra.mxu0 0
  %2614 = vmatpush.bf16.xpose.msra.mxu0 %v2605
  %2615 = vmatmul.bf16.gmra.mxu0 %v2602
  %v2616 = vpop.f32.mrf.mxu0
  %v2617 = vadd.f32 0.0, %v2616
  %v2618 = vpop.f32.mrf.mxu0
  %2619 = vdwg.mxu0
  %2620 = vrot.lane.b32.xlu0 %v2399, 104
  %v2621 = vpop.permute.xlu0 %2620
  %2622 = vrot.lane.b32.xlu0 %v2281, 104
  %v2623 = vpop.permute.xlu0 %2622
  %v2625 = vsel %vm141, %v2621, 0
  %v2628 = vsel %vm141, %v2623, 0
  %2630 = vmatpush.bf16.xpose.msra.mxu0 0
  %2631 = vmatpush.bf16.xpose.msra.mxu0 0
  %2632 = vmatpush.bf16.xpose.msra.mxu0 0
  %2633 = vmatpush.bf16.xpose.msra.mxu0 0
  %2634 = vmatpush.bf16.xpose.msra.mxu0 0
  %2635 = vmatpush.bf16.xpose.msra.mxu0 0
  %2636 = vmatpush.bf16.xpose.msra.mxu0 0
  %2637 = vmatpush.bf16.xpose.msra.mxu0 %v2628
  %2638 = vmatmul.bf16.gmra.mxu0 %v2625
  %v2639 = vpop.f32.mrf.mxu0
  %v2640 = vadd.f32 0.0, %v2639
  %v2641 = vpop.f32.mrf.mxu0
  %2642 = vdwg.mxu0
  %v2643 = vmul.f32 %v2617, 0.35355338
  %v2644 = vmul.f32 %v2640, 0.35355338
  %v2645 = vsel %vm631, %v2643, -inf
  %2646 = vmax.xlane.f32.xlu0 %v2645
  %v2647 = vpop.xlane.xlu0 %2646
  %v2648 = vsel %vm631, %v2644, -inf
  %2649 = vmax.xlane.f32.xlu0 %v2648
  %v2650 = vpop.xlane.xlu0 %2649
  %v2651 = vsub.f32 %v2643, %v2647
  %v2652 = vsub.f32 %v2644, %v2650
  %v2653 = vmul.f32 %v2651, 1.442695
  %v2654 = vpow.pop %v2653
  %v2655 = vmul.f32 %v2652, 1.442695
  %v2656 = vpow.pop %v2655
  %v2657 = vsel %vm631, %v2654, 0.0
  %2658 = vadd.xlane.f32.xlu0 %v2657
  %v2659 = vpop.xlane.xlu0 %2658
  %v2660 = vsel %vm631, %v2656, 0.0
  %2661 = vadd.xlane.f32.xlu0 %v2660
  %v2662 = vpop.xlane.xlu0 %2661
  %v2663 = vrcp.pop %v2659
  %v2664 = vrcp.pop %v2662
  %v2665 = vmul.f32 %v2654, %v2663
  %v2666 = vmul.f32 %v2656, %v2664
  %v2667 = vpack.c.bf16 %v2665, %v2665
  %v2668 = vpack.c.bf16 %v2666, %v2666
  %2669 = vrot.lane.b32.xlu0 %v2331, 104
  %v2670 = vpop.permute.xlu0 %2669
  %v2673 = vsel %vm631, %v2667, 0
  %2675 = vmatpush.bf16.msra.mxu0 0
  %2676 = vmatpush.bf16.msra.mxu0 0
  %2677 = vmatpush.bf16.msra.mxu0 0
  %2678 = vmatpush.bf16.msra.mxu0 0
  %2679 = vmatpush.bf16.msra.mxu0 0
  %2680 = vmatpush.bf16.msra.mxu0 0
  %2681 = vmatpush.bf16.msra.mxu0 0
  %2682 = vmatpush.bf16.msra.mxu0 %v2670
  %2683 = vmatmul.bf16.gmra.mxu0 %v2673
  %v2684 = vpop.f32.mrf.mxu0
  %v2685 = vadd.f32 0.0, %v2684
  %v2686 = vpop.f32.mrf.mxu0
  %2687 = vdwg.mxu0
  %2688 = vrot.lane.b32.xlu0 %v2353, 104
  %v2689 = vpop.permute.xlu0 %2688
  %v2692 = vsel %vm631, %v2668, 0
  %2694 = vmatpush.bf16.msra.mxu0 0
  %2695 = vmatpush.bf16.msra.mxu0 0
  %2696 = vmatpush.bf16.msra.mxu0 0
  %2697 = vmatpush.bf16.msra.mxu0 0
  %2698 = vmatpush.bf16.msra.mxu0 0
  %2699 = vmatpush.bf16.msra.mxu0 0
  %2700 = vmatpush.bf16.msra.mxu0 0
  %2701 = vmatpush.bf16.msra.mxu0 %v2689
  %2702 = vmatmul.bf16.gmra.mxu0 %v2692
  %v2703 = vpop.f32.mrf.mxu0
  %v2704 = vadd.f32 0.0, %v2703
  %v2705 = vpop.f32.mrf.mxu0
  %2706 = vdwg.mxu0
  %2709 = vrot.lane.b32.xlu0 %v2465, 8
  %v2710 = vpop.permute.xlu0 %2709
  %2711 = vrot.lane.b32.xlu0 %v2484, 8
  %v2712 = vpop.permute.xlu0 %2711
  %2717 = vrot.lane.b32.xlu0 %v2575, 16
  %v2718 = vpop.permute.xlu0 %2717
  %2719 = vrot.lane.b32.xlu0 %v2594, 16
  %v2720 = vpop.permute.xlu0 %2719
  %2725 = vrot.lane.b32.xlu0 %v2685, 24
  %v2726 = vpop.permute.xlu0 %2725
  %2727 = vrot.lane.b32.xlu0 %v2704, 24
  %v2728 = vpop.permute.xlu0 %2727
  %v2731 = vsel %vm141, %v2346, %v2710
  %v2732 = vsel %vm141, %v2368, %v2712
  %v2733 = vsel %vm631, %v2731, %v2718
  %v2734 = vsel %vm631, %v2732, %v2720
  %v2735 = vsel %vm634, %v2733, %v2726
  %v2736 = vsel %vm634, %v2734, %v2728
  %v2737 = vpack.c.bf16 %v2736, %v2735
  %v2738 = vpack.c.bf16 %v2175, %v2174
  %v2739 = vpack.c.bf16 %v2177, %v2176
  %v2740 = vperm.slane %v1502, 7
  %v2742 = vsel %vm79, %v2737, 0
  %2744 = vmatpush.bf16.msra.mxu0 0
  %2745 = vmatpush.bf16.msra.mxu0 0
  %2746 = vmatpush.bf16.msra.mxu0 0
  %2747 = vmatpush.bf16.msra.mxu0 0
  %2748 = vmatpush.bf16.msra.mxu0 0
  %2749 = vmatpush.bf16.msra.mxu0 0
  %2750 = vmatpush.bf16.msra.mxu0 %v2739
  %2751 = vmatpush.bf16.msra.mxu0 %v2738
  %2752 = vmatmul.bf16.gmra.mxu0 %v2742
  %v2753 = vpop.f32.mrf.mxu0
  %v2754 = vadd.f32 %v2740, %v2753
  %v2755 = vpop.f32.mrf.mxu0
  %v2756 = vadd.f32 %v2740, %v2755
  %2757 = vdwg.mxu0
  %v2758 = vadd.f32 %v2154, %v2754
  %v2759 = vadd.f32 %v2155, %v2756
  %v2760 = vsel %vm79, %v2758, 0.0
  %2761 = vadd.xlane.f32.xlu0 %v2760
  %v2762 = vpop.xlane.xlu0 %2761
  %v2763 = vsel %vm79, %v2759, 0.0
  %2764 = vadd.xlane.f32.xlu0 %v2763
  %v2765 = vpop.xlane.xlu0 %2764
  %v2766 = vmul.f32 %v2762, %v672
  %v2767 = vmul.f32 %v2765, %v672
  %v2768 = vsub.f32 %v2758, %v2766
  %v2769 = vsub.f32 %v2759, %v2767
  %v2770 = vmul.f32 %v2768, %v2768
  %v2771 = vmul.f32 %v2769, %v2769
  %v2772 = vsel %vm79, %v2770, 0.0
  %2773 = vadd.xlane.f32.xlu0 %v2772
  %v2774 = vpop.xlane.xlu0 %2773
  %v2775 = vsel %vm79, %v2771, 0.0
  %2776 = vadd.xlane.f32.xlu0 %v2775
  %v2777 = vpop.xlane.xlu0 %2776
  %v2778 = vmul.f32 %v2774, %v672
  %v2779 = vmul.f32 %v2777, %v672
  %v2780 = vadd.f32 %v2778, 1e-05
  %v2781 = vadd.f32 %v2779, 1e-05
  %v2782 = vrsqrt.pop %v2780
  %v2783 = vmul.f32 %v2782, %v2780
  %v2784 = vmul.f32 %v2783, %v2782
  %v2785 = vmul.f32 0.5, %v2784
  %v2786 = vsub.f32 1.5, %v2785
  %v2787 = vmul.f32 %v2782, %v2786
  %vm2788 = vweird.f32 %v2780
  %vm2789 = vweird.f32 %v2782
  %vm2790 = vmor %vm2788, %vm2789
  %v2791 = vsel %vm2790, %v2782, %v2787
  %v2792 = vrsqrt.pop %v2781
  %v2793 = vmul.f32 %v2792, %v2781
  %v2794 = vmul.f32 %v2793, %v2792
  %v2795 = vmul.f32 0.5, %v2794
  %v2796 = vsub.f32 1.5, %v2795
  %v2797 = vmul.f32 %v2792, %v2796
  %vm2798 = vweird.f32 %v2781
  %vm2799 = vweird.f32 %v2792
  %vm2800 = vmor %vm2798, %vm2799
  %v2801 = vsel %vm2800, %v2792, %v2797
  %v2802 = vmul.f32 %v2768, %v2791
  %v2803 = vmul.f32 %v2769, %v2801
  %v2804 = vperm.slane %v1503, 3
  %v2805 = vmul.f32 %v2802, %v2804
  %v2806 = vmul.f32 %v2803, %v2804
  %v2807 = vperm.slane %v1503, 4
  %v2808 = vadd.f32 %v2805, %v2807
  %v2809 = vadd.f32 %v2806, %v2807
  %s2810 = scalar_lea.vmem %s5, 32
  %v2811 = vld [vmem:[%s2810] sm:$0xff]
  %v2812 = vld [vmem:[%s2810 + $0x8] sm:$0xff]
  %v2813 = vld [vmem:[%s2810 + $0x10] sm:$0xff]
  %v2814 = vld [vmem:[%s2810 + $0x18] sm:$0xff]
  %v2815 = vpack.c.bf16 %v2809, %v2808
  %v2816 = vpack.c.bf16 %v2812, %v2811
  %v2817 = vpack.c.bf16 %v2814, %v2813
  %s2818 = scalar_lea.vmem %s8, 1
  %v2819 = vld [vmem:[%s2818] sm:$0x1]
  %v2821 = vperm.slane %v2819, 0
  %v2824 = vsel %vm79, %v2815, 0
  %2826 = vmatpush.bf16.msra.mxu0 0
  %2827 = vmatpush.bf16.msra.mxu0 0
  %2828 = vmatpush.bf16.msra.mxu0 0
  %2829 = vmatpush.bf16.msra.mxu0 0
  %2830 = vmatpush.bf16.msra.mxu0 0
  %2831 = vmatpush.bf16.msra.mxu0 0
  %2832 = vmatpush.bf16.msra.mxu0 %v2817
  %2833 = vmatpush.bf16.msra.mxu0 %v2816
  %2834 = vmatmul.bf16.gmra.mxu0 %v2824
  %v2835 = vpop.f32.mrf.mxu0
  %v2836 = vadd.f32 %v2821, %v2835
  %v2837 = vpop.f32.mrf.mxu0
  %v2838 = vadd.f32 %v2821, %v2837
  %2839 = vdwg.mxu0
  %v2840 = vmax.f32 %v2836, 0.0
  %v2841 = vmax.f32 %v2838, 0.0
  %s2842 = scalar_lea.vmem %s6, 64
  %v2843 = vld [vmem:[%s2842] sm:$0xff]
  %v2844 = vld [vmem:[%s2842 + $0x8] sm:$0xff]
  %v2845 = vld [vmem:[%s2842 + $0x10] sm:$0xff]
  %v2846 = vld [vmem:[%s2842 + $0x18] sm:$0xff]
  %v2847 = vld [vmem:[%s2842 + $0x20] sm:$0xff]
  %v2848 = vld [vmem:[%s2842 + $0x28] sm:$0xff]
  %v2849 = vld [vmem:[%s2842 + $0x30] sm:$0xff]
  %v2850 = vld [vmem:[%s2842 + $0x38] sm:$0xff]
  %v2851 = vpack.c.bf16 %v2841, %v2840
  %v2852 = vpack.c.bf16 %v2844, %v2843
  %v2853 = vpack.c.bf16 %v2846, %v2845
  %v2854 = vpack.c.bf16 %v2848, %v2847
  %v2855 = vpack.c.bf16 %v2850, %v2849
  %v2856 = vperm.slane %v1503, 0
  %v2858 = vsel %vm1431, %v2851, 0
  %2860 = vmatpush.bf16.msra.mxu0 0
  %2861 = vmatpush.bf16.msra.mxu0 0
  %2862 = vmatpush.bf16.msra.mxu0 0
  %2863 = vmatpush.bf16.msra.mxu0 0
  %2864 = vmatpush.bf16.msra.mxu0 %v2855
  %2865 = vmatpush.bf16.msra.mxu0 %v2854
  %2866 = vmatpush.bf16.msra.mxu0 %v2853
  %2867 = vmatpush.bf16.msra.mxu0 %v2852
  %2868 = vmatmul.bf16.gmra.mxu0 %v2858
  %v2869 = vpop.f32.mrf.mxu0
  %v2870 = vadd.f32 %v2856, %v2869
  %v2871 = vpop.f32.mrf.mxu0
  %v2872 = vadd.f32 %v2856, %v2871
  %2873 = vdwg.mxu0
  %v2874 = vadd.f32 %v2808, %v2870
  %v2875 = vadd.f32 %v2809, %v2872
  %v2876 = vsel %vm79, %v2874, 0.0
  %2877 = vadd.xlane.f32.xlu0 %v2876
  %v2878 = vpop.xlane.xlu0 %2877
  %v2879 = vsel %vm79, %v2875, 0.0
  %2880 = vadd.xlane.f32.xlu0 %v2879
  %v2881 = vpop.xlane.xlu0 %2880
  %v2882 = vmul.f32 %v2878, %v672
  %v2883 = vmul.f32 %v2881, %v672
  %v2884 = vsub.f32 %v2874, %v2882
  %v2885 = vsub.f32 %v2875, %v2883
  %v2886 = vmul.f32 %v2884, %v2884
  %v2887 = vmul.f32 %v2885, %v2885
  %v2888 = vsel %vm79, %v2886, 0.0
  %2889 = vadd.xlane.f32.xlu0 %v2888
  %v2890 = vpop.xlane.xlu0 %2889
  %v2891 = vsel %vm79, %v2887, 0.0
  %2892 = vadd.xlane.f32.xlu0 %v2891
  %v2893 = vpop.xlane.xlu0 %2892
  %v2894 = vmul.f32 %v2890, %v672
  %v2895 = vmul.f32 %v2893, %v672
  %v2896 = vadd.f32 %v2894, 1e-05
  %v2897 = vadd.f32 %v2895, 1e-05
  %v2898 = vrsqrt.pop %v2896
  %v2899 = vmul.f32 %v2898, %v2896
  %v2900 = vmul.f32 %v2899, %v2898
  %v2901 = vmul.f32 0.5, %v2900
  %v2902 = vsub.f32 1.5, %v2901
  %v2903 = vmul.f32 %v2898, %v2902
  %vm2904 = vweird.f32 %v2896
  %vm2905 = vweird.f32 %v2898
  %vm2906 = vmor %vm2904, %vm2905
  %v2907 = vsel %vm2906, %v2898, %v2903
  %v2908 = vrsqrt.pop %v2897
  %v2909 = vmul.f32 %v2908, %v2897
  %v2910 = vmul.f32 %v2909, %v2908
  %v2911 = vmul.f32 0.5, %v2910
  %v2912 = vsub.f32 1.5, %v2911
  %v2913 = vmul.f32 %v2908, %v2912
  %vm2914 = vweird.f32 %v2897
  %vm2915 = vweird.f32 %v2908
  %vm2916 = vmor %vm2914, %vm2915
  %v2917 = vsel %vm2916, %v2908, %v2913
  %v2918 = vmul.f32 %v2884, %v2907
  %v2919 = vmul.f32 %v2885, %v2917
  %v2920 = vperm.slane %v1503, 5
  %v2921 = vmul.f32 %v2918, %v2920
  %v2922 = vmul.f32 %v2919, %v2920
  %v2923 = vperm.slane %v1503, 6
  %v2924 = vadd.f32 %v2921, %v2923
  %v2925 = vadd.f32 %v2922, %v2923
  %v2926 = vld [vmem:[%s9] sm:$0x1]
  %v2927 = vld [vmem:[%s9 + $0x1] sm:$0x1]
  %v2928 = vsel %vm79, %v2924, 0.0
  %2929 = vadd.xlane.f32.xlu0 %v2928
  %v2930 = vpop.xlane.xlu0 %2929
  %v2931 = vsel %vm79, %v2925, 0.0
  %2932 = vadd.xlane.f32.xlu0 %v2931
  %v2933 = vpop.xlane.xlu0 %2932
  %v2934 = vmul.f32 %v2930, %v672
  %v2935 = vmul.f32 %v2933, %v672
  %v2936 = vsub.f32 %v2924, %v2934
  %v2937 = vsub.f32 %v2925, %v2935
  %v2938 = vmul.f32 %v2936, %v2936
  %v2939 = vmul.f32 %v2937, %v2937
  %v2940 = vsel %vm79, %v2938, 0.0
  %2941 = vadd.xlane.f32.xlu0 %v2940
  %v2942 = vpop.xlane.xlu0 %2941
  %v2943 = vsel %vm79, %v2939, 0.0
  %2944 = vadd.xlane.f32.xlu0 %v2943
  %v2945 = vpop.xlane.xlu0 %2944
  %v2946 = vmul.f32 %v2942, %v672
  %v2947 = vmul.f32 %v2945, %v672
  %v2948 = vadd.f32 %v2946, 1e-05
  %v2949 = vadd.f32 %v2947, 1e-05
  %v2950 = vrsqrt.pop %v2948
  %v2951 = vmul.f32 %v2950, %v2948
  %v2952 = vmul.f32 %v2951, %v2950
  %v2953 = vmul.f32 0.5, %v2952
  %v2954 = vsub.f32 1.5, %v2953
  %v2955 = vmul.f32 %v2950, %v2954
  %vm2956 = vweird.f32 %v2948
  %vm2957 = vweird.f32 %v2950
  %vm2958 = vmor %vm2956, %vm2957
  %v2959 = vsel %vm2958, %v2950, %v2955
  %v2960 = vrsqrt.pop %v2949
  %v2961 = vmul.f32 %v2960, %v2949
  %v2962 = vmul.f32 %v2961, %v2960
  %v2963 = vmul.f32 0.5, %v2962
  %v2964 = vsub.f32 1.5, %v2963
  %v2965 = vmul.f32 %v2960, %v2964
  %vm2966 = vweird.f32 %v2949
  %vm2967 = vweird.f32 %v2960
  %vm2968 = vmor %vm2966, %vm2967
  %v2969 = vsel %vm2968, %v2960, %v2965
  %v2970 = vmul.f32 %v2936, %v2959
  %v2971 = vmul.f32 %v2937, %v2969
  %v2972 = vperm.slane %v2926, 0
  %v2973 = vmul.f32 %v2970, %v2972
  %v2974 = vmul.f32 %v2971, %v2972
  %v2975 = vperm.slane %v2927, 0
  %v2976 = vadd.f32 %v2973, %v2975
  %v2977 = vadd.f32 %v2974, %v2975
  %2978 = vst.msk [vmem:[%s10] sm:$0xff] %vm79, %v2976
  %2979 = vst.msk [vmem:[%s10 + $0x8] sm:$0xff] %vm79, %v2977
  // Predicated region
  $region42: #{transformer_decoder.1} parent=0 // pred_check
    _
  $region43: #{transformer_decoder.1} parent=0 // pred_check_branch
    %2981 = sbr.rel (0) target = $region45
  $region44: #{transformer_decoder.1} parent=0 // pred_region
    _
  $region45: #{transformer_decoder.1} parent=0 // pred_fallthru
    _
  // Predicated region
  $region46: #{transformer_decoder.1} parent=0 // pred_check
    _
  $region47: #{transformer_decoder.1} parent=0 // pred_check_branch
    %2983 = sbr.rel (0) target = $region49
  $region48: #{transformer_decoder.1} parent=0 // pred_region
    _
  $region49: #{transformer_decoder.1} parent=0 // pred_fallthru
    _

</llo_original>
